<compile_context>
chip_gen: v5e
topology: v5e:2x2
jax: 0.10.0
libtpu: 0.0.40
codegen_flags: <defaults>
</compile_context>

<pallas_src>
import math

import jax
import jax.numpy as jnp
from jax.experimental import pallas as pl
from jax.experimental.pallas import tpu as pltpu

EPS = 1e-5  # nn.InstanceNorm2d default


def residual_kernel(x_ref, w1_ref, b1_ref, w2_ref, b2_ref, o_ref):
    # x_ref block: (1, H, W, C); w*_ref: (9, Cin, Cout); b*_ref: (1, Cout)
    H, W, C = x_ref.shape[1], x_ref.shape[2], x_ref.shape[3]
    HW = H * W

    def reflect_pad1(t):
        # ReflectionPad2d(1) on the (H, W) dims of an (H, W, C) slab, in VMEM.
        t = jnp.concatenate([t[1:2], t, t[H - 2:H - 1]], axis=0)
        t = jnp.concatenate([t[:, 1:2], t, t[:, W - 2:W - 1]], axis=1)
        return t

    def conv3x3(t_hwc, w_ref, b_ref):
        # t_hwc: (H, W, Cin). Per-tap MXU matmul: (H*W, Cin) @ (Cin, Cout).
        tp = reflect_pad1(t_hwc)                      # (H+2, W+2, Cin)
        bias = b_ref[...]                             # (1, Cout) — loaded once
        acc = jnp.zeros((HW, C), jnp.float32)
        for k in range(9):                            # 9 taps, unrolled
            dh, dw = k // 3, k % 3
            wk = w_ref[k]                             # (Cin, Cout) — hoisted
            # Layout-preserving collapse of (H, W) -> H*W (C stays on lanes).
            win = tp[dh:dh + H, dw:dw + W, :].reshape(HW, C)
            acc = acc + jnp.dot(win, wk, preferred_element_type=jnp.float32)
        return acc + bias                             # (HW, Cout)

    def inst_norm(t):
        # t: (HW, C). One-pass per-channel mean / biased variance, eps=1e-5.
        inv_n = 1.0 / float(HW)
        mean = jnp.sum(t, axis=0, keepdims=True) * inv_n        # (1, C)
        ex2 = jnp.sum(t * t, axis=0, keepdims=True) * inv_n     # (1, C)
        var = ex2 - mean * mean
        return (t - mean) * jax.lax.rsqrt(var + EPS)

    y = conv3x3(x_ref[0], w1_ref, b1_ref)             # (HW, C)
    y = jnp.maximum(inst_norm(y), 0.0)                # ReLU
    y = conv3x3(y.reshape(H, W, C), w2_ref, b2_ref)
    y = inst_norm(y)
    # Re-read x at point of use (don't keep the slab live across both convs).
    o_ref[0] = x_ref[0] + y.reshape(H, W, C)          # residual add


def residual_block(x_nchw, w1, b1, w2, b2):
    """x_nchw: (N, C, H, W); w*: (C, C, 3, 3) OIHW; b*: (C,). Returns NCHW."""
    N, C, H, W = x_nchw.shape
    assert H >= 2 and W >= 2, "ReflectionPad2d(1) requires H, W >= 2"

    x = jnp.transpose(x_nchw, (0, 2, 3, 1))                     # NHWC for kernel

    def prep_w(w):
        # (Cout, Cin, 3, 3) -> (9, Cin, Cout), tap index k = dh*3 + dw
        return jnp.transpose(w.reshape(C, C, 9), (2, 1, 0))

    w1t, w2t = prep_w(w1), prep_w(w2)
    b1r, b2r = b1.reshape(1, C), b2.reshape(1, C)

    # Advisory cost hint so XLA can overlap the custom call with neighbors.
    flops = N * 2 * (2 * 9 * H * W * C * C)            # two 3x3 convs
    bytes_accessed = 2 * N * H * W * C * 4 + 2 * 9 * C * C * 4 + 2 * C * 4
    cost = pl.CostEstimate(flops=flops,
                           transcendentals=2 * N * C,  # rsqrt per channel/norm
                           bytes_accessed=bytes_accessed)

    out = pl.pallas_call(
        residual_kernel,
        out_shape=jax.ShapeDtypeStruct((N, H, W, C), x.dtype),
        grid_spec=pltpu.PrefetchScalarGridSpec(
            num_scalar_prefetch=0,
            grid=(N,),
            in_specs=[
                pl.BlockSpec((1, H, W, C), lambda n: (n, 0, 0, 0)),
                pl.BlockSpec((9, C, C), lambda n: (0, 0, 0)),
                pl.BlockSpec((1, C), lambda n: (0, 0)),
                pl.BlockSpec((9, C, C), lambda n: (0, 0, 0)),
                pl.BlockSpec((1, C), lambda n: (0, 0)),
            ],
            out_specs=pl.BlockSpec((1, H, W, C), lambda n: (n, 0, 0, 0)),
        ),
        compiler_params=pltpu.CompilerParams(
            dimension_semantics=("parallel",)),
        cost_estimate=cost,
    )(x, w1t, b1r, w2t, b2r)

    return jnp.transpose(out, (0, 3, 1, 2))                     # back to NCHW


def _reference(x, w1, b1, w2, b2):
    # Pure-JAX reference mirroring the PyTorch module (NCHW).
    def conv(h, w, b):
        hp = jnp.pad(h, ((0, 0), (0, 0), (1, 1), (1, 1)), mode="reflect")
        y = jax.lax.conv_general_dilated(
            hp, w, window_strides=(1, 1), padding="VALID",
            dimension_numbers=("NCHW", "OIHW", "NCHW"))
        return y + b[None, :, None, None]

    def inorm(y):
        m = jnp.mean(y, axis=(2, 3), keepdims=True)
        v = jnp.mean((y - m) ** 2, axis=(2, 3), keepdims=True)
        return (y - m) / jnp.sqrt(v + EPS)

    y = jnp.maximum(inorm(conv(x, w1, b1)), 0.0)
    y = inorm(conv(y, w2, b2))
    return x + y


if __name__ == "__main__":
    N, C, H, W = 2, 4, 16, 16
    key = jax.random.PRNGKey(0)
    kx, kw1, kb1, kw2, kb2 = jax.random.split(key, 5)

    bound = 1.0 / math.sqrt(C * 3 * 3)   # PyTorch Conv2d default init bound
    x = jax.random.normal(kx, (N, C, H, W), jnp.float32)
    w1 = jax.random.uniform(kw1, (C, C, 3, 3), jnp.float32, -bound, bound)
    b1 = jax.random.uniform(kb1, (C,), jnp.float32, -bound, bound)
    w2 = jax.random.uniform(kw2, (C, C, 3, 3), jnp.float32, -bound, bound)
    b2 = jax.random.uniform(kb2, (C,), jnp.float32, -bound, bound)

    out = jax.jit(residual_block)(x, w1, b1, w2, b2)
    jax.block_until_ready(out)

    ref = _reference(x, w1, b1, w2, b2)
    assert out.shape == (N, C, H, W)
    assert jnp.allclose(out, ref, rtol=1e-4, atol=1e-4), "mismatch vs reference"

    print("KERNEL_OK")
</pallas_src>

<mosaic_0001>
module attributes {stable_mosaic.version = 11 : i64} {
  func.func @residual_kernel(%arg0: i32, %arg1: memref<1x16x16x4xf32, #tpu.memory_space<vmem>>, %arg2: memref<9x4x4xf32, #tpu.memory_space<vmem>>, %arg3: memref<1x4xf32, #tpu.memory_space<vmem>>, %arg4: memref<9x4x4xf32, #tpu.memory_space<vmem>>, %arg5: memref<1x4xf32, #tpu.memory_space<vmem>>, %arg6: memref<1x16x16x4xf32, #tpu.memory_space<vmem>>) attributes {dimension_semantics = [#tpu.dimension_semantics<parallel>], iteration_bounds = array<i64: 2>, scalar_prefetch = 0 : i64, scratch_operands = 0 : i64, tpu.core_type = #tpu.core_type<tc>, window_params = [{transform_indices = @transform_0, window_bounds = array<i64: 1, 16, 16, 4>}, {pipeline_mode = #tpu.pipeline_mode<synchronous>, transform_indices = @transform_1, window_bounds = array<i64: 9, 4, 4>}, {pipeline_mode = #tpu.pipeline_mode<synchronous>, transform_indices = @transform_2, window_bounds = array<i64: 1, 4>}, {pipeline_mode = #tpu.pipeline_mode<synchronous>, transform_indices = @transform_3, window_bounds = array<i64: 9, 4, 4>}, {pipeline_mode = #tpu.pipeline_mode<synchronous>, transform_indices = @transform_4, window_bounds = array<i64: 1, 4>}, {transform_indices = @transform_5, window_bounds = array<i64: 1, 16, 16, 4>}]} {
    %c0 = arith.constant 0 : index
    %c0_0 = arith.constant 0 : index
    %c0_1 = arith.constant 0 : index
    %c0_2 = arith.constant 0 : index
    %0 = vector.load %arg1[%c0, %c0_0, %c0_1, %c0_2] : memref<1x16x16x4xf32, #tpu.memory_space<vmem>>, vector<1x16x16x4xf32>
    %1 = vector.shape_cast %0 : vector<1x16x16x4xf32> to vector<16x16x4xf32>
    %2 = vector.extract_strided_slice %1 {offsets = [1, 0, 0], sizes = [1, 16, 4], strides = [1, 1, 1]} : vector<16x16x4xf32> to vector<1x16x4xf32>
    %3 = vector.extract_strided_slice %1 {offsets = [14, 0, 0], sizes = [1, 16, 4], strides = [1, 1, 1]} : vector<16x16x4xf32> to vector<1x16x4xf32>
    %4 = tpu.concatenate %2, %1, %3 in 0 : vector<1x16x4xf32>, vector<16x16x4xf32>, vector<1x16x4xf32> -> vector<18x16x4xf32>
    %5 = vector.extract_strided_slice %4 {offsets = [0, 1, 0], sizes = [18, 1, 4], strides = [1, 1, 1]} : vector<18x16x4xf32> to vector<18x1x4xf32>
    %6 = vector.extract_strided_slice %4 {offsets = [0, 14, 0], sizes = [18, 1, 4], strides = [1, 1, 1]} : vector<18x16x4xf32> to vector<18x1x4xf32>
    %7 = tpu.concatenate %5, %4, %6 in 1 : vector<18x1x4xf32>, vector<18x16x4xf32>, vector<18x1x4xf32> -> vector<18x18x4xf32>
    %c0_3 = arith.constant 0 : index
    %c0_4 = arith.constant 0 : index
    %8 = vector.load %arg3[%c0_3, %c0_4] : memref<1x4xf32, #tpu.memory_space<vmem>>, vector<1x4xf32>
    %cst = arith.constant 0.000000e+00 : f32
    %9 = vector.broadcast %cst : f32 to vector<256x4xf32>
    %c0_5 = arith.constant 0 : index
    %c0_6 = arith.constant 0 : index
    %c0_7 = arith.constant 0 : index
    %10 = vector.load %arg2[%c0_5, %c0_6, %c0_7] : memref<9x4x4xf32, #tpu.memory_space<vmem>>, vector<1x4x4xf32>
    %11 = vector.shape_cast %10 : vector<1x4x4xf32> to vector<4x4xf32>
    %12 = vector.extract_strided_slice %7 {offsets = [0, 0, 0], sizes = [16, 16, 4], strides = [1, 1, 1]} : vector<18x18x4xf32> to vector<16x16x4xf32>
    %13 = vector.shape_cast %12 : vector<16x16x4xf32> to vector<256x4xf32>
    %cst_8 = arith.constant dense<0.000000e+00> : vector<256x4xf32>
    %14 = tpu.matmul %13, %11, %cst_8 {dimension_numbers = #tpu.dot_dimension_numbers<[1], [0], [0], [1], [0, 0, 1, 1], [], []>} : vector<256x4xf32>, vector<4x4xf32>, vector<256x4xf32> -> vector<256x4xf32>
    %15 = arith.addf %9, %14 : vector<256x4xf32>
    %c1 = arith.constant 1 : index
    %c0_9 = arith.constant 0 : index
    %c0_10 = arith.constant 0 : index
    %16 = vector.load %arg2[%c1, %c0_9, %c0_10] : memref<9x4x4xf32, #tpu.memory_space<vmem>>, vector<1x4x4xf32>
    %17 = vector.shape_cast %16 : vector<1x4x4xf32> to vector<4x4xf32>
    %18 = vector.extract_strided_slice %7 {offsets = [0, 1, 0], sizes = [16, 16, 4], strides = [1, 1, 1]} : vector<18x18x4xf32> to vector<16x16x4xf32>
    %19 = vector.shape_cast %18 : vector<16x16x4xf32> to vector<256x4xf32>
    %cst_11 = arith.constant dense<0.000000e+00> : vector<256x4xf32>
    %20 = tpu.matmul %19, %17, %cst_11 {dimension_numbers = #tpu.dot_dimension_numbers<[1], [0], [0], [1], [0, 0, 1, 1], [], []>} : vector<256x4xf32>, vector<4x4xf32>, vector<256x4xf32> -> vector<256x4xf32>
    %21 = arith.addf %15, %20 : vector<256x4xf32>
    %c2 = arith.constant 2 : index
    %c0_12 = arith.constant 0 : index
    %c0_13 = arith.constant 0 : index
    %22 = vector.load %arg2[%c2, %c0_12, %c0_13] : memref<9x4x4xf32, #tpu.memory_space<vmem>>, vector<1x4x4xf32>
    %23 = vector.shape_cast %22 : vector<1x4x4xf32> to vector<4x4xf32>
    %24 = vector.extract_strided_slice %7 {offsets = [0, 2, 0], sizes = [16, 16, 4], strides = [1, 1, 1]} : vector<18x18x4xf32> to vector<16x16x4xf32>
    %25 = vector.shape_cast %24 : vector<16x16x4xf32> to vector<256x4xf32>
    %cst_14 = arith.constant dense<0.000000e+00> : vector<256x4xf32>
    %26 = tpu.matmul %25, %23, %cst_14 {dimension_numbers = #tpu.dot_dimension_numbers<[1], [0], [0], [1], [0, 0, 1, 1], [], []>} : vector<256x4xf32>, vector<4x4xf32>, vector<256x4xf32> -> vector<256x4xf32>
    %27 = arith.addf %21, %26 : vector<256x4xf32>
    %c3 = arith.constant 3 : index
    %c0_15 = arith.constant 0 : index
    %c0_16 = arith.constant 0 : index
    %28 = vector.load %arg2[%c3, %c0_15, %c0_16] : memref<9x4x4xf32, #tpu.memory_space<vmem>>, vector<1x4x4xf32>
    %29 = vector.shape_cast %28 : vector<1x4x4xf32> to vector<4x4xf32>
    %30 = vector.extract_strided_slice %7 {offsets = [1, 0, 0], sizes = [16, 16, 4], strides = [1, 1, 1]} : vector<18x18x4xf32> to vector<16x16x4xf32>
    %31 = vector.shape_cast %30 : vector<16x16x4xf32> to vector<256x4xf32>
    %cst_17 = arith.constant dense<0.000000e+00> : vector<256x4xf32>
    %32 = tpu.matmul %31, %29, %cst_17 {dimension_numbers = #tpu.dot_dimension_numbers<[1], [0], [0], [1], [0, 0, 1, 1], [], []>} : vector<256x4xf32>, vector<4x4xf32>, vector<256x4xf32> -> vector<256x4xf32>
    %33 = arith.addf %27, %32 : vector<256x4xf32>
    %c4 = arith.constant 4 : index
    %c0_18 = arith.constant 0 : index
    %c0_19 = arith.constant 0 : index
    %34 = vector.load %arg2[%c4, %c0_18, %c0_19] : memref<9x4x4xf32, #tpu.memory_space<vmem>>, vector<1x4x4xf32>
    %35 = vector.shape_cast %34 : vector<1x4x4xf32> to vector<4x4xf32>
    %36 = vector.extract_strided_slice %7 {offsets = [1, 1, 0], sizes = [16, 16, 4], strides = [1, 1, 1]} : vector<18x18x4xf32> to vector<16x16x4xf32>
    %37 = vector.shape_cast %36 : vector<16x16x4xf32> to vector<256x4xf32>
    %cst_20 = arith.constant dense<0.000000e+00> : vector<256x4xf32>
    %38 = tpu.matmul %37, %35, %cst_20 {dimension_numbers = #tpu.dot_dimension_numbers<[1], [0], [0], [1], [0, 0, 1, 1], [], []>} : vector<256x4xf32>, vector<4x4xf32>, vector<256x4xf32> -> vector<256x4xf32>
    %39 = arith.addf %33, %38 : vector<256x4xf32>
    %c5 = arith.constant 5 : index
    %c0_21 = arith.constant 0 : index
    %c0_22 = arith.constant 0 : index
    %40 = vector.load %arg2[%c5, %c0_21, %c0_22] : memref<9x4x4xf32, #tpu.memory_space<vmem>>, vector<1x4x4xf32>
    %41 = vector.shape_cast %40 : vector<1x4x4xf32> to vector<4x4xf32>
    %42 = vector.extract_strided_slice %7 {offsets = [1, 2, 0], sizes = [16, 16, 4], strides = [1, 1, 1]} : vector<18x18x4xf32> to vector<16x16x4xf32>
    %43 = vector.shape_cast %42 : vector<16x16x4xf32> to vector<256x4xf32>
    %cst_23 = arith.constant dense<0.000000e+00> : vector<256x4xf32>
    %44 = tpu.matmul %43, %41, %cst_23 {dimension_numbers = #tpu.dot_dimension_numbers<[1], [0], [0], [1], [0, 0, 1, 1], [], []>} : vector<256x4xf32>, vector<4x4xf32>, vector<256x4xf32> -> vector<256x4xf32>
    %45 = arith.addf %39, %44 : vector<256x4xf32>
    %c6 = arith.constant 6 : index
    %c0_24 = arith.constant 0 : index
    %c0_25 = arith.constant 0 : index
    %46 = vector.load %arg2[%c6, %c0_24, %c0_25] : memref<9x4x4xf32, #tpu.memory_space<vmem>>, vector<1x4x4xf32>
    %47 = vector.shape_cast %46 : vector<1x4x4xf32> to vector<4x4xf32>
    %48 = vector.extract_strided_slice %7 {offsets = [2, 0, 0], sizes = [16, 16, 4], strides = [1, 1, 1]} : vector<18x18x4xf32> to vector<16x16x4xf32>
    %49 = vector.shape_cast %48 : vector<16x16x4xf32> to vector<256x4xf32>
    %cst_26 = arith.constant dense<0.000000e+00> : vector<256x4xf32>
    %50 = tpu.matmul %49, %47, %cst_26 {dimension_numbers = #tpu.dot_dimension_numbers<[1], [0], [0], [1], [0, 0, 1, 1], [], []>} : vector<256x4xf32>, vector<4x4xf32>, vector<256x4xf32> -> vector<256x4xf32>
    %51 = arith.addf %45, %50 : vector<256x4xf32>
    %c7 = arith.constant 7 : index
    %c0_27 = arith.constant 0 : index
    %c0_28 = arith.constant 0 : index
    %52 = vector.load %arg2[%c7, %c0_27, %c0_28] : memref<9x4x4xf32, #tpu.memory_space<vmem>>, vector<1x4x4xf32>
    %53 = vector.shape_cast %52 : vector<1x4x4xf32> to vector<4x4xf32>
    %54 = vector.extract_strided_slice %7 {offsets = [2, 1, 0], sizes = [16, 16, 4], strides = [1, 1, 1]} : vector<18x18x4xf32> to vector<16x16x4xf32>
    %55 = vector.shape_cast %54 : vector<16x16x4xf32> to vector<256x4xf32>
    %cst_29 = arith.constant dense<0.000000e+00> : vector<256x4xf32>
    %56 = tpu.matmul %55, %53, %cst_29 {dimension_numbers = #tpu.dot_dimension_numbers<[1], [0], [0], [1], [0, 0, 1, 1], [], []>} : vector<256x4xf32>, vector<4x4xf32>, vector<256x4xf32> -> vector<256x4xf32>
    %57 = arith.addf %51, %56 : vector<256x4xf32>
    %c8 = arith.constant 8 : index
    %c0_30 = arith.constant 0 : index
    %c0_31 = arith.constant 0 : index
    %58 = vector.load %arg2[%c8, %c0_30, %c0_31] : memref<9x4x4xf32, #tpu.memory_space<vmem>>, vector<1x4x4xf32>
    %59 = vector.shape_cast %58 : vector<1x4x4xf32> to vector<4x4xf32>
    %60 = vector.extract_strided_slice %7 {offsets = [2, 2, 0], sizes = [16, 16, 4], strides = [1, 1, 1]} : vector<18x18x4xf32> to vector<16x16x4xf32>
    %61 = vector.shape_cast %60 : vector<16x16x4xf32> to vector<256x4xf32>
    %cst_32 = arith.constant dense<0.000000e+00> : vector<256x4xf32>
    %62 = tpu.matmul %61, %59, %cst_32 {dimension_numbers = #tpu.dot_dimension_numbers<[1], [0], [0], [1], [0, 0, 1, 1], [], []>} : vector<256x4xf32>, vector<4x4xf32>, vector<256x4xf32> -> vector<256x4xf32>
    %63 = arith.addf %57, %62 : vector<256x4xf32>
    %64 = vector.broadcast %8 : vector<1x4xf32> to vector<256x4xf32>
    %65 = arith.addf %63, %64 : vector<256x4xf32>
    %cst_33 = arith.constant dense<0.000000e+00> : vector<4xf32>
    %66 = vector.multi_reduction <add>, %65, %cst_33 [0] : vector<256x4xf32> to vector<4xf32>
    %67 = vector.shape_cast %66 : vector<4xf32> to vector<1x4xf32>
    %cst_34 = arith.constant 3.906250e-03 : f32
    %68 = vector.broadcast %cst_34 : f32 to vector<1x4xf32>
    %69 = arith.mulf %67, %68 : vector<1x4xf32>
    %70 = arith.mulf %65, %65 : vector<256x4xf32>
    %cst_35 = arith.constant dense<0.000000e+00> : vector<4xf32>
    %71 = vector.multi_reduction <add>, %70, %cst_35 [0] : vector<256x4xf32> to vector<4xf32>
    %72 = vector.shape_cast %71 : vector<4xf32> to vector<1x4xf32>
    %cst_36 = arith.constant 3.906250e-03 : f32
    %73 = vector.broadcast %cst_36 : f32 to vector<1x4xf32>
    %74 = arith.mulf %72, %73 : vector<1x4xf32>
    %75 = arith.mulf %69, %69 : vector<1x4xf32>
    %76 = arith.subf %74, %75 : vector<1x4xf32>
    %77 = vector.broadcast %69 : vector<1x4xf32> to vector<256x4xf32>
    %78 = arith.subf %65, %77 : vector<256x4xf32>
    %cst_37 = arith.constant 9.99999974E-6 : f32
    %79 = vector.broadcast %cst_37 : f32 to vector<1x4xf32>
    %80 = arith.addf %76, %79 : vector<1x4xf32>
    %81 = math.rsqrt %80 : vector<1x4xf32>
    %82 = vector.broadcast %81 : vector<1x4xf32> to vector<256x4xf32>
    %83 = arith.mulf %78, %82 : vector<256x4xf32>
    %cst_38 = arith.constant 0.000000e+00 : f32
    %84 = vector.broadcast %cst_38 : f32 to vector<256x4xf32>
    %85 = arith.maximumf %83, %84 : vector<256x4xf32>
    %86 = vector.shape_cast %85 : vector<256x4xf32> to vector<16x16x4xf32>
    %87 = vector.extract_strided_slice %86 {offsets = [1, 0, 0], sizes = [1, 16, 4], strides = [1, 1, 1]} : vector<16x16x4xf32> to vector<1x16x4xf32>
    %88 = vector.extract_strided_slice %86 {offsets = [14, 0, 0], sizes = [1, 16, 4], strides = [1, 1, 1]} : vector<16x16x4xf32> to vector<1x16x4xf32>
    %89 = tpu.concatenate %87, %86, %88 in 0 : vector<1x16x4xf32>, vector<16x16x4xf32>, vector<1x16x4xf32> -> vector<18x16x4xf32>
    %90 = vector.extract_strided_slice %89 {offsets = [0, 1, 0], sizes = [18, 1, 4], strides = [1, 1, 1]} : vector<18x16x4xf32> to vector<18x1x4xf32>
    %91 = vector.extract_strided_slice %89 {offsets = [0, 14, 0], sizes = [18, 1, 4], strides = [1, 1, 1]} : vector<18x16x4xf32> to vector<18x1x4xf32>
    %92 = tpu.concatenate %90, %89, %91 in 1 : vector<18x1x4xf32>, vector<18x16x4xf32>, vector<18x1x4xf32> -> vector<18x18x4xf32>
    %c0_39 = arith.constant 0 : index
    %c0_40 = arith.constant 0 : index
    %93 = vector.load %arg5[%c0_39, %c0_40] : memref<1x4xf32, #tpu.memory_space<vmem>>, vector<1x4xf32>
    %cst_41 = arith.constant 0.000000e+00 : f32
    %94 = vector.broadcast %cst_41 : f32 to vector<256x4xf32>
    %c0_42 = arith.constant 0 : index
    %c0_43 = arith.constant 0 : index
    %c0_44 = arith.constant 0 : index
    %95 = vector.load %arg4[%c0_42, %c0_43, %c0_44] : memref<9x4x4xf32, #tpu.memory_space<vmem>>, vector<1x4x4xf32>
    %96 = vector.shape_cast %95 : vector<1x4x4xf32> to vector<4x4xf32>
    %97 = vector.extract_strided_slice %92 {offsets = [0, 0, 0], sizes = [16, 16, 4], strides = [1, 1, 1]} : vector<18x18x4xf32> to vector<16x16x4xf32>
    %98 = vector.shape_cast %97 : vector<16x16x4xf32> to vector<256x4xf32>
    %cst_45 = arith.constant dense<0.000000e+00> : vector<256x4xf32>
    %99 = tpu.matmul %98, %96, %cst_45 {dimension_numbers = #tpu.dot_dimension_numbers<[1], [0], [0], [1], [0, 0, 1, 1], [], []>} : vector<256x4xf32>, vector<4x4xf32>, vector<256x4xf32> -> vector<256x4xf32>
    %100 = arith.addf %94, %99 : vector<256x4xf32>
    %c1_46 = arith.constant 1 : index
    %c0_47 = arith.constant 0 : index
    %c0_48 = arith.constant 0 : index
    %101 = vector.load %arg4[%c1_46, %c0_47, %c0_48] : memref<9x4x4xf32, #tpu.memory_space<vmem>>, vector<1x4x4xf32>
    %102 = vector.shape_cast %101 : vector<1x4x4xf32> to vector<4x4xf32>
    %103 = vector.extract_strided_slice %92 {offsets = [0, 1, 0], sizes = [16, 16, 4], strides = [1, 1, 1]} : vector<18x18x4xf32> to vector<16x16x4xf32>
    %104 = vector.shape_cast %103 : vector<16x16x4xf32> to vector<256x4xf32>
    %cst_49 = arith.constant dense<0.000000e+00> : vector<256x4xf32>
    %105 = tpu.matmul %104, %102, %cst_49 {dimension_numbers = #tpu.dot_dimension_numbers<[1], [0], [0], [1], [0, 0, 1, 1], [], []>} : vector<256x4xf32>, vector<4x4xf32>, vector<256x4xf32> -> vector<256x4xf32>
    %106 = arith.addf %100, %105 : vector<256x4xf32>
    %c2_50 = arith.constant 2 : index
    %c0_51 = arith.constant 0 : index
    %c0_52 = arith.constant 0 : index
    %107 = vector.load %arg4[%c2_50, %c0_51, %c0_52] : memref<9x4x4xf32, #tpu.memory_space<vmem>>, vector<1x4x4xf32>
    %108 = vector.shape_cast %107 : vector<1x4x4xf32> to vector<4x4xf32>
    %109 = vector.extract_strided_slice %92 {offsets = [0, 2, 0], sizes = [16, 16, 4], strides = [1, 1, 1]} : vector<18x18x4xf32> to vector<16x16x4xf32>
    %110 = vector.shape_cast %109 : vector<16x16x4xf32> to vector<256x4xf32>
    %cst_53 = arith.constant dense<0.000000e+00> : vector<256x4xf32>
    %111 = tpu.matmul %110, %108, %cst_53 {dimension_numbers = #tpu.dot_dimension_numbers<[1], [0], [0], [1], [0, 0, 1, 1], [], []>} : vector<256x4xf32>, vector<4x4xf32>, vector<256x4xf32> -> vector<256x4xf32>
    %112 = arith.addf %106, %111 : vector<256x4xf32>
    %c3_54 = arith.constant 3 : index
    %c0_55 = arith.constant 0 : index
    %c0_56 = arith.constant 0 : index
    %113 = vector.load %arg4[%c3_54, %c0_55, %c0_56] : memref<9x4x4xf32, #tpu.memory_space<vmem>>, vector<1x4x4xf32>
    %114 = vector.shape_cast %113 : vector<1x4x4xf32> to vector<4x4xf32>
    %115 = vector.extract_strided_slice %92 {offsets = [1, 0, 0], sizes = [16, 16, 4], strides = [1, 1, 1]} : vector<18x18x4xf32> to vector<16x16x4xf32>
    %116 = vector.shape_cast %115 : vector<16x16x4xf32> to vector<256x4xf32>
    %cst_57 = arith.constant dense<0.000000e+00> : vector<256x4xf32>
    %117 = tpu.matmul %116, %114, %cst_57 {dimension_numbers = #tpu.dot_dimension_numbers<[1], [0], [0], [1], [0, 0, 1, 1], [], []>} : vector<256x4xf32>, vector<4x4xf32>, vector<256x4xf32> -> vector<256x4xf32>
    %118 = arith.addf %112, %117 : vector<256x4xf32>
    %c4_58 = arith.constant 4 : index
    %c0_59 = arith.constant 0 : index
    %c0_60 = arith.constant 0 : index
    %119 = vector.load %arg4[%c4_58, %c0_59, %c0_60] : memref<9x4x4xf32, #tpu.memory_space<vmem>>, vector<1x4x4xf32>
    %120 = vector.shape_cast %119 : vector<1x4x4xf32> to vector<4x4xf32>
    %121 = vector.extract_strided_slice %92 {offsets = [1, 1, 0], sizes = [16, 16, 4], strides = [1, 1, 1]} : vector<18x18x4xf32> to vector<16x16x4xf32>
    %122 = vector.shape_cast %121 : vector<16x16x4xf32> to vector<256x4xf32>
    %cst_61 = arith.constant dense<0.000000e+00> : vector<256x4xf32>
    %123 = tpu.matmul %122, %120, %cst_61 {dimension_numbers = #tpu.dot_dimension_numbers<[1], [0], [0], [1], [0, 0, 1, 1], [], []>} : vector<256x4xf32>, vector<4x4xf32>, vector<256x4xf32> -> vector<256x4xf32>
    %124 = arith.addf %118, %123 : vector<256x4xf32>
    %c5_62 = arith.constant 5 : index
    %c0_63 = arith.constant 0 : index
    %c0_64 = arith.constant 0 : index
    %125 = vector.load %arg4[%c5_62, %c0_63, %c0_64] : memref<9x4x4xf32, #tpu.memory_space<vmem>>, vector<1x4x4xf32>
    %126 = vector.shape_cast %125 : vector<1x4x4xf32> to vector<4x4xf32>
    %127 = vector.extract_strided_slice %92 {offsets = [1, 2, 0], sizes = [16, 16, 4], strides = [1, 1, 1]} : vector<18x18x4xf32> to vector<16x16x4xf32>
    %128 = vector.shape_cast %127 : vector<16x16x4xf32> to vector<256x4xf32>
    %cst_65 = arith.constant dense<0.000000e+00> : vector<256x4xf32>
    %129 = tpu.matmul %128, %126, %cst_65 {dimension_numbers = #tpu.dot_dimension_numbers<[1], [0], [0], [1], [0, 0, 1, 1], [], []>} : vector<256x4xf32>, vector<4x4xf32>, vector<256x4xf32> -> vector<256x4xf32>
    %130 = arith.addf %124, %129 : vector<256x4xf32>
    %c6_66 = arith.constant 6 : index
    %c0_67 = arith.constant 0 : index
    %c0_68 = arith.constant 0 : index
    %131 = vector.load %arg4[%c6_66, %c0_67, %c0_68] : memref<9x4x4xf32, #tpu.memory_space<vmem>>, vector<1x4x4xf32>
    %132 = vector.shape_cast %131 : vector<1x4x4xf32> to vector<4x4xf32>
    %133 = vector.extract_strided_slice %92 {offsets = [2, 0, 0], sizes = [16, 16, 4], strides = [1, 1, 1]} : vector<18x18x4xf32> to vector<16x16x4xf32>
    %134 = vector.shape_cast %133 : vector<16x16x4xf32> to vector<256x4xf32>
    %cst_69 = arith.constant dense<0.000000e+00> : vector<256x4xf32>
    %135 = tpu.matmul %134, %132, %cst_69 {dimension_numbers = #tpu.dot_dimension_numbers<[1], [0], [0], [1], [0, 0, 1, 1], [], []>} : vector<256x4xf32>, vector<4x4xf32>, vector<256x4xf32> -> vector<256x4xf32>
    %136 = arith.addf %130, %135 : vector<256x4xf32>
    %c7_70 = arith.constant 7 : index
    %c0_71 = arith.constant 0 : index
    %c0_72 = arith.constant 0 : index
    %137 = vector.load %arg4[%c7_70, %c0_71, %c0_72] : memref<9x4x4xf32, #tpu.memory_space<vmem>>, vector<1x4x4xf32>
    %138 = vector.shape_cast %137 : vector<1x4x4xf32> to vector<4x4xf32>
    %139 = vector.extract_strided_slice %92 {offsets = [2, 1, 0], sizes = [16, 16, 4], strides = [1, 1, 1]} : vector<18x18x4xf32> to vector<16x16x4xf32>
    %140 = vector.shape_cast %139 : vector<16x16x4xf32> to vector<256x4xf32>
    %cst_73 = arith.constant dense<0.000000e+00> : vector<256x4xf32>
    %141 = tpu.matmul %140, %138, %cst_73 {dimension_numbers = #tpu.dot_dimension_numbers<[1], [0], [0], [1], [0, 0, 1, 1], [], []>} : vector<256x4xf32>, vector<4x4xf32>, vector<256x4xf32> -> vector<256x4xf32>
    %142 = arith.addf %136, %141 : vector<256x4xf32>
    %c8_74 = arith.constant 8 : index
    %c0_75 = arith.constant 0 : index
    %c0_76 = arith.constant 0 : index
    %143 = vector.load %arg4[%c8_74, %c0_75, %c0_76] : memref<9x4x4xf32, #tpu.memory_space<vmem>>, vector<1x4x4xf32>
    %144 = vector.shape_cast %143 : vector<1x4x4xf32> to vector<4x4xf32>
    %145 = vector.extract_strided_slice %92 {offsets = [2, 2, 0], sizes = [16, 16, 4], strides = [1, 1, 1]} : vector<18x18x4xf32> to vector<16x16x4xf32>
    %146 = vector.shape_cast %145 : vector<16x16x4xf32> to vector<256x4xf32>
    %cst_77 = arith.constant dense<0.000000e+00> : vector<256x4xf32>
    %147 = tpu.matmul %146, %144, %cst_77 {dimension_numbers = #tpu.dot_dimension_numbers<[1], [0], [0], [1], [0, 0, 1, 1], [], []>} : vector<256x4xf32>, vector<4x4xf32>, vector<256x4xf32> -> vector<256x4xf32>
    %148 = arith.addf %142, %147 : vector<256x4xf32>
    %149 = vector.broadcast %93 : vector<1x4xf32> to vector<256x4xf32>
    %150 = arith.addf %148, %149 : vector<256x4xf32>
    %cst_78 = arith.constant dense<0.000000e+00> : vector<4xf32>
    %151 = vector.multi_reduction <add>, %150, %cst_78 [0] : vector<256x4xf32> to vector<4xf32>
    %152 = vector.shape_cast %151 : vector<4xf32> to vector<1x4xf32>
    %cst_79 = arith.constant 3.906250e-03 : f32
    %153 = vector.broadcast %cst_79 : f32 to vector<1x4xf32>
    %154 = arith.mulf %152, %153 : vector<1x4xf32>
    %155 = arith.mulf %150, %150 : vector<256x4xf32>
    %cst_80 = arith.constant dense<0.000000e+00> : vector<4xf32>
    %156 = vector.multi_reduction <add>, %155, %cst_80 [0] : vector<256x4xf32> to vector<4xf32>
    %157 = vector.shape_cast %156 : vector<4xf32> to vector<1x4xf32>
    %cst_81 = arith.constant 3.906250e-03 : f32
    %158 = vector.broadcast %cst_81 : f32 to vector<1x4xf32>
    %159 = arith.mulf %157, %158 : vector<1x4xf32>
    %160 = arith.mulf %154, %154 : vector<1x4xf32>
    %161 = arith.subf %159, %160 : vector<1x4xf32>
    %162 = vector.broadcast %154 : vector<1x4xf32> to vector<256x4xf32>
    %163 = arith.subf %150, %162 : vector<256x4xf32>
    %cst_82 = arith.constant 9.99999974E-6 : f32
    %164 = vector.broadcast %cst_82 : f32 to vector<1x4xf32>
    %165 = arith.addf %161, %164 : vector<1x4xf32>
    %166 = math.rsqrt %165 : vector<1x4xf32>
    %167 = vector.broadcast %166 : vector<1x4xf32> to vector<256x4xf32>
    %168 = arith.mulf %163, %167 : vector<256x4xf32>
    %c0_83 = arith.constant 0 : index
    %c0_84 = arith.constant 0 : index
    %c0_85 = arith.constant 0 : index
    %c0_86 = arith.constant 0 : index
    %169 = vector.load %arg1[%c0_83, %c0_84, %c0_85, %c0_86] : memref<1x16x16x4xf32, #tpu.memory_space<vmem>>, vector<1x16x16x4xf32>
    %170 = vector.shape_cast %169 : vector<1x16x16x4xf32> to vector<16x16x4xf32>
    %171 = vector.shape_cast %168 : vector<256x4xf32> to vector<16x16x4xf32>
    %172 = arith.addf %170, %171 : vector<16x16x4xf32>
    %c0_87 = arith.constant 0 : index
    %c0_88 = arith.constant 0 : index
    %c0_89 = arith.constant 0 : index
    %c0_90 = arith.constant 0 : index
    %173 = vector.load %arg6[%c0_87, %c0_88, %c0_89, %c0_90] : memref<1x16x16x4xf32, #tpu.memory_space<vmem>>, vector<1x16x16x4xf32>
    %174 = vector.shape_cast %173 : vector<1x16x16x4xf32> to vector<16x16x4xf32>
    %175 = vector.shape_cast %172 : vector<16x16x4xf32> to vector<1x16x16x4xf32>
    tpu.vector_store %arg6[%c0_87, %c0_88, %c0_89, %c0_90], %175 {strides = array<i32>} : memref<1x16x16x4xf32, #tpu.memory_space<vmem>>, vector<1x16x16x4xf32>,
    return
  }
  func.func @transform_0(%arg0: i32) -> (i32, i32, i32, i32) {
    %c0_i32 = arith.constant 0 : i32
    %c0_i32_0 = arith.constant 0 : i32
    %c0_i32_1 = arith.constant 0 : i32
    %c0_i32_2 = arith.constant 0 : i32
    return %arg0, %c0_i32, %c0_i32_0, %c0_i32_1 : i32, i32, i32, i32
  }
  func.func @transform_1(%arg0: i32) -> (i32, i32, i32) {
    %c0_i32 = arith.constant 0 : i32
    %c0_i32_0 = arith.constant 0 : i32
    %c0_i32_1 = arith.constant 0 : i32
    %c0_i32_2 = arith.constant 0 : i32
    return %c0_i32, %c0_i32_0, %c0_i32_1 : i32, i32, i32
  }
  func.func @transform_2(%arg0: i32) -> (i32, i32) {
    %c0_i32 = arith.constant 0 : i32
    %c0_i32_0 = arith.constant 0 : i32
    %c0_i32_1 = arith.constant 0 : i32
    return %c0_i32, %c0_i32_0 : i32, i32
  }
  func.func @transform_3(%arg0: i32) -> (i32, i32, i32) {
    %c0_i32 = arith.constant 0 : i32
    %c0_i32_0 = arith.constant 0 : i32
    %c0_i32_1 = arith.constant 0 : i32
    %c0_i32_2 = arith.constant 0 : i32
    return %c0_i32, %c0_i32_0, %c0_i32_1 : i32, i32, i32
  }
  func.func @transform_4(%arg0: i32) -> (i32, i32) {
    %c0_i32 = arith.constant 0 : i32
    %c0_i32_0 = arith.constant 0 : i32
    %c0_i32_1 = arith.constant 0 : i32
    return %c0_i32, %c0_i32_0 : i32, i32
  }
  func.func @transform_5(%arg0: i32) -> (i32, i32, i32, i32) {
    %c0_i32 = arith.constant 0 : i32
    %c0_i32_0 = arith.constant 0 : i32
    %c0_i32_1 = arith.constant 0 : i32
    %c0_i32_2 = arith.constant 0 : i32
    return %arg0, %c0_i32, %c0_i32_0, %c0_i32_1 : i32, i32, i32, i32
  }
}

</mosaic_0001>

<llo_original>
// kernel: residual_block.1
$region0: #{residual_block.1}
  #allocation0 [shape = 'u32[]', space=smem, size = 0x4, offset = 0x4, fixed_abs, tag = 'smem constant byte address 0x4 - core index']
  #allocation1 [shape = 'u32[72,128]{1,0:T(1,128)}', space=vmem, size = 0x9000, scoped, tag = 'internal scratch']
  %s0 = inlined_call_operand.vmem [shape: f32[2,16,16,4], index: 0, kind: input, shape index: {}]
  %s1 = inlined_call_operand.vmem [shape: f32[9,4,4], index: 1, kind: input, shape index: {}]
  %s2 = inlined_call_operand.vmem [shape: f32[1,4], index: 2, kind: input, shape index: {}]
  %s3 = inlined_call_operand.vmem [shape: f32[9,4,4], index: 3, kind: input, shape index: {}]
  %s4 = inlined_call_operand.vmem [shape: f32[1,4], index: 4, kind: input, shape index: {}]
  %s5 = inlined_call_operand.vmem [shape: f32[2,16,16,4], index: 5, kind: output, shape index: {}]
  %s6 = sld [smem:[#allocation0]]
  $region53: #{residual_block.1} parent=0
    _
  %s8 = ssub.s32 1, %s6
  %s9 = scalar_select 0, %s8, %s6
  loop: start=0, step=1, limit=4
  $region2: #{residual_block.1} parent=0 // loop_pre_header
    _
  $region3: #{residual_block.1} parent=0 // loop_header
    %s11 = sphi 0, %s15
    %p12 = scmp.ge.s32.totalorder %s11, 4
    %s21 = sphi 0, %s23
    %s24 = sphi 0, %s21
    %s25 = sphi 0, %s24
    %s41 = sphi 0, %s25
    %s45 = sphi 0, %s45
    %s47 = sphi 0, %s45
    %s48 = sphi 0, %s47
    %s62 = sphi 0, %s48
    %s66 = sphi 0, %s66
    %s68 = sphi 0, %s66
    %s69 = sphi 0, %s68
    %s83 = sphi 0, %s69
    %s87 = sphi 0, %s87
    %s89 = sphi 0, %s87
    %s90 = sphi 0, %s89
    %s104 = sphi 0, %s90
    %s108 = sphi 0, %s108
    %s110 = sphi 0, %s108
    %s111 = sphi 0, %s110
    %s125 = sphi 0, %s111
    %s131 = sphi 0, %s133
    %s134 = sphi 0, %s131
    %s135 = sphi 0, %s134
    %s151 = sphi 0, %s135
  $region4: #{residual_block.1} parent=0 // loop_header_branch
    %14 = sbr.rel (%p12) target = $region8
  $region5: #{residual_block.1} parent=0 // loop_body
    %s16 = ssub.s32 %s11, 1
    %s17 = ssub.s32 %s11, 2
    %s18 = sadd.s32 %s11, 1
    %s19 = ssub.s32 %s11, %s18
    %p20 = scmp.eq.s32.totalorder %s19, 0
    %s22 = sadd.s32 %s21, 1
    %s23 = scalar_select %p20, %s21, %s22
    %p26 = pneg %p20
    %p27 = scmp.eq.s32.totalorder %s11, 1
    %p28 = por %p26, %p27
    %p29 = scmp.ne.s32.totalorder %s21, %s24
    %p30 = scmp.eq.s32.totalorder %s11, 0
    %p31 = por %p29, %p30
    %p32 = scmp.ne.s32.totalorder %s21, %s24
    %p33 = scmp.eq.s32.totalorder %s16, 1
    %p34 = por %p32, %p33
    %p35 = scmp.ne.s32.totalorder %s24, %s25
    %p36 = scmp.eq.s32.totalorder %s16, 0
    %p37 = por %p35, %p36
    %p38 = scmp.ne.s32.totalorder %s24, %s25
    %p39 = scmp.eq.s32.totalorder %s17, 1
    %p40 = por %p38, %p39
    %p42 = scmp.ne.s32.totalorder %s25, %s41
    %p43 = scmp.eq.s32.totalorder %s17, 0
    %p44 = por %p42, %p43
    %s46 = sadd.s32 %s45, 1
    %p49 = scmp.eq.s32.totalorder %s11, 1
    %p50 = scmp.ne.s32.totalorder %s45, %s47
    %p51 = scmp.eq.s32.totalorder %s11, 0
    %p52 = por %p50, %p51
    %p53 = scmp.ne.s32.totalorder %s45, %s47
    %p54 = scmp.eq.s32.totalorder %s16, 1
    %p55 = por %p53, %p54
    %p56 = scmp.ne.s32.totalorder %s47, %s48
    %p57 = scmp.eq.s32.totalorder %s16, 0
    %p58 = por %p56, %p57
    %p59 = scmp.ne.s32.totalorder %s47, %s48
    %p60 = scmp.eq.s32.totalorder %s17, 1
    %p61 = por %p59, %p60
    %p63 = scmp.ne.s32.totalorder %s48, %s62
    %p64 = scmp.eq.s32.totalorder %s17, 0
    %p65 = por %p63, %p64
    %s67 = sadd.s32 %s66, 1
    %p70 = scmp.eq.s32.totalorder %s11, 1
    %p71 = scmp.ne.s32.totalorder %s66, %s68
    %p72 = scmp.eq.s32.totalorder %s11, 0
    %p73 = por %p71, %p72
    %p74 = scmp.ne.s32.totalorder %s66, %s68
    %p75 = scmp.eq.s32.totalorder %s16, 1
    %p76 = por %p74, %p75
    %p77 = scmp.ne.s32.totalorder %s68, %s69
    %p78 = scmp.eq.s32.totalorder %s16, 0
    %p79 = por %p77, %p78
    %p80 = scmp.ne.s32.totalorder %s68, %s69
    %p81 = scmp.eq.s32.totalorder %s17, 1
    %p82 = por %p80, %p81
    %p84 = scmp.ne.s32.totalorder %s69, %s83
    %p85 = scmp.eq.s32.totalorder %s17, 0
    %p86 = por %p84, %p85
    %s88 = sadd.s32 %s87, 1
    %p91 = scmp.eq.s32.totalorder %s11, 1
    %p92 = scmp.ne.s32.totalorder %s87, %s89
    %p93 = scmp.eq.s32.totalorder %s11, 0
    %p94 = por %p92, %p93
    %p95 = scmp.ne.s32.totalorder %s87, %s89
    %p96 = scmp.eq.s32.totalorder %s16, 1
    %p97 = por %p95, %p96
    %p98 = scmp.ne.s32.totalorder %s89, %s90
    %p99 = scmp.eq.s32.totalorder %s16, 0
    %p100 = por %p98, %p99
    %p101 = scmp.ne.s32.totalorder %s89, %s90
    %p102 = scmp.eq.s32.totalorder %s17, 1
    %p103 = por %p101, %p102
    %p105 = scmp.ne.s32.totalorder %s90, %s104
    %p106 = scmp.eq.s32.totalorder %s17, 0
    %p107 = por %p105, %p106
    %s109 = sadd.s32 %s108, 1
    %p112 = scmp.eq.s32.totalorder %s11, 1
    %p113 = scmp.ne.s32.totalorder %s108, %s110
    %p114 = scmp.eq.s32.totalorder %s11, 0
    %p115 = por %p113, %p114
    %p116 = scmp.ne.s32.totalorder %s108, %s110
    %p117 = scmp.eq.s32.totalorder %s16, 1
    %p118 = por %p116, %p117
    %p119 = scmp.ne.s32.totalorder %s110, %s111
    %p120 = scmp.eq.s32.totalorder %s16, 0
    %p121 = por %p119, %p120
    %p122 = scmp.ne.s32.totalorder %s110, %s111
    %p123 = scmp.eq.s32.totalorder %s17, 1
    %p124 = por %p122, %p123
    %p126 = scmp.ne.s32.totalorder %s111, %s125
    %p127 = scmp.eq.s32.totalorder %s17, 0
    %p128 = por %p126, %p127
    %s129 = ssub.s32 %s11, %s18
    %p130 = scmp.eq.s32.totalorder %s129, 0
    %s132 = sadd.s32 %s131, 1
    %s133 = scalar_select %p130, %s131, %s132
    %p136 = pneg %p130
    %p137 = scmp.eq.s32.totalorder %s11, 1
    %p138 = por %p136, %p137
    %p139 = scmp.ne.s32.totalorder %s131, %s134
    %p140 = scmp.eq.s32.totalorder %s11, 0
    %p141 = por %p139, %p140
    %p142 = scmp.ne.s32.totalorder %s131, %s134
    %p143 = scmp.eq.s32.totalorder %s16, 1
    %p144 = por %p142, %p143
    %p145 = scmp.ne.s32.totalorder %s134, %s135
    %p146 = scmp.eq.s32.totalorder %s16, 0
    %p147 = por %p145, %p146
    %p148 = scmp.ne.s32.totalorder %s134, %s135
    %p149 = scmp.eq.s32.totalorder %s17, 1
    %p150 = por %p148, %p149
    %p152 = scmp.ne.s32.totalorder %s135, %s151
    %p153 = scmp.eq.s32.totalorder %s17, 0
    %p154 = por %p152, %p153
    %p155 = scmp.le.s32.totalorder 1, %s11
    %p156 = scmp.lt.s32.totalorder %s11, 3
    %p157 = pnand %p155, %p156
    %p158 = pneg %p157
    // Predicated region
    $region9: #{residual_block.1} parent=5 // pred_check
      _
    $region10: #{residual_block.1} parent=5 // pred_check_branch
      %160 = sbr.rel (%p157) target = $region12
    $region11: #{residual_block.1} parent=5 // pred_region
      %s161 = ssub.s32 %s11, 1
      // Predicated region
      $region13: #{residual_block.1} parent=11 // pred_check
        %p162 = pneg %p58
      $region14: #{residual_block.1} parent=11 // pred_check_branch
        %164 = sbr.rel (%p162) target = $region16
      $region15: #{residual_block.1} parent=11 // pred_region
        _
      $region16: #{residual_block.1} parent=11 // pred_fallthru
        _
      // Predicated region
      $region17: #{residual_block.1} parent=11 // pred_check
        %p165 = pneg %p79
      $region18: #{residual_block.1} parent=11 // pred_check_branch
        %167 = sbr.rel (%p165) target = $region20
      $region19: #{residual_block.1} parent=11 // pred_region
        _
      $region20: #{residual_block.1} parent=11 // pred_fallthru
        _
      // Predicated region
      $region21: #{residual_block.1} parent=11 // pred_check
        %p168 = pneg %p100
      $region22: #{residual_block.1} parent=11 // pred_check_branch
        %170 = sbr.rel (%p168) target = $region24
      $region23: #{residual_block.1} parent=11 // pred_region
        _
      $region24: #{residual_block.1} parent=11 // pred_fallthru
        _
      // Predicated region
      $region25: #{residual_block.1} parent=11 // pred_check
        %p171 = pneg %p121
      $region26: #{residual_block.1} parent=11 // pred_check_branch
        %173 = sbr.rel (%p171) target = $region28
      $region27: #{residual_block.1} parent=11 // pred_region
        _
      $region28: #{residual_block.1} parent=11 // pred_fallthru
        _
    $region12: #{residual_block.1} parent=5 // pred_fallthru
      _
    %p174 = scmp.lt.s32.totalorder %s11, 2
    // Predicated region
    $region29: #{residual_block.1} parent=5 // pred_check
      %p175 = pneg %p174
    $region30: #{residual_block.1} parent=5 // pred_check_branch
      %177 = sbr.rel (%p175) target = $region32
    $region31: #{residual_block.1} parent=5 // pred_region
      // Predicated region
      $region33: #{residual_block.1} parent=31 // pred_check
        %p178 = pneg %p31
      $region34: #{residual_block.1} parent=31 // pred_check_branch
        %180 = sbr.rel (%p178) target = $region36
      $region35: #{residual_block.1} parent=31 // pred_region
        %p181 = scmp.lt.s32.totalorder %s11, 1
        %s182 = scalar_select %p181, %s11, 1
        %s183 = smul.addr %s182, 32
        %s184 = smul.addr %s183, 8
        %s185 = scalar_lea.vmem %s0, %s184
      $region36: #{residual_block.1} parent=31 // pred_fallthru
        _
    $region32: #{residual_block.1} parent=5 // pred_fallthru
      _
    %p186 = scmp.le.s32.totalorder 1, %s11
    %p187 = scmp.lt.s32.totalorder %s11, 3
    %p188 = pnand %p186, %p187
    %p189 = pneg %p188
    // Predicated region
    $region37: #{residual_block.1} parent=5 // pred_check
      _
    $region38: #{residual_block.1} parent=5 // pred_check_branch
      %191 = sbr.rel (%p188) target = $region40
    $region39: #{residual_block.1} parent=5 // pred_region
      %s192 = ssub.s32 %s11, 1
      %p193 = scmp.lt.s32.totalorder %s16, 1
      %s194 = scalar_select %p193, %s16, 1
      %s195 = smul.addr %s194, 32
      %s196 = smul.addr %s195, 8
      %s197 = scalar_lea.vmem %s0, %s196
      %p198 = pneg %p37
      %p199 = pneg %p34
      %p200 = pneg %p58
      %p201 = pneg %p55
      %p202 = pneg %p79
      %p203 = pneg %p76
      %p204 = pneg %p100
      %p205 = pneg %p97
      %p206 = pneg %p121
      %p207 = pneg %p118
      %p208 = pneg %p147
      %p209 = pneg %p144
      %p210 = scmp.lt.s32.totalorder %s16, 1
      %s211 = scalar_select %p210, %s16, 1
      %s212 = smul.addr %s211, 32
      %s213 = smul.addr %s212, 8
      %s214 = scalar_lea.vmem %s5, %s213
      %p215 = scmp.lt.s32.totalorder %s16, 1
      %s216 = scalar_select %p215, %s16, 1
      %s217 = smul.addr %s216, 32
      %s218 = smul.addr %s217, 8
      %s219 = scalar_lea.vmem %s0, %s218
      %p220 = scmp.lt.s32.totalorder %s16, 1
      %s221 = scalar_select %p220, %s16, 1
      %s222 = smul.addr %s221, 32
      %s223 = smul.addr %s222, 8
      %s224 = scalar_lea.vmem %s5, %s223
      %v225 = vld [vmem:[%s219] sm:$0xff]
      %v226 = vld [vmem:[%s219 + $0x8] sm:$0xff]
      %v227 = vld [vmem:[%s219 + $0x10] sm:$0xff]
      %v228 = vld [vmem:[%s219 + $0x18] sm:$0xff]
      %v229 = vld [vmem:[%s219 + $0x20] sm:$0xff]
      %v230 = vld [vmem:[%s219 + $0x28] sm:$0xff]
      %v231 = vld [vmem:[%s219 + $0x30] sm:$0xff]
      %v232 = vld [vmem:[%s219 + $0x38] sm:$0xff]
      %v233 = vld [vmem:[%s219 + $0x40] sm:$0xff]
      %v234 = vld [vmem:[%s219 + $0x48] sm:$0xff]
      %v235 = vld [vmem:[%s219 + $0x50] sm:$0xff]
      %v236 = vld [vmem:[%s219 + $0x58] sm:$0xff]
      %v237 = vld [vmem:[%s219 + $0x60] sm:$0xff]
      %v238 = vld [vmem:[%s219 + $0x68] sm:$0xff]
      %v239 = vld [vmem:[%s219 + $0x70] sm:$0xff]
      %v240 = vld [vmem:[%s219 + $0x78] sm:$0xff]
      %v241 = vld [vmem:[%s219 + $0x80] sm:$0xff]
      %v242 = vld [vmem:[%s219 + $0x88] sm:$0xff]
      %v243 = vld [vmem:[%s219 + $0x90] sm:$0xff]
      %v244 = vld [vmem:[%s219 + $0x98] sm:$0xff]
      %v245 = vld [vmem:[%s219 + $0xa0] sm:$0xff]
      %v246 = vld [vmem:[%s219 + $0xa8] sm:$0xff]
      %v247 = vld [vmem:[%s219 + $0xb0] sm:$0xff]
      %v248 = vld [vmem:[%s219 + $0xb8] sm:$0xff]
      %v249 = vld [vmem:[%s219 + $0xc0] sm:$0xff]
      %v250 = vld [vmem:[%s219 + $0xc8] sm:$0xff]
      %v251 = vld [vmem:[%s219 + $0xd0] sm:$0xff]
      %v252 = vld [vmem:[%s219 + $0xd8] sm:$0xff]
      %v253 = vld [vmem:[%s219 + $0xe0] sm:$0xff]
      %v254 = vld [vmem:[%s219 + $0xe8] sm:$0xff]
      %v255 = vld [vmem:[%s219 + $0xf0] sm:$0xff]
      %v256 = vld [vmem:[%s219 + $0xf8] sm:$0xff]
      %v273 = vrot.slane %v227, 1
      %v274 = vrot.slane %v225, 1
      %v275 = vrot.slane %v229, 1
      %v276 = vrot.slane %v231, 1
      %v277 = vrot.slane %v233, 1
      %v278 = vrot.slane %v235, 1
      %v279 = vrot.slane %v237, 1
      %v280 = vrot.slane %v239, 1
      %v281 = vrot.slane %v241, 1
      %v282 = vrot.slane %v243, 1
      %v283 = vrot.slane %v245, 1
      %v284 = vrot.slane %v247, 1
      %v285 = vrot.slane %v249, 1
      %v286 = vrot.slane %v251, 1
      %v287 = vrot.slane %v253, 1
      %v288 = vrot.slane %v255, 1
      %vm321 = vcmask 1040384
      %v322 = vrot.slane %v227, 7
      %v323 = vrot.slane %v228, 7
      %v324 = vsel %vm321, %v322, %v323
      %v325 = vrot.slane %v225, 7
      %v326 = vrot.slane %v226, 7
      %v327 = vsel %vm321, %v325, %v326
      %v328 = vrot.slane %v229, 7
      %v329 = vrot.slane %v230, 7
      %v330 = vsel %vm321, %v328, %v329
      %v331 = vrot.slane %v231, 7
      %v332 = vrot.slane %v232, 7
      %v333 = vsel %vm321, %v331, %v332
      %v334 = vrot.slane %v233, 7
      %v335 = vrot.slane %v234, 7
      %v336 = vsel %vm321, %v334, %v335
      %v337 = vrot.slane %v235, 7
      %v338 = vrot.slane %v236, 7
      %v339 = vsel %vm321, %v337, %v338
      %v340 = vrot.slane %v237, 7
      %v341 = vrot.slane %v238, 7
      %v342 = vsel %vm321, %v340, %v341
      %v343 = vrot.slane %v239, 7
      %v344 = vrot.slane %v240, 7
      %v345 = vsel %vm321, %v343, %v344
      %v346 = vrot.slane %v241, 7
      %v347 = vrot.slane %v242, 7
      %v348 = vsel %vm321, %v346, %v347
      %v349 = vrot.slane %v243, 7
      %v350 = vrot.slane %v244, 7
      %v351 = vsel %vm321, %v349, %v350
      %v352 = vrot.slane %v245, 7
      %v353 = vrot.slane %v246, 7
      %v354 = vsel %vm321, %v352, %v353
      %v355 = vrot.slane %v247, 7
      %v356 = vrot.slane %v248, 7
      %v357 = vsel %vm321, %v355, %v356
      %v358 = vrot.slane %v249, 7
      %v359 = vrot.slane %v250, 7
      %v360 = vsel %vm321, %v358, %v359
      %v361 = vrot.slane %v251, 7
      %v362 = vrot.slane %v252, 7
      %v363 = vsel %vm321, %v361, %v362
      %v364 = vrot.slane %v253, 7
      %v365 = vrot.slane %v254, 7
      %v366 = vsel %vm321, %v364, %v365
      %v367 = vrot.slane %v255, 7
      %v368 = vrot.slane %v256, 7
      %v369 = vsel %vm321, %v367, %v368
      %v402 = vrot.slane %v228, 5
      %v403 = vrot.slane %v226, 5
      %v404 = vrot.slane %v230, 5
      %v405 = vrot.slane %v232, 5
      %v406 = vrot.slane %v234, 5
      %v407 = vrot.slane %v236, 5
      %v408 = vrot.slane %v238, 5
      %v409 = vrot.slane %v240, 5
      %v410 = vrot.slane %v242, 5
      %v411 = vrot.slane %v244, 5
      %v412 = vrot.slane %v246, 5
      %v413 = vrot.slane %v248, 5
      %v414 = vrot.slane %v250, 5
      %v415 = vrot.slane %v252, 5
      %v416 = vrot.slane %v254, 5
      %v417 = vrot.slane %v256, 5
      %v434 = vsel %vm321, %v273, %v322
      %v435 = vsel %vm321, %v274, %v325
      %v436 = vsel %vm321, %v275, %v328
      %v437 = vsel %vm321, %v276, %v331
      %v438 = vsel %vm321, %v277, %v334
      %v439 = vsel %vm321, %v278, %v337
      %v440 = vsel %vm321, %v279, %v340
      %v441 = vsel %vm321, %v280, %v343
      %v442 = vsel %vm321, %v281, %v346
      %v443 = vsel %vm321, %v282, %v349
      %v444 = vsel %vm321, %v283, %v352
      %v445 = vsel %vm321, %v284, %v355
      %v446 = vsel %vm321, %v285, %v358
      %v447 = vsel %vm321, %v286, %v361
      %v448 = vsel %vm321, %v287, %v364
      %v449 = vsel %vm321, %v288, %v367
      %v450 = vsel %vm321, %v323, %v402
      %v451 = vsel %vm321, %v326, %v403
      %v452 = vsel %vm321, %v329, %v404
      %v453 = vsel %vm321, %v332, %v405
      %v454 = vsel %vm321, %v335, %v406
      %v455 = vsel %vm321, %v338, %v407
      %v456 = vsel %vm321, %v341, %v408
      %v457 = vsel %vm321, %v344, %v409
      %v458 = vsel %vm321, %v347, %v410
      %v459 = vsel %vm321, %v350, %v411
      %v460 = vsel %vm321, %v353, %v412
      %v461 = vsel %vm321, %v356, %v413
      %v462 = vsel %vm321, %v359, %v414
      %v463 = vsel %vm321, %v362, %v415
      %v464 = vsel %vm321, %v365, %v416
      %v465 = vsel %vm321, %v368, %v417
      %v466 = vld [vmem:[%s2] sm:$0x1]
      %v467 = vld [vmem:[%s1] sm:$0xf]
      %s468 = scalar_lea.vmem %s1, 4
      %v469 = vld [vmem:[%s468] sm:$0xf]
      %vm500 = vcmask 1046528
      %v501 = vrot.slane %v434, 1
      %v502 = vrot.slane %v324, 1
      %v503 = vsel %vm500, %v501, %v502
      %v504 = vrot.slane %v450, 1
      %v505 = vsel %vm500, %v502, %v504
      %v506 = vrot.slane %v435, 1
      %v507 = vrot.slane %v327, 1
      %v508 = vsel %vm500, %v506, %v507
      %v509 = vrot.slane %v451, 1
      %v510 = vsel %vm500, %v507, %v509
      %v511 = vrot.slane %v436, 1
      %v512 = vrot.slane %v330, 1
      %v513 = vsel %vm500, %v511, %v512
      %v514 = vrot.slane %v452, 1
      %v515 = vsel %vm500, %v512, %v514
      %v516 = vrot.slane %v437, 1
      %v517 = vrot.slane %v333, 1
      %v518 = vsel %vm500, %v516, %v517
      %v519 = vrot.slane %v453, 1
      %v520 = vsel %vm500, %v517, %v519
      %v521 = vrot.slane %v438, 1
      %v522 = vrot.slane %v336, 1
      %v523 = vsel %vm500, %v521, %v522
      %v524 = vrot.slane %v454, 1
      %v525 = vsel %vm500, %v522, %v524
      %v526 = vrot.slane %v439, 1
      %v527 = vrot.slane %v339, 1
      %v528 = vsel %vm500, %v526, %v527
      %v529 = vrot.slane %v455, 1
      %v530 = vsel %vm500, %v527, %v529
      %v531 = vrot.slane %v440, 1
      %v532 = vrot.slane %v342, 1
      %v533 = vsel %vm500, %v531, %v532
      %v534 = vrot.slane %v456, 1
      %v535 = vsel %vm500, %v532, %v534
      %v536 = vrot.slane %v441, 1
      %v537 = vrot.slane %v345, 1
      %v538 = vsel %vm500, %v536, %v537
      %v539 = vrot.slane %v457, 1
      %v540 = vsel %vm500, %v537, %v539
      %v541 = vrot.slane %v442, 1
      %v542 = vrot.slane %v348, 1
      %v543 = vsel %vm500, %v541, %v542
      %v544 = vrot.slane %v458, 1
      %v545 = vsel %vm500, %v542, %v544
      %v546 = vrot.slane %v443, 1
      %v547 = vrot.slane %v351, 1
      %v548 = vsel %vm500, %v546, %v547
      %v549 = vrot.slane %v459, 1
      %v550 = vsel %vm500, %v547, %v549
      %v551 = vrot.slane %v444, 1
      %v552 = vrot.slane %v354, 1
      %v553 = vsel %vm500, %v551, %v552
      %v554 = vrot.slane %v460, 1
      %v555 = vsel %vm500, %v552, %v554
      %v556 = vrot.slane %v445, 1
      %v557 = vrot.slane %v357, 1
      %v558 = vsel %vm500, %v556, %v557
      %v559 = vrot.slane %v461, 1
      %v560 = vsel %vm500, %v557, %v559
      %v561 = vrot.slane %v446, 1
      %v562 = vrot.slane %v360, 1
      %v563 = vsel %vm500, %v561, %v562
      %v564 = vrot.slane %v462, 1
      %v565 = vsel %vm500, %v562, %v564
      %v566 = vrot.slane %v447, 1
      %v567 = vrot.slane %v363, 1
      %v568 = vsel %vm500, %v566, %v567
      %v569 = vrot.slane %v463, 1
      %v570 = vsel %vm500, %v567, %v569
      %v571 = vrot.slane %v448, 1
      %v572 = vrot.slane %v366, 1
      %v573 = vsel %vm500, %v571, %v572
      %v574 = vrot.slane %v464, 1
      %v575 = vsel %vm500, %v572, %v574
      %vm576 = vcmask 31744
      %v577 = vsel %vm576, %v503, 0
      %v579 = vsel %vm576, %v505, 0
      %v581 = vsel %vm576, %v508, 0
      %v583 = vsel %vm576, %v510, 0
      %v585 = vsel %vm576, %v513, 0
      %v587 = vsel %vm576, %v515, 0
      %v589 = vsel %vm576, %v518, 0
      %v591 = vsel %vm576, %v520, 0
      %v593 = vsel %vm576, %v523, 0
      %v595 = vsel %vm576, %v525, 0
      %v597 = vsel %vm576, %v528, 0
      %v599 = vsel %vm576, %v530, 0
      %v601 = vsel %vm576, %v533, 0
      %v603 = vsel %vm576, %v535, 0
      %v605 = vsel %vm576, %v538, 0
      %v607 = vsel %vm576, %v540, 0
      %v609 = vsel %vm576, %v543, 0
      %v611 = vsel %vm576, %v545, 0
      %v613 = vsel %vm576, %v548, 0
      %v615 = vsel %vm576, %v550, 0
      %v617 = vsel %vm576, %v553, 0
      %v619 = vsel %vm576, %v555, 0
      %v621 = vsel %vm576, %v558, 0
      %v623 = vsel %vm576, %v560, 0
      %v625 = vsel %vm576, %v563, 0
      %v627 = vsel %vm576, %v565, 0
      %v629 = vsel %vm576, %v568, 0
      %v631 = vsel %vm576, %v570, 0
      %v633 = vsel %vm576, %v573, 0
      %v635 = vsel %vm576, %v575, 0
      %vm637 = vcmask 1043456
      %v639 = vsel %vm637, %v469, 0
      %641 = vmatpush.msra.mxu0 0.0
      %642 = vmatpush.msra.mxu0 0.0
      %643 = vmatpush.msra.mxu0 0.0
      %644 = vmatpush.msra.mxu0 0.0
      %645 = vmatpush.msra.mxu0 0.0
      %646 = vmatpush.msra.mxu0 0.0
      %647 = vmatpush.msra.mxu0 0.0
      %648 = vmatpush.msra.mxu0 0.0
      %649 = vmatpush.msra.mxu0 0.0
      %650 = vmatpush.msra.mxu0 0.0
      %651 = vmatpush.msra.mxu0 0.0
      %652 = vmatpush.msra.mxu0 0.0
      %653 = vmatpush.msra.mxu0 0.0
      %654 = vmatpush.msra.mxu0 0.0
      %655 = vmatpush.msra.mxu0 0.0
      %656 = vmatpush.msra.mxu0 %v639
      %657 = vmatmul.f32.gmra.mxu0 %v577
      %v658 = vpop.f32.mrf.mxu0
      %v659 = vadd.f32 0.0, %v658
      %660 = vmatmul.f32.gmra.mxu0 %v579
      %v661 = vpop.f32.mrf.mxu0
      %v662 = vadd.f32 0.0, %v661
      %663 = vmatmul.f32.gmra.mxu0 %v581
      %v664 = vpop.f32.mrf.mxu0
      %v665 = vadd.f32 0.0, %v664
      %666 = vmatmul.f32.gmra.mxu0 %v583
      %v667 = vpop.f32.mrf.mxu0
      %v668 = vadd.f32 0.0, %v667
      %669 = vmatmul.f32.gmra.mxu0 %v577
      %v670 = vpop.f32.mrf.mxu0
      %v671 = vadd.f32 0.0, %v670
      %672 = vmatmul.f32.gmra.mxu0 %v579
      %v673 = vpop.f32.mrf.mxu0
      %v674 = vadd.f32 0.0, %v673
      %675 = vmatmul.f32.gmra.mxu0 %v585
      %v676 = vpop.f32.mrf.mxu0
      %v677 = vadd.f32 0.0, %v676
      %678 = vmatmul.f32.gmra.mxu0 %v587
      %v679 = vpop.f32.mrf.mxu0
      %v680 = vadd.f32 0.0, %v679
      %681 = vmatmul.f32.gmra.mxu0 %v589
      %v682 = vpop.f32.mrf.mxu0
      %v683 = vadd.f32 0.0, %v682
      %684 = vmatmul.f32.gmra.mxu0 %v591
      %v685 = vpop.f32.mrf.mxu0
      %v686 = vadd.f32 0.0, %v685
      %687 = vmatmul.f32.gmra.mxu0 %v593
      %v688 = vpop.f32.mrf.mxu0
      %v689 = vadd.f32 0.0, %v688
      %690 = vmatmul.f32.gmra.mxu0 %v595
      %v691 = vpop.f32.mrf.mxu0
      %v692 = vadd.f32 0.0, %v691
      %693 = vmatmul.f32.gmra.mxu0 %v597
      %v694 = vpop.f32.mrf.mxu0
      %v695 = vadd.f32 0.0, %v694
      %696 = vmatmul.f32.gmra.mxu0 %v599
      %v697 = vpop.f32.mrf.mxu0
      %v698 = vadd.f32 0.0, %v697
      %699 = vmatmul.f32.gmra.mxu0 %v601
      %v700 = vpop.f32.mrf.mxu0
      %v701 = vadd.f32 0.0, %v700
      %702 = vmatmul.f32.gmra.mxu0 %v603
      %v703 = vpop.f32.mrf.mxu0
      %v704 = vadd.f32 0.0, %v703
      %705 = vmatmul.f32.gmra.mxu0 %v605
      %v706 = vpop.f32.mrf.mxu0
      %v707 = vadd.f32 0.0, %v706
      %708 = vmatmul.f32.gmra.mxu0 %v607
      %v709 = vpop.f32.mrf.mxu0
      %v710 = vadd.f32 0.0, %v709
      %711 = vmatmul.f32.gmra.mxu0 %v609
      %v712 = vpop.f32.mrf.mxu0
      %v713 = vadd.f32 0.0, %v712
      %714 = vmatmul.f32.gmra.mxu0 %v611
      %v715 = vpop.f32.mrf.mxu0
      %v716 = vadd.f32 0.0, %v715
      %717 = vmatmul.f32.gmra.mxu0 %v613
      %v718 = vpop.f32.mrf.mxu0
      %v719 = vadd.f32 0.0, %v718
      %720 = vmatmul.f32.gmra.mxu0 %v615
      %v721 = vpop.f32.mrf.mxu0
      %v722 = vadd.f32 0.0, %v721
      %723 = vmatmul.f32.gmra.mxu0 %v617
      %v724 = vpop.f32.mrf.mxu0
      %v725 = vadd.f32 0.0, %v724
      %726 = vmatmul.f32.gmra.mxu0 %v619
      %v727 = vpop.f32.mrf.mxu0
      %v728 = vadd.f32 0.0, %v727
      %729 = vmatmul.f32.gmra.mxu0 %v621
      %v730 = vpop.f32.mrf.mxu0
      %v731 = vadd.f32 0.0, %v730
      %732 = vmatmul.f32.gmra.mxu0 %v623
      %v733 = vpop.f32.mrf.mxu0
      %v734 = vadd.f32 0.0, %v733
      %735 = vmatmul.f32.gmra.mxu0 %v625
      %v736 = vpop.f32.mrf.mxu0
      %v737 = vadd.f32 0.0, %v736
      %738 = vmatmul.f32.gmra.mxu0 %v627
      %v739 = vpop.f32.mrf.mxu0
      %v740 = vadd.f32 0.0, %v739
      %741 = vmatmul.f32.gmra.mxu0 %v629
      %v742 = vpop.f32.mrf.mxu0
      %v743 = vadd.f32 0.0, %v742
      %744 = vmatmul.f32.gmra.mxu0 %v631
      %v745 = vpop.f32.mrf.mxu0
      %v746 = vadd.f32 0.0, %v745
      %747 = vmatmul.f32.gmra.mxu0 %v633
      %v748 = vpop.f32.mrf.mxu0
      %v749 = vadd.f32 0.0, %v748
      %750 = vmatmul.f32.gmra.mxu0 %v635
      %v751 = vpop.f32.mrf.mxu0
      %v752 = vadd.f32 0.0, %v751
      %753 = vdwg.mxu0
      %v754 = vsel %vm576, %v434, 0
      %v756 = vsel %vm576, %v324, 0
      %v758 = vsel %vm576, %v435, 0
      %v760 = vsel %vm576, %v327, 0
      %v762 = vsel %vm576, %v436, 0
      %v764 = vsel %vm576, %v330, 0
      %v766 = vsel %vm576, %v437, 0
      %v768 = vsel %vm576, %v333, 0
      %v770 = vsel %vm576, %v438, 0
      %v772 = vsel %vm576, %v336, 0
      %v774 = vsel %vm576, %v439, 0
      %v776 = vsel %vm576, %v339, 0
      %v778 = vsel %vm576, %v440, 0
      %v780 = vsel %vm576, %v342, 0
      %v782 = vsel %vm576, %v441, 0
      %v784 = vsel %vm576, %v345, 0
      %v786 = vsel %vm576, %v442, 0
      %v788 = vsel %vm576, %v348, 0
      %v790 = vsel %vm576, %v443, 0
      %v792 = vsel %vm576, %v351, 0
      %v794 = vsel %vm576, %v444, 0
      %v796 = vsel %vm576, %v354, 0
      %v798 = vsel %vm576, %v445, 0
      %v800 = vsel %vm576, %v357, 0
      %v802 = vsel %vm576, %v446, 0
      %v804 = vsel %vm576, %v360, 0
      %v806 = vsel %vm576, %v447, 0
      %v808 = vsel %vm576, %v363, 0
      %v810 = vsel %vm576, %v448, 0
      %v812 = vsel %vm576, %v366, 0
      %v815 = vsel %vm637, %v467, 0
      %817 = vmatpush.msra.mxu0 0.0
      %818 = vmatpush.msra.mxu0 0.0
      %819 = vmatpush.msra.mxu0 0.0
      %820 = vmatpush.msra.mxu0 0.0
      %821 = vmatpush.msra.mxu0 0.0
      %822 = vmatpush.msra.mxu0 0.0
      %823 = vmatpush.msra.mxu0 0.0
      %824 = vmatpush.msra.mxu0 0.0
      %825 = vmatpush.msra.mxu0 0.0
      %826 = vmatpush.msra.mxu0 0.0
      %827 = vmatpush.msra.mxu0 0.0
      %828 = vmatpush.msra.mxu0 0.0
      %829 = vmatpush.msra.mxu0 0.0
      %830 = vmatpush.msra.mxu0 0.0
      %831 = vmatpush.msra.mxu0 0.0
      %832 = vmatpush.msra.mxu0 %v815
      %833 = vmatmul.f32.gmra.mxu0 %v754
      %v834 = vpop.f32.mrf.mxu0
      %v835 = vadd.f32 %v659, %v834
      %836 = vmatmul.f32.gmra.mxu0 %v756
      %v837 = vpop.f32.mrf.mxu0
      %v838 = vadd.f32 %v662, %v837
      %839 = vmatmul.f32.gmra.mxu0 %v758
      %v840 = vpop.f32.mrf.mxu0
      %v841 = vadd.f32 %v665, %v840
      %842 = vmatmul.f32.gmra.mxu0 %v760
      %v843 = vpop.f32.mrf.mxu0
      %v844 = vadd.f32 %v668, %v843
      %845 = vmatmul.f32.gmra.mxu0 %v754
      %v846 = vpop.f32.mrf.mxu0
      %v847 = vadd.f32 %v671, %v846
      %848 = vmatmul.f32.gmra.mxu0 %v756
      %v849 = vpop.f32.mrf.mxu0
      %v850 = vadd.f32 %v674, %v849
      %851 = vmatmul.f32.gmra.mxu0 %v762
      %v852 = vpop.f32.mrf.mxu0
      %v853 = vadd.f32 %v677, %v852
      %854 = vmatmul.f32.gmra.mxu0 %v764
      %v855 = vpop.f32.mrf.mxu0
      %v856 = vadd.f32 %v680, %v855
      %857 = vmatmul.f32.gmra.mxu0 %v766
      %v858 = vpop.f32.mrf.mxu0
      %v859 = vadd.f32 %v683, %v858
      %860 = vmatmul.f32.gmra.mxu0 %v768
      %v861 = vpop.f32.mrf.mxu0
      %v862 = vadd.f32 %v686, %v861
      %863 = vmatmul.f32.gmra.mxu0 %v770
      %v864 = vpop.f32.mrf.mxu0
      %v865 = vadd.f32 %v689, %v864
      %866 = vmatmul.f32.gmra.mxu0 %v772
      %v867 = vpop.f32.mrf.mxu0
      %v868 = vadd.f32 %v692, %v867
      %869 = vmatmul.f32.gmra.mxu0 %v774
      %v870 = vpop.f32.mrf.mxu0
      %v871 = vadd.f32 %v695, %v870
      %872 = vmatmul.f32.gmra.mxu0 %v776
      %v873 = vpop.f32.mrf.mxu0
      %v874 = vadd.f32 %v698, %v873
      %875 = vmatmul.f32.gmra.mxu0 %v778
      %v876 = vpop.f32.mrf.mxu0
      %v877 = vadd.f32 %v701, %v876
      %878 = vmatmul.f32.gmra.mxu0 %v780
      %v879 = vpop.f32.mrf.mxu0
      %v880 = vadd.f32 %v704, %v879
      %881 = vmatmul.f32.gmra.mxu0 %v782
      %v882 = vpop.f32.mrf.mxu0
      %v883 = vadd.f32 %v707, %v882
      %884 = vmatmul.f32.gmra.mxu0 %v784
      %v885 = vpop.f32.mrf.mxu0
      %v886 = vadd.f32 %v710, %v885
      %887 = vmatmul.f32.gmra.mxu0 %v786
      %v888 = vpop.f32.mrf.mxu0
      %v889 = vadd.f32 %v713, %v888
      %890 = vmatmul.f32.gmra.mxu0 %v788
      %v891 = vpop.f32.mrf.mxu0
      %v892 = vadd.f32 %v716, %v891
      %893 = vmatmul.f32.gmra.mxu0 %v790
      %v894 = vpop.f32.mrf.mxu0
      %v895 = vadd.f32 %v719, %v894
      %896 = vmatmul.f32.gmra.mxu0 %v792
      %v897 = vpop.f32.mrf.mxu0
      %v898 = vadd.f32 %v722, %v897
      %899 = vmatmul.f32.gmra.mxu0 %v794
      %v900 = vpop.f32.mrf.mxu0
      %v901 = vadd.f32 %v725, %v900
      %902 = vmatmul.f32.gmra.mxu0 %v796
      %v903 = vpop.f32.mrf.mxu0
      %v904 = vadd.f32 %v728, %v903
      %905 = vmatmul.f32.gmra.mxu0 %v798
      %v906 = vpop.f32.mrf.mxu0
      %v907 = vadd.f32 %v731, %v906
      %908 = vmatmul.f32.gmra.mxu0 %v800
      %v909 = vpop.f32.mrf.mxu0
      %v910 = vadd.f32 %v734, %v909
      %911 = vmatmul.f32.gmra.mxu0 %v802
      %v912 = vpop.f32.mrf.mxu0
      %v913 = vadd.f32 %v737, %v912
      %914 = vmatmul.f32.gmra.mxu0 %v804
      %v915 = vpop.f32.mrf.mxu0
      %v916 = vadd.f32 %v740, %v915
      %917 = vmatmul.f32.gmra.mxu0 %v806
      %v918 = vpop.f32.mrf.mxu0
      %v919 = vadd.f32 %v743, %v918
      %920 = vmatmul.f32.gmra.mxu0 %v808
      %v921 = vpop.f32.mrf.mxu0
      %v922 = vadd.f32 %v746, %v921
      %923 = vmatmul.f32.gmra.mxu0 %v810
      %v924 = vpop.f32.mrf.mxu0
      %v925 = vadd.f32 %v749, %v924
      %926 = vmatmul.f32.gmra.mxu0 %v812
      %v927 = vpop.f32.mrf.mxu0
      %v928 = vadd.f32 %v752, %v927
      %929 = vdwg.mxu0
      %s930 = scalar_lea.vmem %s1, 8
      %v931 = vld [vmem:[%s930] sm:$0xf]
      %vm932 = vcmask 1045504
      %v933 = vrot.slane %v434, 2
      %v934 = vrot.slane %v324, 2
      %v935 = vsel %vm932, %v933, %v934
      %v936 = vrot.slane %v450, 2
      %v937 = vsel %vm932, %v934, %v936
      %v938 = vrot.slane %v435, 2
      %v939 = vrot.slane %v327, 2
      %v940 = vsel %vm932, %v938, %v939
      %v941 = vrot.slane %v451, 2
      %v942 = vsel %vm932, %v939, %v941
      %v943 = vrot.slane %v436, 2
      %v944 = vrot.slane %v330, 2
      %v945 = vsel %vm932, %v943, %v944
      %v946 = vrot.slane %v452, 2
      %v947 = vsel %vm932, %v944, %v946
      %v948 = vrot.slane %v437, 2
      %v949 = vrot.slane %v333, 2
      %v950 = vsel %vm932, %v948, %v949
      %v951 = vrot.slane %v453, 2
      %v952 = vsel %vm932, %v949, %v951
      %v953 = vrot.slane %v438, 2
      %v954 = vrot.slane %v336, 2
      %v955 = vsel %vm932, %v953, %v954
      %v956 = vrot.slane %v454, 2
      %v957 = vsel %vm932, %v954, %v956
      %v958 = vrot.slane %v439, 2
      %v959 = vrot.slane %v339, 2
      %v960 = vsel %vm932, %v958, %v959
      %v961 = vrot.slane %v455, 2
      %v962 = vsel %vm932, %v959, %v961
      %v963 = vrot.slane %v440, 2
      %v964 = vrot.slane %v342, 2
      %v965 = vsel %vm932, %v963, %v964
      %v966 = vrot.slane %v456, 2
      %v967 = vsel %vm932, %v964, %v966
      %v968 = vrot.slane %v441, 2
      %v969 = vrot.slane %v345, 2
      %v970 = vsel %vm932, %v968, %v969
      %v971 = vrot.slane %v457, 2
      %v972 = vsel %vm932, %v969, %v971
      %v973 = vrot.slane %v442, 2
      %v974 = vrot.slane %v348, 2
      %v975 = vsel %vm932, %v973, %v974
      %v976 = vrot.slane %v458, 2
      %v977 = vsel %vm932, %v974, %v976
      %v978 = vrot.slane %v443, 2
      %v979 = vrot.slane %v351, 2
      %v980 = vsel %vm932, %v978, %v979
      %v981 = vrot.slane %v459, 2
      %v982 = vsel %vm932, %v979, %v981
      %v983 = vrot.slane %v444, 2
      %v984 = vrot.slane %v354, 2
      %v985 = vsel %vm932, %v983, %v984
      %v986 = vrot.slane %v460, 2
      %v987 = vsel %vm932, %v984, %v986
      %v988 = vrot.slane %v445, 2
      %v989 = vrot.slane %v357, 2
      %v990 = vsel %vm932, %v988, %v989
      %v991 = vrot.slane %v461, 2
      %v992 = vsel %vm932, %v989, %v991
      %v993 = vrot.slane %v446, 2
      %v994 = vrot.slane %v360, 2
      %v995 = vsel %vm932, %v993, %v994
      %v996 = vrot.slane %v462, 2
      %v997 = vsel %vm932, %v994, %v996
      %v998 = vrot.slane %v447, 2
      %v999 = vrot.slane %v363, 2
      %v1000 = vsel %vm932, %v998, %v999
      %v1001 = vrot.slane %v463, 2
      %v1002 = vsel %vm932, %v999, %v1001
      %v1003 = vrot.slane %v448, 2
      %v1004 = vrot.slane %v366, 2
      %v1005 = vsel %vm932, %v1003, %v1004
      %v1006 = vrot.slane %v464, 2
      %v1007 = vsel %vm932, %v1004, %v1006
      %v1008 = vsel %vm576, %v935, 0
      %v1010 = vsel %vm576, %v937, 0
      %v1012 = vsel %vm576, %v940, 0
      %v1014 = vsel %vm576, %v942, 0
      %v1016 = vsel %vm576, %v945, 0
      %v1018 = vsel %vm576, %v947, 0
      %v1020 = vsel %vm576, %v950, 0
      %v1022 = vsel %vm576, %v952, 0
      %v1024 = vsel %vm576, %v955, 0
      %v1026 = vsel %vm576, %v957, 0
      %v1028 = vsel %vm576, %v960, 0
      %v1030 = vsel %vm576, %v962, 0
      %v1032 = vsel %vm576, %v965, 0
      %v1034 = vsel %vm576, %v967, 0
      %v1036 = vsel %vm576, %v970, 0
      %v1038 = vsel %vm576, %v972, 0
      %v1040 = vsel %vm576, %v975, 0
      %v1042 = vsel %vm576, %v977, 0
      %v1044 = vsel %vm576, %v980, 0
      %v1046 = vsel %vm576, %v982, 0
      %v1048 = vsel %vm576, %v985, 0
      %v1050 = vsel %vm576, %v987, 0
      %v1052 = vsel %vm576, %v990, 0
      %v1054 = vsel %vm576, %v992, 0
      %v1056 = vsel %vm576, %v995, 0
      %v1058 = vsel %vm576, %v997, 0
      %v1060 = vsel %vm576, %v1000, 0
      %v1062 = vsel %vm576, %v1002, 0
      %v1064 = vsel %vm576, %v1005, 0
      %v1066 = vsel %vm576, %v1007, 0
      %v1069 = vsel %vm637, %v931, 0
      %1071 = vmatpush.msra.mxu0 0.0
      %1072 = vmatpush.msra.mxu0 0.0
      %1073 = vmatpush.msra.mxu0 0.0
      %1074 = vmatpush.msra.mxu0 0.0
      %1075 = vmatpush.msra.mxu0 0.0
      %1076 = vmatpush.msra.mxu0 0.0
      %1077 = vmatpush.msra.mxu0 0.0
      %1078 = vmatpush.msra.mxu0 0.0
      %1079 = vmatpush.msra.mxu0 0.0
      %1080 = vmatpush.msra.mxu0 0.0
      %1081 = vmatpush.msra.mxu0 0.0
      %1082 = vmatpush.msra.mxu0 0.0
      %1083 = vmatpush.msra.mxu0 0.0
      %1084 = vmatpush.msra.mxu0 0.0
      %1085 = vmatpush.msra.mxu0 0.0
      %1086 = vmatpush.msra.mxu0 %v1069
      %1087 = vmatmul.f32.gmra.mxu0 %v1008
      %v1088 = vpop.f32.mrf.mxu0
      %v1089 = vadd.f32 0.0, %v1088
      %1090 = vmatmul.f32.gmra.mxu0 %v1010
      %v1091 = vpop.f32.mrf.mxu0
      %v1092 = vadd.f32 0.0, %v1091
      %1093 = vmatmul.f32.gmra.mxu0 %v1012
      %v1094 = vpop.f32.mrf.mxu0
      %v1095 = vadd.f32 0.0, %v1094
      %1096 = vmatmul.f32.gmra.mxu0 %v1014
      %v1097 = vpop.f32.mrf.mxu0
      %v1098 = vadd.f32 0.0, %v1097
      %1099 = vmatmul.f32.gmra.mxu0 %v1008
      %v1100 = vpop.f32.mrf.mxu0
      %v1101 = vadd.f32 0.0, %v1100
      %1102 = vmatmul.f32.gmra.mxu0 %v1010
      %v1103 = vpop.f32.mrf.mxu0
      %v1104 = vadd.f32 0.0, %v1103
      %1105 = vmatmul.f32.gmra.mxu0 %v1016
      %v1106 = vpop.f32.mrf.mxu0
      %v1107 = vadd.f32 0.0, %v1106
      %1108 = vmatmul.f32.gmra.mxu0 %v1018
      %v1109 = vpop.f32.mrf.mxu0
      %v1110 = vadd.f32 0.0, %v1109
      %1111 = vmatmul.f32.gmra.mxu0 %v1020
      %v1112 = vpop.f32.mrf.mxu0
      %v1113 = vadd.f32 0.0, %v1112
      %1114 = vmatmul.f32.gmra.mxu0 %v1022
      %v1115 = vpop.f32.mrf.mxu0
      %v1116 = vadd.f32 0.0, %v1115
      %1117 = vmatmul.f32.gmra.mxu0 %v1024
      %v1118 = vpop.f32.mrf.mxu0
      %v1119 = vadd.f32 0.0, %v1118
      %1120 = vmatmul.f32.gmra.mxu0 %v1026
      %v1121 = vpop.f32.mrf.mxu0
      %v1122 = vadd.f32 0.0, %v1121
      %1123 = vmatmul.f32.gmra.mxu0 %v1028
      %v1124 = vpop.f32.mrf.mxu0
      %v1125 = vadd.f32 0.0, %v1124
      %1126 = vmatmul.f32.gmra.mxu0 %v1030
      %v1127 = vpop.f32.mrf.mxu0
      %v1128 = vadd.f32 0.0, %v1127
      %1129 = vmatmul.f32.gmra.mxu0 %v1032
      %v1130 = vpop.f32.mrf.mxu0
      %v1131 = vadd.f32 0.0, %v1130
      %1132 = vmatmul.f32.gmra.mxu0 %v1034
      %v1133 = vpop.f32.mrf.mxu0
      %v1134 = vadd.f32 0.0, %v1133
      %1135 = vmatmul.f32.gmra.mxu0 %v1036
      %v1136 = vpop.f32.mrf.mxu0
      %v1137 = vadd.f32 0.0, %v1136
      %1138 = vmatmul.f32.gmra.mxu0 %v1038
      %v1139 = vpop.f32.mrf.mxu0
      %v1140 = vadd.f32 0.0, %v1139
      %1141 = vmatmul.f32.gmra.mxu0 %v1040
      %v1142 = vpop.f32.mrf.mxu0
      %v1143 = vadd.f32 0.0, %v1142
      %1144 = vmatmul.f32.gmra.mxu0 %v1042
      %v1145 = vpop.f32.mrf.mxu0
      %v1146 = vadd.f32 0.0, %v1145
      %1147 = vmatmul.f32.gmra.mxu0 %v1044
      %v1148 = vpop.f32.mrf.mxu0
      %v1149 = vadd.f32 0.0, %v1148
      %1150 = vmatmul.f32.gmra.mxu0 %v1046
      %v1151 = vpop.f32.mrf.mxu0
      %v1152 = vadd.f32 0.0, %v1151
      %1153 = vmatmul.f32.gmra.mxu0 %v1048
      %v1154 = vpop.f32.mrf.mxu0
      %v1155 = vadd.f32 0.0, %v1154
      %1156 = vmatmul.f32.gmra.mxu0 %v1050
      %v1157 = vpop.f32.mrf.mxu0
      %v1158 = vadd.f32 0.0, %v1157
      %1159 = vmatmul.f32.gmra.mxu0 %v1052
      %v1160 = vpop.f32.mrf.mxu0
      %v1161 = vadd.f32 0.0, %v1160
      %1162 = vmatmul.f32.gmra.mxu0 %v1054
      %v1163 = vpop.f32.mrf.mxu0
      %v1164 = vadd.f32 0.0, %v1163
      %1165 = vmatmul.f32.gmra.mxu0 %v1056
      %v1166 = vpop.f32.mrf.mxu0
      %v1167 = vadd.f32 0.0, %v1166
      %1168 = vmatmul.f32.gmra.mxu0 %v1058
      %v1169 = vpop.f32.mrf.mxu0
      %v1170 = vadd.f32 0.0, %v1169
      %1171 = vmatmul.f32.gmra.mxu0 %v1060
      %v1172 = vpop.f32.mrf.mxu0
      %v1173 = vadd.f32 0.0, %v1172
      %1174 = vmatmul.f32.gmra.mxu0 %v1062
      %v1175 = vpop.f32.mrf.mxu0
      %v1176 = vadd.f32 0.0, %v1175
      %1177 = vmatmul.f32.gmra.mxu0 %v1064
      %v1178 = vpop.f32.mrf.mxu0
      %v1179 = vadd.f32 0.0, %v1178
      %1180 = vmatmul.f32.gmra.mxu0 %v1066
      %v1181 = vpop.f32.mrf.mxu0
      %v1182 = vadd.f32 0.0, %v1181
      %1183 = vdwg.mxu0
      %v1184 = vadd.f32 %v835, %v1089
      %v1185 = vadd.f32 %v838, %v1092
      %v1186 = vadd.f32 %v841, %v1095
      %v1187 = vadd.f32 %v844, %v1098
      %v1188 = vadd.f32 %v847, %v1101
      %v1189 = vadd.f32 %v850, %v1104
      %v1190 = vadd.f32 %v853, %v1107
      %v1191 = vadd.f32 %v856, %v1110
      %v1192 = vadd.f32 %v859, %v1113
      %v1193 = vadd.f32 %v862, %v1116
      %v1194 = vadd.f32 %v865, %v1119
      %v1195 = vadd.f32 %v868, %v1122
      %v1196 = vadd.f32 %v871, %v1125
      %v1197 = vadd.f32 %v874, %v1128
      %v1198 = vadd.f32 %v877, %v1131
      %v1199 = vadd.f32 %v880, %v1134
      %v1200 = vadd.f32 %v883, %v1137
      %v1201 = vadd.f32 %v886, %v1140
      %v1202 = vadd.f32 %v889, %v1143
      %v1203 = vadd.f32 %v892, %v1146
      %v1204 = vadd.f32 %v895, %v1149
      %v1205 = vadd.f32 %v898, %v1152
      %v1206 = vadd.f32 %v901, %v1155
      %v1207 = vadd.f32 %v904, %v1158
      %v1208 = vadd.f32 %v907, %v1161
      %v1209 = vadd.f32 %v910, %v1164
      %v1210 = vadd.f32 %v913, %v1167
      %v1211 = vadd.f32 %v916, %v1170
      %v1212 = vadd.f32 %v919, %v1173
      %v1213 = vadd.f32 %v922, %v1176
      %v1214 = vadd.f32 %v925, %v1179
      %v1215 = vadd.f32 %v928, %v1182
      %s1216 = scalar_lea.vmem %s1, 12
      %v1217 = vld [vmem:[%s1216] sm:$0xf]
      %v1219 = vsel %vm576, %v449, 0
      %v1221 = vsel %vm576, %v369, 0
      %v1224 = vsel %vm637, %v1217, 0
      %1226 = vmatpush.msra.mxu0 0.0
      %1227 = vmatpush.msra.mxu0 0.0
      %1228 = vmatpush.msra.mxu0 0.0
      %1229 = vmatpush.msra.mxu0 0.0
      %1230 = vmatpush.msra.mxu0 0.0
      %1231 = vmatpush.msra.mxu0 0.0
      %1232 = vmatpush.msra.mxu0 0.0
      %1233 = vmatpush.msra.mxu0 0.0
      %1234 = vmatpush.msra.mxu0 0.0
      %1235 = vmatpush.msra.mxu0 0.0
      %1236 = vmatpush.msra.mxu0 0.0
      %1237 = vmatpush.msra.mxu0 0.0
      %1238 = vmatpush.msra.mxu0 0.0
      %1239 = vmatpush.msra.mxu0 0.0
      %1240 = vmatpush.msra.mxu0 0.0
      %1241 = vmatpush.msra.mxu0 %v1224
      %1242 = vmatmul.f32.gmra.mxu0 %v758
      %v1243 = vpop.f32.mrf.mxu0
      %v1244 = vadd.f32 0.0, %v1243
      %1245 = vmatmul.f32.gmra.mxu0 %v760
      %v1246 = vpop.f32.mrf.mxu0
      %v1247 = vadd.f32 0.0, %v1246
      %1248 = vmatmul.f32.gmra.mxu0 %v754
      %v1249 = vpop.f32.mrf.mxu0
      %v1250 = vadd.f32 0.0, %v1249
      %1251 = vmatmul.f32.gmra.mxu0 %v756
      %v1252 = vpop.f32.mrf.mxu0
      %v1253 = vadd.f32 0.0, %v1252
      %1254 = vmatmul.f32.gmra.mxu0 %v762
      %v1255 = vpop.f32.mrf.mxu0
      %v1256 = vadd.f32 0.0, %v1255
      %1257 = vmatmul.f32.gmra.mxu0 %v764
      %v1258 = vpop.f32.mrf.mxu0
      %v1259 = vadd.f32 0.0, %v1258
      %1260 = vmatmul.f32.gmra.mxu0 %v766
      %v1261 = vpop.f32.mrf.mxu0
      %v1262 = vadd.f32 0.0, %v1261
      %1263 = vmatmul.f32.gmra.mxu0 %v768
      %v1264 = vpop.f32.mrf.mxu0
      %v1265 = vadd.f32 0.0, %v1264
      %1266 = vmatmul.f32.gmra.mxu0 %v770
      %v1267 = vpop.f32.mrf.mxu0
      %v1268 = vadd.f32 0.0, %v1267
      %1269 = vmatmul.f32.gmra.mxu0 %v772
      %v1270 = vpop.f32.mrf.mxu0
      %v1271 = vadd.f32 0.0, %v1270
      %1272 = vmatmul.f32.gmra.mxu0 %v774
      %v1273 = vpop.f32.mrf.mxu0
      %v1274 = vadd.f32 0.0, %v1273
      %1275 = vmatmul.f32.gmra.mxu0 %v776
      %v1276 = vpop.f32.mrf.mxu0
      %v1277 = vadd.f32 0.0, %v1276
      %1278 = vmatmul.f32.gmra.mxu0 %v778
      %v1279 = vpop.f32.mrf.mxu0
      %v1280 = vadd.f32 0.0, %v1279
      %1281 = vmatmul.f32.gmra.mxu0 %v780
      %v1282 = vpop.f32.mrf.mxu0
      %v1283 = vadd.f32 0.0, %v1282
      %1284 = vmatmul.f32.gmra.mxu0 %v782
      %v1285 = vpop.f32.mrf.mxu0
      %v1286 = vadd.f32 0.0, %v1285
      %1287 = vmatmul.f32.gmra.mxu0 %v784
      %v1288 = vpop.f32.mrf.mxu0
      %v1289 = vadd.f32 0.0, %v1288
      %1290 = vmatmul.f32.gmra.mxu0 %v786
      %v1291 = vpop.f32.mrf.mxu0
      %v1292 = vadd.f32 0.0, %v1291
      %1293 = vmatmul.f32.gmra.mxu0 %v788
      %v1294 = vpop.f32.mrf.mxu0
      %v1295 = vadd.f32 0.0, %v1294
      %1296 = vmatmul.f32.gmra.mxu0 %v790
      %v1297 = vpop.f32.mrf.mxu0
      %v1298 = vadd.f32 0.0, %v1297
      %1299 = vmatmul.f32.gmra.mxu0 %v792
      %v1300 = vpop.f32.mrf.mxu0
      %v1301 = vadd.f32 0.0, %v1300
      %1302 = vmatmul.f32.gmra.mxu0 %v794
      %v1303 = vpop.f32.mrf.mxu0
      %v1304 = vadd.f32 0.0, %v1303
      %1305 = vmatmul.f32.gmra.mxu0 %v796
      %v1306 = vpop.f32.mrf.mxu0
      %v1307 = vadd.f32 0.0, %v1306
      %1308 = vmatmul.f32.gmra.mxu0 %v798
      %v1309 = vpop.f32.mrf.mxu0
      %v1310 = vadd.f32 0.0, %v1309
      %1311 = vmatmul.f32.gmra.mxu0 %v800
      %v1312 = vpop.f32.mrf.mxu0
      %v1313 = vadd.f32 0.0, %v1312
      %1314 = vmatmul.f32.gmra.mxu0 %v802
      %v1315 = vpop.f32.mrf.mxu0
      %v1316 = vadd.f32 0.0, %v1315
      %1317 = vmatmul.f32.gmra.mxu0 %v804
      %v1318 = vpop.f32.mrf.mxu0
      %v1319 = vadd.f32 0.0, %v1318
      %1320 = vmatmul.f32.gmra.mxu0 %v806
      %v1321 = vpop.f32.mrf.mxu0
      %v1322 = vadd.f32 0.0, %v1321
      %1323 = vmatmul.f32.gmra.mxu0 %v808
      %v1324 = vpop.f32.mrf.mxu0
      %v1325 = vadd.f32 0.0, %v1324
      %1326 = vmatmul.f32.gmra.mxu0 %v810
      %v1327 = vpop.f32.mrf.mxu0
      %v1328 = vadd.f32 0.0, %v1327
      %1329 = vmatmul.f32.gmra.mxu0 %v812
      %v1330 = vpop.f32.mrf.mxu0
      %v1331 = vadd.f32 0.0, %v1330
      %1332 = vmatmul.f32.gmra.mxu0 %v1219
      %v1333 = vpop.f32.mrf.mxu0
      %v1334 = vadd.f32 0.0, %v1333
      %1335 = vmatmul.f32.gmra.mxu0 %v1221
      %v1336 = vpop.f32.mrf.mxu0
      %v1337 = vadd.f32 0.0, %v1336
      %1338 = vdwg.mxu0
      %v1339 = vadd.f32 %v1184, %v1244
      %v1340 = vadd.f32 %v1185, %v1247
      %v1341 = vadd.f32 %v1186, %v1250
      %v1342 = vadd.f32 %v1187, %v1253
      %v1343 = vadd.f32 %v1188, %v1256
      %v1344 = vadd.f32 %v1189, %v1259
      %v1345 = vadd.f32 %v1190, %v1262
      %v1346 = vadd.f32 %v1191, %v1265
      %v1347 = vadd.f32 %v1192, %v1268
      %v1348 = vadd.f32 %v1193, %v1271
      %v1349 = vadd.f32 %v1194, %v1274
      %v1350 = vadd.f32 %v1195, %v1277
      %v1351 = vadd.f32 %v1196, %v1280
      %v1352 = vadd.f32 %v1197, %v1283
      %v1353 = vadd.f32 %v1198, %v1286
      %v1354 = vadd.f32 %v1199, %v1289
      %v1355 = vadd.f32 %v1200, %v1292
      %v1356 = vadd.f32 %v1201, %v1295
      %v1357 = vadd.f32 %v1202, %v1298
      %v1358 = vadd.f32 %v1203, %v1301
      %v1359 = vadd.f32 %v1204, %v1304
      %v1360 = vadd.f32 %v1205, %v1307
      %v1361 = vadd.f32 %v1206, %v1310
      %v1362 = vadd.f32 %v1207, %v1313
      %v1363 = vadd.f32 %v1208, %v1316
      %v1364 = vadd.f32 %v1209, %v1319
      %v1365 = vadd.f32 %v1210, %v1322
      %v1366 = vadd.f32 %v1211, %v1325
      %v1367 = vadd.f32 %v1212, %v1328
      %v1368 = vadd.f32 %v1213, %v1331
      %v1369 = vadd.f32 %v1214, %v1334
      %v1370 = vadd.f32 %v1215, %v1337
      %s1371 = scalar_lea.vmem %s1, 16
      %v1372 = vld [vmem:[%s1371] sm:$0xf]
      %v1374 = vrot.slane %v449, 1
      %v1375 = vrot.slane %v369, 1
      %v1376 = vsel %vm500, %v1374, %v1375
      %v1377 = vrot.slane %v465, 1
      %v1378 = vsel %vm500, %v1375, %v1377
      %v1379 = vsel %vm576, %v1376, 0
      %v1381 = vsel %vm576, %v1378, 0
      %v1384 = vsel %vm637, %v1372, 0
      %1386 = vmatpush.msra.mxu0 0.0
      %1387 = vmatpush.msra.mxu0 0.0
      %1388 = vmatpush.msra.mxu0 0.0
      %1389 = vmatpush.msra.mxu0 0.0
      %1390 = vmatpush.msra.mxu0 0.0
      %1391 = vmatpush.msra.mxu0 0.0
      %1392 = vmatpush.msra.mxu0 0.0
      %1393 = vmatpush.msra.mxu0 0.0
      %1394 = vmatpush.msra.mxu0 0.0
      %1395 = vmatpush.msra.mxu0 0.0
      %1396 = vmatpush.msra.mxu0 0.0
      %1397 = vmatpush.msra.mxu0 0.0
      %1398 = vmatpush.msra.mxu0 0.0
      %1399 = vmatpush.msra.mxu0 0.0
      %1400 = vmatpush.msra.mxu0 0.0
      %1401 = vmatpush.msra.mxu0 %v1384
      %1402 = vmatmul.f32.gmra.mxu0 %v581
      %v1403 = vpop.f32.mrf.mxu0
      %v1404 = vadd.f32 0.0, %v1403
      %1405 = vmatmul.f32.gmra.mxu0 %v583
      %v1406 = vpop.f32.mrf.mxu0
      %v1407 = vadd.f32 0.0, %v1406
      %1408 = vmatmul.f32.gmra.mxu0 %v577
      %v1409 = vpop.f32.mrf.mxu0
      %v1410 = vadd.f32 0.0, %v1409
      %1411 = vmatmul.f32.gmra.mxu0 %v579
      %v1412 = vpop.f32.mrf.mxu0
      %v1413 = vadd.f32 0.0, %v1412
      %1414 = vmatmul.f32.gmra.mxu0 %v585
      %v1415 = vpop.f32.mrf.mxu0
      %v1416 = vadd.f32 0.0, %v1415
      %1417 = vmatmul.f32.gmra.mxu0 %v587
      %v1418 = vpop.f32.mrf.mxu0
      %v1419 = vadd.f32 0.0, %v1418
      %1420 = vmatmul.f32.gmra.mxu0 %v589
      %v1421 = vpop.f32.mrf.mxu0
      %v1422 = vadd.f32 0.0, %v1421
      %1423 = vmatmul.f32.gmra.mxu0 %v591
      %v1424 = vpop.f32.mrf.mxu0
      %v1425 = vadd.f32 0.0, %v1424
      %1426 = vmatmul.f32.gmra.mxu0 %v593
      %v1427 = vpop.f32.mrf.mxu0
      %v1428 = vadd.f32 0.0, %v1427
      %1429 = vmatmul.f32.gmra.mxu0 %v595
      %v1430 = vpop.f32.mrf.mxu0
      %v1431 = vadd.f32 0.0, %v1430
      %1432 = vmatmul.f32.gmra.mxu0 %v597
      %v1433 = vpop.f32.mrf.mxu0
      %v1434 = vadd.f32 0.0, %v1433
      %1435 = vmatmul.f32.gmra.mxu0 %v599
      %v1436 = vpop.f32.mrf.mxu0
      %v1437 = vadd.f32 0.0, %v1436
      %1438 = vmatmul.f32.gmra.mxu0 %v601
      %v1439 = vpop.f32.mrf.mxu0
      %v1440 = vadd.f32 0.0, %v1439
      %1441 = vmatmul.f32.gmra.mxu0 %v603
      %v1442 = vpop.f32.mrf.mxu0
      %v1443 = vadd.f32 0.0, %v1442
      %1444 = vmatmul.f32.gmra.mxu0 %v605
      %v1445 = vpop.f32.mrf.mxu0
      %v1446 = vadd.f32 0.0, %v1445
      %1447 = vmatmul.f32.gmra.mxu0 %v607
      %v1448 = vpop.f32.mrf.mxu0
      %v1449 = vadd.f32 0.0, %v1448
      %1450 = vmatmul.f32.gmra.mxu0 %v609
      %v1451 = vpop.f32.mrf.mxu0
      %v1452 = vadd.f32 0.0, %v1451
      %1453 = vmatmul.f32.gmra.mxu0 %v611
      %v1454 = vpop.f32.mrf.mxu0
      %v1455 = vadd.f32 0.0, %v1454
      %1456 = vmatmul.f32.gmra.mxu0 %v613
      %v1457 = vpop.f32.mrf.mxu0
      %v1458 = vadd.f32 0.0, %v1457
      %1459 = vmatmul.f32.gmra.mxu0 %v615
      %v1460 = vpop.f32.mrf.mxu0
      %v1461 = vadd.f32 0.0, %v1460
      %1462 = vmatmul.f32.gmra.mxu0 %v617
      %v1463 = vpop.f32.mrf.mxu0
      %v1464 = vadd.f32 0.0, %v1463
      %1465 = vmatmul.f32.gmra.mxu0 %v619
      %v1466 = vpop.f32.mrf.mxu0
      %v1467 = vadd.f32 0.0, %v1466
      %1468 = vmatmul.f32.gmra.mxu0 %v621
      %v1469 = vpop.f32.mrf.mxu0
      %v1470 = vadd.f32 0.0, %v1469
      %1471 = vmatmul.f32.gmra.mxu0 %v623
      %v1472 = vpop.f32.mrf.mxu0
      %v1473 = vadd.f32 0.0, %v1472
      %1474 = vmatmul.f32.gmra.mxu0 %v625
      %v1475 = vpop.f32.mrf.mxu0
      %v1476 = vadd.f32 0.0, %v1475
      %1477 = vmatmul.f32.gmra.mxu0 %v627
      %v1478 = vpop.f32.mrf.mxu0
      %v1479 = vadd.f32 0.0, %v1478
      %1480 = vmatmul.f32.gmra.mxu0 %v629
      %v1481 = vpop.f32.mrf.mxu0
      %v1482 = vadd.f32 0.0, %v1481
      %1483 = vmatmul.f32.gmra.mxu0 %v631
      %v1484 = vpop.f32.mrf.mxu0
      %v1485 = vadd.f32 0.0, %v1484
      %1486 = vmatmul.f32.gmra.mxu0 %v633
      %v1487 = vpop.f32.mrf.mxu0
      %v1488 = vadd.f32 0.0, %v1487
      %1489 = vmatmul.f32.gmra.mxu0 %v635
      %v1490 = vpop.f32.mrf.mxu0
      %v1491 = vadd.f32 0.0, %v1490
      %1492 = vmatmul.f32.gmra.mxu0 %v1379
      %v1493 = vpop.f32.mrf.mxu0
      %v1494 = vadd.f32 0.0, %v1493
      %1495 = vmatmul.f32.gmra.mxu0 %v1381
      %v1496 = vpop.f32.mrf.mxu0
      %v1497 = vadd.f32 0.0, %v1496
      %1498 = vdwg.mxu0
      %v1499 = vadd.f32 %v1339, %v1404
      %v1500 = vadd.f32 %v1340, %v1407
      %v1501 = vadd.f32 %v1341, %v1410
      %v1502 = vadd.f32 %v1342, %v1413
      %v1503 = vadd.f32 %v1343, %v1416
      %v1504 = vadd.f32 %v1344, %v1419
      %v1505 = vadd.f32 %v1345, %v1422
      %v1506 = vadd.f32 %v1346, %v1425
      %v1507 = vadd.f32 %v1347, %v1428
      %v1508 = vadd.f32 %v1348, %v1431
      %v1509 = vadd.f32 %v1349, %v1434
      %v1510 = vadd.f32 %v1350, %v1437
      %v1511 = vadd.f32 %v1351, %v1440
      %v1512 = vadd.f32 %v1352, %v1443
      %v1513 = vadd.f32 %v1353, %v1446
      %v1514 = vadd.f32 %v1354, %v1449
      %v1515 = vadd.f32 %v1355, %v1452
      %v1516 = vadd.f32 %v1356, %v1455
      %v1517 = vadd.f32 %v1357, %v1458
      %v1518 = vadd.f32 %v1358, %v1461
      %v1519 = vadd.f32 %v1359, %v1464
      %v1520 = vadd.f32 %v1360, %v1467
      %v1521 = vadd.f32 %v1361, %v1470
      %v1522 = vadd.f32 %v1362, %v1473
      %v1523 = vadd.f32 %v1363, %v1476
      %v1524 = vadd.f32 %v1364, %v1479
      %v1525 = vadd.f32 %v1365, %v1482
      %v1526 = vadd.f32 %v1366, %v1485
      %v1527 = vadd.f32 %v1367, %v1488
      %v1528 = vadd.f32 %v1368, %v1491
      %v1529 = vadd.f32 %v1369, %v1494
      %v1530 = vadd.f32 %v1370, %v1497
      %s1531 = scalar_lea.vmem %s1, 20
      %v1532 = vld [vmem:[%s1531] sm:$0xf]
      %v1533 = vrot.slane %v449, 2
      %v1534 = vrot.slane %v369, 2
      %v1535 = vsel %vm932, %v1533, %v1534
      %v1536 = vrot.slane %v465, 2
      %v1537 = vsel %vm932, %v1534, %v1536
      %v1538 = vsel %vm576, %v1535, 0
      %v1540 = vsel %vm576, %v1537, 0
      %v1543 = vsel %vm637, %v1532, 0
      %1545 = vmatpush.msra.mxu0 0.0
      %1546 = vmatpush.msra.mxu0 0.0
      %1547 = vmatpush.msra.mxu0 0.0
      %1548 = vmatpush.msra.mxu0 0.0
      %1549 = vmatpush.msra.mxu0 0.0
      %1550 = vmatpush.msra.mxu0 0.0
      %1551 = vmatpush.msra.mxu0 0.0
      %1552 = vmatpush.msra.mxu0 0.0
      %1553 = vmatpush.msra.mxu0 0.0
      %1554 = vmatpush.msra.mxu0 0.0
      %1555 = vmatpush.msra.mxu0 0.0
      %1556 = vmatpush.msra.mxu0 0.0
      %1557 = vmatpush.msra.mxu0 0.0
      %1558 = vmatpush.msra.mxu0 0.0
      %1559 = vmatpush.msra.mxu0 0.0
      %1560 = vmatpush.msra.mxu0 %v1543
      %1561 = vmatmul.f32.gmra.mxu0 %v1012
      %v1562 = vpop.f32.mrf.mxu0
      %v1563 = vadd.f32 0.0, %v1562
      %1564 = vmatmul.f32.gmra.mxu0 %v1014
      %v1565 = vpop.f32.mrf.mxu0
      %v1566 = vadd.f32 0.0, %v1565
      %1567 = vmatmul.f32.gmra.mxu0 %v1008
      %v1568 = vpop.f32.mrf.mxu0
      %v1569 = vadd.f32 0.0, %v1568
      %1570 = vmatmul.f32.gmra.mxu0 %v1010
      %v1571 = vpop.f32.mrf.mxu0
      %v1572 = vadd.f32 0.0, %v1571
      %1573 = vmatmul.f32.gmra.mxu0 %v1016
      %v1574 = vpop.f32.mrf.mxu0
      %v1575 = vadd.f32 0.0, %v1574
      %1576 = vmatmul.f32.gmra.mxu0 %v1018
      %v1577 = vpop.f32.mrf.mxu0
      %v1578 = vadd.f32 0.0, %v1577
      %1579 = vmatmul.f32.gmra.mxu0 %v1020
      %v1580 = vpop.f32.mrf.mxu0
      %v1581 = vadd.f32 0.0, %v1580
      %1582 = vmatmul.f32.gmra.mxu0 %v1022
      %v1583 = vpop.f32.mrf.mxu0
      %v1584 = vadd.f32 0.0, %v1583
      %1585 = vmatmul.f32.gmra.mxu0 %v1024
      %v1586 = vpop.f32.mrf.mxu0
      %v1587 = vadd.f32 0.0, %v1586
      %1588 = vmatmul.f32.gmra.mxu0 %v1026
      %v1589 = vpop.f32.mrf.mxu0
      %v1590 = vadd.f32 0.0, %v1589
      %1591 = vmatmul.f32.gmra.mxu0 %v1028
      %v1592 = vpop.f32.mrf.mxu0
      %v1593 = vadd.f32 0.0, %v1592
      %1594 = vmatmul.f32.gmra.mxu0 %v1030
      %v1595 = vpop.f32.mrf.mxu0
      %v1596 = vadd.f32 0.0, %v1595
      %1597 = vmatmul.f32.gmra.mxu0 %v1032
      %v1598 = vpop.f32.mrf.mxu0
      %v1599 = vadd.f32 0.0, %v1598
      %1600 = vmatmul.f32.gmra.mxu0 %v1034
      %v1601 = vpop.f32.mrf.mxu0
      %v1602 = vadd.f32 0.0, %v1601
      %1603 = vmatmul.f32.gmra.mxu0 %v1036
      %v1604 = vpop.f32.mrf.mxu0
      %v1605 = vadd.f32 0.0, %v1604
      %1606 = vmatmul.f32.gmra.mxu0 %v1038
      %v1607 = vpop.f32.mrf.mxu0
      %v1608 = vadd.f32 0.0, %v1607
      %1609 = vmatmul.f32.gmra.mxu0 %v1040
      %v1610 = vpop.f32.mrf.mxu0
      %v1611 = vadd.f32 0.0, %v1610
      %1612 = vmatmul.f32.gmra.mxu0 %v1042
      %v1613 = vpop.f32.mrf.mxu0
      %v1614 = vadd.f32 0.0, %v1613
      %1615 = vmatmul.f32.gmra.mxu0 %v1044
      %v1616 = vpop.f32.mrf.mxu0
      %v1617 = vadd.f32 0.0, %v1616
      %1618 = vmatmul.f32.gmra.mxu0 %v1046
      %v1619 = vpop.f32.mrf.mxu0
      %v1620 = vadd.f32 0.0, %v1619
      %1621 = vmatmul.f32.gmra.mxu0 %v1048
      %v1622 = vpop.f32.mrf.mxu0
      %v1623 = vadd.f32 0.0, %v1622
      %1624 = vmatmul.f32.gmra.mxu0 %v1050
      %v1625 = vpop.f32.mrf.mxu0
      %v1626 = vadd.f32 0.0, %v1625
      %1627 = vmatmul.f32.gmra.mxu0 %v1052
      %v1628 = vpop.f32.mrf.mxu0
      %v1629 = vadd.f32 0.0, %v1628
      %1630 = vmatmul.f32.gmra.mxu0 %v1054
      %v1631 = vpop.f32.mrf.mxu0
      %v1632 = vadd.f32 0.0, %v1631
      %1633 = vmatmul.f32.gmra.mxu0 %v1056
      %v1634 = vpop.f32.mrf.mxu0
      %v1635 = vadd.f32 0.0, %v1634
      %1636 = vmatmul.f32.gmra.mxu0 %v1058
      %v1637 = vpop.f32.mrf.mxu0
      %v1638 = vadd.f32 0.0, %v1637
      %1639 = vmatmul.f32.gmra.mxu0 %v1060
      %v1640 = vpop.f32.mrf.mxu0
      %v1641 = vadd.f32 0.0, %v1640
      %1642 = vmatmul.f32.gmra.mxu0 %v1062
      %v1643 = vpop.f32.mrf.mxu0
      %v1644 = vadd.f32 0.0, %v1643
      %1645 = vmatmul.f32.gmra.mxu0 %v1064
      %v1646 = vpop.f32.mrf.mxu0
      %v1647 = vadd.f32 0.0, %v1646
      %1648 = vmatmul.f32.gmra.mxu0 %v1066
      %v1649 = vpop.f32.mrf.mxu0
      %v1650 = vadd.f32 0.0, %v1649
      %1651 = vmatmul.f32.gmra.mxu0 %v1538
      %v1652 = vpop.f32.mrf.mxu0
      %v1653 = vadd.f32 0.0, %v1652
      %1654 = vmatmul.f32.gmra.mxu0 %v1540
      %v1655 = vpop.f32.mrf.mxu0
      %v1656 = vadd.f32 0.0, %v1655
      %1657 = vdwg.mxu0
      %v1658 = vadd.f32 %v1499, %v1563
      %v1659 = vadd.f32 %v1500, %v1566
      %v1660 = vadd.f32 %v1501, %v1569
      %v1661 = vadd.f32 %v1502, %v1572
      %v1662 = vadd.f32 %v1503, %v1575
      %v1663 = vadd.f32 %v1504, %v1578
      %v1664 = vadd.f32 %v1505, %v1581
      %v1665 = vadd.f32 %v1506, %v1584
      %v1666 = vadd.f32 %v1507, %v1587
      %v1667 = vadd.f32 %v1508, %v1590
      %v1668 = vadd.f32 %v1509, %v1593
      %v1669 = vadd.f32 %v1510, %v1596
      %v1670 = vadd.f32 %v1511, %v1599
      %v1671 = vadd.f32 %v1512, %v1602
      %v1672 = vadd.f32 %v1513, %v1605
      %v1673 = vadd.f32 %v1514, %v1608
      %v1674 = vadd.f32 %v1515, %v1611
      %v1675 = vadd.f32 %v1516, %v1614
      %v1676 = vadd.f32 %v1517, %v1617
      %v1677 = vadd.f32 %v1518, %v1620
      %v1678 = vadd.f32 %v1519, %v1623
      %v1679 = vadd.f32 %v1520, %v1626
      %v1680 = vadd.f32 %v1521, %v1629
      %v1681 = vadd.f32 %v1522, %v1632
      %v1682 = vadd.f32 %v1523, %v1635
      %v1683 = vadd.f32 %v1524, %v1638
      %v1684 = vadd.f32 %v1525, %v1641
      %v1685 = vadd.f32 %v1526, %v1644
      %v1686 = vadd.f32 %v1527, %v1647
      %v1687 = vadd.f32 %v1528, %v1650
      %v1688 = vadd.f32 %v1529, %v1653
      %v1689 = vadd.f32 %v1530, %v1656
      %s1690 = scalar_lea.vmem %s1, 24
      %v1691 = vld [vmem:[%s1690] sm:$0xf]
      %v1693 = vsel %vm637, %v1691, 0
      %1695 = vmatpush.msra.mxu0 0.0
      %1696 = vmatpush.msra.mxu0 0.0
      %1697 = vmatpush.msra.mxu0 0.0
      %1698 = vmatpush.msra.mxu0 0.0
      %1699 = vmatpush.msra.mxu0 0.0
      %1700 = vmatpush.msra.mxu0 0.0
      %1701 = vmatpush.msra.mxu0 0.0
      %1702 = vmatpush.msra.mxu0 0.0
      %1703 = vmatpush.msra.mxu0 0.0
      %1704 = vmatpush.msra.mxu0 0.0
      %1705 = vmatpush.msra.mxu0 0.0
      %1706 = vmatpush.msra.mxu0 0.0
      %1707 = vmatpush.msra.mxu0 0.0
      %1708 = vmatpush.msra.mxu0 0.0
      %1709 = vmatpush.msra.mxu0 0.0
      %1710 = vmatpush.msra.mxu0 %v1693
      %1711 = vmatmul.f32.gmra.mxu0 %v754
      %v1712 = vpop.f32.mrf.mxu0
      %v1713 = vadd.f32 0.0, %v1712
      %1714 = vmatmul.f32.gmra.mxu0 %v756
      %v1715 = vpop.f32.mrf.mxu0
      %v1716 = vadd.f32 0.0, %v1715
      %1717 = vmatmul.f32.gmra.mxu0 %v762
      %v1718 = vpop.f32.mrf.mxu0
      %v1719 = vadd.f32 0.0, %v1718
      %1720 = vmatmul.f32.gmra.mxu0 %v764
      %v1721 = vpop.f32.mrf.mxu0
      %v1722 = vadd.f32 0.0, %v1721
      %1723 = vmatmul.f32.gmra.mxu0 %v766
      %v1724 = vpop.f32.mrf.mxu0
      %v1725 = vadd.f32 0.0, %v1724
      %1726 = vmatmul.f32.gmra.mxu0 %v768
      %v1727 = vpop.f32.mrf.mxu0
      %v1728 = vadd.f32 0.0, %v1727
      %1729 = vmatmul.f32.gmra.mxu0 %v770
      %v1730 = vpop.f32.mrf.mxu0
      %v1731 = vadd.f32 0.0, %v1730
      %1732 = vmatmul.f32.gmra.mxu0 %v772
      %v1733 = vpop.f32.mrf.mxu0
      %v1734 = vadd.f32 0.0, %v1733
      %1735 = vmatmul.f32.gmra.mxu0 %v774
      %v1736 = vpop.f32.mrf.mxu0
      %v1737 = vadd.f32 0.0, %v1736
      %1738 = vmatmul.f32.gmra.mxu0 %v776
      %v1739 = vpop.f32.mrf.mxu0
      %v1740 = vadd.f32 0.0, %v1739
      %1741 = vmatmul.f32.gmra.mxu0 %v778
      %v1742 = vpop.f32.mrf.mxu0
      %v1743 = vadd.f32 0.0, %v1742
      %1744 = vmatmul.f32.gmra.mxu0 %v780
      %v1745 = vpop.f32.mrf.mxu0
      %v1746 = vadd.f32 0.0, %v1745
      %1747 = vmatmul.f32.gmra.mxu0 %v782
      %v1748 = vpop.f32.mrf.mxu0
      %v1749 = vadd.f32 0.0, %v1748
      %1750 = vmatmul.f32.gmra.mxu0 %v784
      %v1751 = vpop.f32.mrf.mxu0
      %v1752 = vadd.f32 0.0, %v1751
      %1753 = vmatmul.f32.gmra.mxu0 %v786
      %v1754 = vpop.f32.mrf.mxu0
      %v1755 = vadd.f32 0.0, %v1754
      %1756 = vmatmul.f32.gmra.mxu0 %v788
      %v1757 = vpop.f32.mrf.mxu0
      %v1758 = vadd.f32 0.0, %v1757
      %1759 = vmatmul.f32.gmra.mxu0 %v790
      %v1760 = vpop.f32.mrf.mxu0
      %v1761 = vadd.f32 0.0, %v1760
      %1762 = vmatmul.f32.gmra.mxu0 %v792
      %v1763 = vpop.f32.mrf.mxu0
      %v1764 = vadd.f32 0.0, %v1763
      %1765 = vmatmul.f32.gmra.mxu0 %v794
      %v1766 = vpop.f32.mrf.mxu0
      %v1767 = vadd.f32 0.0, %v1766
      %1768 = vmatmul.f32.gmra.mxu0 %v796
      %v1769 = vpop.f32.mrf.mxu0
      %v1770 = vadd.f32 0.0, %v1769
      %1771 = vmatmul.f32.gmra.mxu0 %v798
      %v1772 = vpop.f32.mrf.mxu0
      %v1773 = vadd.f32 0.0, %v1772
      %1774 = vmatmul.f32.gmra.mxu0 %v800
      %v1775 = vpop.f32.mrf.mxu0
      %v1776 = vadd.f32 0.0, %v1775
      %1777 = vmatmul.f32.gmra.mxu0 %v802
      %v1778 = vpop.f32.mrf.mxu0
      %v1779 = vadd.f32 0.0, %v1778
      %1780 = vmatmul.f32.gmra.mxu0 %v804
      %v1781 = vpop.f32.mrf.mxu0
      %v1782 = vadd.f32 0.0, %v1781
      %1783 = vmatmul.f32.gmra.mxu0 %v806
      %v1784 = vpop.f32.mrf.mxu0
      %v1785 = vadd.f32 0.0, %v1784
      %1786 = vmatmul.f32.gmra.mxu0 %v808
      %v1787 = vpop.f32.mrf.mxu0
      %v1788 = vadd.f32 0.0, %v1787
      %1789 = vmatmul.f32.gmra.mxu0 %v810
      %v1790 = vpop.f32.mrf.mxu0
      %v1791 = vadd.f32 0.0, %v1790
      %1792 = vmatmul.f32.gmra.mxu0 %v812
      %v1793 = vpop.f32.mrf.mxu0
      %v1794 = vadd.f32 0.0, %v1793
      %1795 = vmatmul.f32.gmra.mxu0 %v1219
      %v1796 = vpop.f32.mrf.mxu0
      %v1797 = vadd.f32 0.0, %v1796
      %1798 = vmatmul.f32.gmra.mxu0 %v1221
      %v1799 = vpop.f32.mrf.mxu0
      %v1800 = vadd.f32 0.0, %v1799
      %1801 = vmatmul.f32.gmra.mxu0 %v810
      %v1802 = vpop.f32.mrf.mxu0
      %v1803 = vadd.f32 0.0, %v1802
      %1804 = vmatmul.f32.gmra.mxu0 %v812
      %v1805 = vpop.f32.mrf.mxu0
      %v1806 = vadd.f32 0.0, %v1805
      %1807 = vdwg.mxu0
      %v1808 = vadd.f32 %v1658, %v1713
      %v1809 = vadd.f32 %v1659, %v1716
      %v1810 = vadd.f32 %v1660, %v1719
      %v1811 = vadd.f32 %v1661, %v1722
      %v1812 = vadd.f32 %v1662, %v1725
      %v1813 = vadd.f32 %v1663, %v1728
      %v1814 = vadd.f32 %v1664, %v1731
      %v1815 = vadd.f32 %v1665, %v1734
      %v1816 = vadd.f32 %v1666, %v1737
      %v1817 = vadd.f32 %v1667, %v1740
      %v1818 = vadd.f32 %v1668, %v1743
      %v1819 = vadd.f32 %v1669, %v1746
      %v1820 = vadd.f32 %v1670, %v1749
      %v1821 = vadd.f32 %v1671, %v1752
      %v1822 = vadd.f32 %v1672, %v1755
      %v1823 = vadd.f32 %v1673, %v1758
      %v1824 = vadd.f32 %v1674, %v1761
      %v1825 = vadd.f32 %v1675, %v1764
      %v1826 = vadd.f32 %v1676, %v1767
      %v1827 = vadd.f32 %v1677, %v1770
      %v1828 = vadd.f32 %v1678, %v1773
      %v1829 = vadd.f32 %v1679, %v1776
      %v1830 = vadd.f32 %v1680, %v1779
      %v1831 = vadd.f32 %v1681, %v1782
      %v1832 = vadd.f32 %v1682, %v1785
      %v1833 = vadd.f32 %v1683, %v1788
      %v1834 = vadd.f32 %v1684, %v1791
      %v1835 = vadd.f32 %v1685, %v1794
      %v1836 = vadd.f32 %v1686, %v1797
      %v1837 = vadd.f32 %v1687, %v1800
      %v1838 = vadd.f32 %v1688, %v1803
      %v1839 = vadd.f32 %v1689, %v1806
      %s1840 = scalar_lea.vmem %s1, 28
      %v1841 = vld [vmem:[%s1840] sm:$0xf]
      %v1843 = vsel %vm637, %v1841, 0
      %1845 = vmatpush.msra.mxu0 0.0
      %1846 = vmatpush.msra.mxu0 0.0
      %1847 = vmatpush.msra.mxu0 0.0
      %1848 = vmatpush.msra.mxu0 0.0
      %1849 = vmatpush.msra.mxu0 0.0
      %1850 = vmatpush.msra.mxu0 0.0
      %1851 = vmatpush.msra.mxu0 0.0
      %1852 = vmatpush.msra.mxu0 0.0
      %1853 = vmatpush.msra.mxu0 0.0
      %1854 = vmatpush.msra.mxu0 0.0
      %1855 = vmatpush.msra.mxu0 0.0
      %1856 = vmatpush.msra.mxu0 0.0
      %1857 = vmatpush.msra.mxu0 0.0
      %1858 = vmatpush.msra.mxu0 0.0
      %1859 = vmatpush.msra.mxu0 0.0
      %1860 = vmatpush.msra.mxu0 %v1843
      %1861 = vmatmul.f32.gmra.mxu0 %v577
      %v1862 = vpop.f32.mrf.mxu0
      %v1863 = vadd.f32 0.0, %v1862
      %1864 = vmatmul.f32.gmra.mxu0 %v579
      %v1865 = vpop.f32.mrf.mxu0
      %v1866 = vadd.f32 0.0, %v1865
      %1867 = vmatmul.f32.gmra.mxu0 %v585
      %v1868 = vpop.f32.mrf.mxu0
      %v1869 = vadd.f32 0.0, %v1868
      %1870 = vmatmul.f32.gmra.mxu0 %v587
      %v1871 = vpop.f32.mrf.mxu0
      %v1872 = vadd.f32 0.0, %v1871
      %1873 = vmatmul.f32.gmra.mxu0 %v589
      %v1874 = vpop.f32.mrf.mxu0
      %v1875 = vadd.f32 0.0, %v1874
      %1876 = vmatmul.f32.gmra.mxu0 %v591
      %v1877 = vpop.f32.mrf.mxu0
      %v1878 = vadd.f32 0.0, %v1877
      %1879 = vmatmul.f32.gmra.mxu0 %v593
      %v1880 = vpop.f32.mrf.mxu0
      %v1881 = vadd.f32 0.0, %v1880
      %1882 = vmatmul.f32.gmra.mxu0 %v595
      %v1883 = vpop.f32.mrf.mxu0
      %v1884 = vadd.f32 0.0, %v1883
      %1885 = vmatmul.f32.gmra.mxu0 %v597
      %v1886 = vpop.f32.mrf.mxu0
      %v1887 = vadd.f32 0.0, %v1886
      %1888 = vmatmul.f32.gmra.mxu0 %v599
      %v1889 = vpop.f32.mrf.mxu0
      %v1890 = vadd.f32 0.0, %v1889
      %1891 = vmatmul.f32.gmra.mxu0 %v601
      %v1892 = vpop.f32.mrf.mxu0
      %v1893 = vadd.f32 0.0, %v1892
      %1894 = vmatmul.f32.gmra.mxu0 %v603
      %v1895 = vpop.f32.mrf.mxu0
      %v1896 = vadd.f32 0.0, %v1895
      %1897 = vmatmul.f32.gmra.mxu0 %v605
      %v1898 = vpop.f32.mrf.mxu0
      %v1899 = vadd.f32 0.0, %v1898
      %1900 = vmatmul.f32.gmra.mxu0 %v607
      %v1901 = vpop.f32.mrf.mxu0
      %v1902 = vadd.f32 0.0, %v1901
      %1903 = vmatmul.f32.gmra.mxu0 %v609
      %v1904 = vpop.f32.mrf.mxu0
      %v1905 = vadd.f32 0.0, %v1904
      %1906 = vmatmul.f32.gmra.mxu0 %v611
      %v1907 = vpop.f32.mrf.mxu0
      %v1908 = vadd.f32 0.0, %v1907
      %1909 = vmatmul.f32.gmra.mxu0 %v613
      %v1910 = vpop.f32.mrf.mxu0
      %v1911 = vadd.f32 0.0, %v1910
      %1912 = vmatmul.f32.gmra.mxu0 %v615
      %v1913 = vpop.f32.mrf.mxu0
      %v1914 = vadd.f32 0.0, %v1913
      %1915 = vmatmul.f32.gmra.mxu0 %v617
      %v1916 = vpop.f32.mrf.mxu0
      %v1917 = vadd.f32 0.0, %v1916
      %1918 = vmatmul.f32.gmra.mxu0 %v619
      %v1919 = vpop.f32.mrf.mxu0
      %v1920 = vadd.f32 0.0, %v1919
      %1921 = vmatmul.f32.gmra.mxu0 %v621
      %v1922 = vpop.f32.mrf.mxu0
      %v1923 = vadd.f32 0.0, %v1922
      %1924 = vmatmul.f32.gmra.mxu0 %v623
      %v1925 = vpop.f32.mrf.mxu0
      %v1926 = vadd.f32 0.0, %v1925
      %1927 = vmatmul.f32.gmra.mxu0 %v625
      %v1928 = vpop.f32.mrf.mxu0
      %v1929 = vadd.f32 0.0, %v1928
      %1930 = vmatmul.f32.gmra.mxu0 %v627
      %v1931 = vpop.f32.mrf.mxu0
      %v1932 = vadd.f32 0.0, %v1931
      %1933 = vmatmul.f32.gmra.mxu0 %v629
      %v1934 = vpop.f32.mrf.mxu0
      %v1935 = vadd.f32 0.0, %v1934
      %1936 = vmatmul.f32.gmra.mxu0 %v631
      %v1937 = vpop.f32.mrf.mxu0
      %v1938 = vadd.f32 0.0, %v1937
      %1939 = vmatmul.f32.gmra.mxu0 %v633
      %v1940 = vpop.f32.mrf.mxu0
      %v1941 = vadd.f32 0.0, %v1940
      %1942 = vmatmul.f32.gmra.mxu0 %v635
      %v1943 = vpop.f32.mrf.mxu0
      %v1944 = vadd.f32 0.0, %v1943
      %1945 = vmatmul.f32.gmra.mxu0 %v1379
      %v1946 = vpop.f32.mrf.mxu0
      %v1947 = vadd.f32 0.0, %v1946
      %1948 = vmatmul.f32.gmra.mxu0 %v1381
      %v1949 = vpop.f32.mrf.mxu0
      %v1950 = vadd.f32 0.0, %v1949
      %1951 = vmatmul.f32.gmra.mxu0 %v633
      %v1952 = vpop.f32.mrf.mxu0
      %v1953 = vadd.f32 0.0, %v1952
      %1954 = vmatmul.f32.gmra.mxu0 %v635
      %v1955 = vpop.f32.mrf.mxu0
      %v1956 = vadd.f32 0.0, %v1955
      %1957 = vdwg.mxu0
      %v1958 = vadd.f32 %v1808, %v1863
      %v1959 = vadd.f32 %v1809, %v1866
      %v1960 = vadd.f32 %v1810, %v1869
      %v1961 = vadd.f32 %v1811, %v1872
      %v1962 = vadd.f32 %v1812, %v1875
      %v1963 = vadd.f32 %v1813, %v1878
      %v1964 = vadd.f32 %v1814, %v1881
      %v1965 = vadd.f32 %v1815, %v1884
      %v1966 = vadd.f32 %v1816, %v1887
      %v1967 = vadd.f32 %v1817, %v1890
      %v1968 = vadd.f32 %v1818, %v1893
      %v1969 = vadd.f32 %v1819, %v1896
      %v1970 = vadd.f32 %v1820, %v1899
      %v1971 = vadd.f32 %v1821, %v1902
      %v1972 = vadd.f32 %v1822, %v1905
      %v1973 = vadd.f32 %v1823, %v1908
      %v1974 = vadd.f32 %v1824, %v1911
      %v1975 = vadd.f32 %v1825, %v1914
      %v1976 = vadd.f32 %v1826, %v1917
      %v1977 = vadd.f32 %v1827, %v1920
      %v1978 = vadd.f32 %v1828, %v1923
      %v1979 = vadd.f32 %v1829, %v1926
      %v1980 = vadd.f32 %v1830, %v1929
      %v1981 = vadd.f32 %v1831, %v1932
      %v1982 = vadd.f32 %v1832, %v1935
      %v1983 = vadd.f32 %v1833, %v1938
      %v1984 = vadd.f32 %v1834, %v1941
      %v1985 = vadd.f32 %v1835, %v1944
      %v1986 = vadd.f32 %v1836, %v1947
      %v1987 = vadd.f32 %v1837, %v1950
      %v1988 = vadd.f32 %v1838, %v1953
      %v1989 = vadd.f32 %v1839, %v1956
      %s1990 = scalar_lea.vmem %s1, 32
      %v1991 = vld [vmem:[%s1990] sm:$0xf]
      %v1993 = vsel %vm637, %v1991, 0
      %1995 = vmatpush.msra.mxu0 0.0
      %1996 = vmatpush.msra.mxu0 0.0
      %1997 = vmatpush.msra.mxu0 0.0
      %1998 = vmatpush.msra.mxu0 0.0
      %1999 = vmatpush.msra.mxu0 0.0
      %2000 = vmatpush.msra.mxu0 0.0
      %2001 = vmatpush.msra.mxu0 0.0
      %2002 = vmatpush.msra.mxu0 0.0
      %2003 = vmatpush.msra.mxu0 0.0
      %2004 = vmatpush.msra.mxu0 0.0
      %2005 = vmatpush.msra.mxu0 0.0
      %2006 = vmatpush.msra.mxu0 0.0
      %2007 = vmatpush.msra.mxu0 0.0
      %2008 = vmatpush.msra.mxu0 0.0
      %2009 = vmatpush.msra.mxu0 0.0
      %2010 = vmatpush.msra.mxu0 %v1993
      %2011 = vmatmul.f32.gmra.mxu0 %v1008
      %v2012 = vpop.f32.mrf.mxu0
      %v2013 = vadd.f32 0.0, %v2012
      %2014 = vmatmul.f32.gmra.mxu0 %v1010
      %v2015 = vpop.f32.mrf.mxu0
      %v2016 = vadd.f32 0.0, %v2015
      %2017 = vmatmul.f32.gmra.mxu0 %v1016
      %v2018 = vpop.f32.mrf.mxu0
      %v2019 = vadd.f32 0.0, %v2018
      %2020 = vmatmul.f32.gmra.mxu0 %v1018
      %v2021 = vpop.f32.mrf.mxu0
      %v2022 = vadd.f32 0.0, %v2021
      %2023 = vmatmul.f32.gmra.mxu0 %v1020
      %v2024 = vpop.f32.mrf.mxu0
      %v2025 = vadd.f32 0.0, %v2024
      %2026 = vmatmul.f32.gmra.mxu0 %v1022
      %v2027 = vpop.f32.mrf.mxu0
      %v2028 = vadd.f32 0.0, %v2027
      %2029 = vmatmul.f32.gmra.mxu0 %v1024
      %v2030 = vpop.f32.mrf.mxu0
      %v2031 = vadd.f32 0.0, %v2030
      %2032 = vmatmul.f32.gmra.mxu0 %v1026
      %v2033 = vpop.f32.mrf.mxu0
      %v2034 = vadd.f32 0.0, %v2033
      %2035 = vmatmul.f32.gmra.mxu0 %v1028
      %v2036 = vpop.f32.mrf.mxu0
      %v2037 = vadd.f32 0.0, %v2036
      %2038 = vmatmul.f32.gmra.mxu0 %v1030
      %v2039 = vpop.f32.mrf.mxu0
      %v2040 = vadd.f32 0.0, %v2039
      %2041 = vmatmul.f32.gmra.mxu0 %v1032
      %v2042 = vpop.f32.mrf.mxu0
      %v2043 = vadd.f32 0.0, %v2042
      %2044 = vmatmul.f32.gmra.mxu0 %v1034
      %v2045 = vpop.f32.mrf.mxu0
      %v2046 = vadd.f32 0.0, %v2045
      %2047 = vmatmul.f32.gmra.mxu0 %v1036
      %v2048 = vpop.f32.mrf.mxu0
      %v2049 = vadd.f32 0.0, %v2048
      %2050 = vmatmul.f32.gmra.mxu0 %v1038
      %v2051 = vpop.f32.mrf.mxu0
      %v2052 = vadd.f32 0.0, %v2051
      %2053 = vmatmul.f32.gmra.mxu0 %v1040
      %v2054 = vpop.f32.mrf.mxu0
      %v2055 = vadd.f32 0.0, %v2054
      %2056 = vmatmul.f32.gmra.mxu0 %v1042
      %v2057 = vpop.f32.mrf.mxu0
      %v2058 = vadd.f32 0.0, %v2057
      %2059 = vmatmul.f32.gmra.mxu0 %v1044
      %v2060 = vpop.f32.mrf.mxu0
      %v2061 = vadd.f32 0.0, %v2060
      %2062 = vmatmul.f32.gmra.mxu0 %v1046
      %v2063 = vpop.f32.mrf.mxu0
      %v2064 = vadd.f32 0.0, %v2063
      %2065 = vmatmul.f32.gmra.mxu0 %v1048
      %v2066 = vpop.f32.mrf.mxu0
      %v2067 = vadd.f32 0.0, %v2066
      %2068 = vmatmul.f32.gmra.mxu0 %v1050
      %v2069 = vpop.f32.mrf.mxu0
      %v2070 = vadd.f32 0.0, %v2069
      %2071 = vmatmul.f32.gmra.mxu0 %v1052
      %v2072 = vpop.f32.mrf.mxu0
      %v2073 = vadd.f32 0.0, %v2072
      %2074 = vmatmul.f32.gmra.mxu0 %v1054
      %v2075 = vpop.f32.mrf.mxu0
      %v2076 = vadd.f32 0.0, %v2075
      %2077 = vmatmul.f32.gmra.mxu0 %v1056
      %v2078 = vpop.f32.mrf.mxu0
      %v2079 = vadd.f32 0.0, %v2078
      %2080 = vmatmul.f32.gmra.mxu0 %v1058
      %v2081 = vpop.f32.mrf.mxu0
      %v2082 = vadd.f32 0.0, %v2081
      %2083 = vmatmul.f32.gmra.mxu0 %v1060
      %v2084 = vpop.f32.mrf.mxu0
      %v2085 = vadd.f32 0.0, %v2084
      %2086 = vmatmul.f32.gmra.mxu0 %v1062
      %v2087 = vpop.f32.mrf.mxu0
      %v2088 = vadd.f32 0.0, %v2087
      %2089 = vmatmul.f32.gmra.mxu0 %v1064
      %v2090 = vpop.f32.mrf.mxu0
      %v2091 = vadd.f32 0.0, %v2090
      %2092 = vmatmul.f32.gmra.mxu0 %v1066
      %v2093 = vpop.f32.mrf.mxu0
      %v2094 = vadd.f32 0.0, %v2093
      %2095 = vmatmul.f32.gmra.mxu0 %v1538
      %v2096 = vpop.f32.mrf.mxu0
      %v2097 = vadd.f32 0.0, %v2096
      %2098 = vmatmul.f32.gmra.mxu0 %v1540
      %v2099 = vpop.f32.mrf.mxu0
      %v2100 = vadd.f32 0.0, %v2099
      %2101 = vmatmul.f32.gmra.mxu0 %v1064
      %v2102 = vpop.f32.mrf.mxu0
      %v2103 = vadd.f32 0.0, %v2102
      %2104 = vmatmul.f32.gmra.mxu0 %v1066
      %v2105 = vpop.f32.mrf.mxu0
      %v2106 = vadd.f32 0.0, %v2105
      %2107 = vdwg.mxu0
      %v2108 = vadd.f32 %v1958, %v2013
      %v2109 = vadd.f32 %v1959, %v2016
      %v2110 = vadd.f32 %v1960, %v2019
      %v2111 = vadd.f32 %v1961, %v2022
      %v2112 = vadd.f32 %v1962, %v2025
      %v2113 = vadd.f32 %v1963, %v2028
      %v2114 = vadd.f32 %v1964, %v2031
      %v2115 = vadd.f32 %v1965, %v2034
      %v2116 = vadd.f32 %v1966, %v2037
      %v2117 = vadd.f32 %v1967, %v2040
      %v2118 = vadd.f32 %v1968, %v2043
      %v2119 = vadd.f32 %v1969, %v2046
      %v2120 = vadd.f32 %v1970, %v2049
      %v2121 = vadd.f32 %v1971, %v2052
      %v2122 = vadd.f32 %v1972, %v2055
      %v2123 = vadd.f32 %v1973, %v2058
      %v2124 = vadd.f32 %v1974, %v2061
      %v2125 = vadd.f32 %v1975, %v2064
      %v2126 = vadd.f32 %v1976, %v2067
      %v2127 = vadd.f32 %v1977, %v2070
      %v2128 = vadd.f32 %v1978, %v2073
      %v2129 = vadd.f32 %v1979, %v2076
      %v2130 = vadd.f32 %v1980, %v2079
      %v2131 = vadd.f32 %v1981, %v2082
      %v2132 = vadd.f32 %v1982, %v2085
      %v2133 = vadd.f32 %v1983, %v2088
      %v2134 = vadd.f32 %v1984, %v2091
      %v2135 = vadd.f32 %v1985, %v2094
      %v2136 = vadd.f32 %v1986, %v2097
      %v2137 = vadd.f32 %v1987, %v2100
      %v2138 = vadd.f32 %v1988, %v2103
      %v2139 = vadd.f32 %v1989, %v2106
      %v2141 = vperm.slane %v466, 0
      %v2143 = vadd.f32 %v2108, %v2141
      %v2144 = vadd.f32 %v2109, %v2141
      %v2145 = vadd.f32 %v2110, %v2141
      %v2146 = vadd.f32 %v2111, %v2141
      %v2147 = vadd.f32 %v2112, %v2141
      %v2148 = vadd.f32 %v2113, %v2141
      %v2149 = vadd.f32 %v2114, %v2141
      %v2150 = vadd.f32 %v2115, %v2141
      %v2151 = vadd.f32 %v2116, %v2141
      %v2152 = vadd.f32 %v2117, %v2141
      %v2153 = vadd.f32 %v2118, %v2141
      %v2154 = vadd.f32 %v2119, %v2141
      %v2155 = vadd.f32 %v2120, %v2141
      %v2156 = vadd.f32 %v2121, %v2141
      %v2157 = vadd.f32 %v2122, %v2141
      %v2158 = vadd.f32 %v2123, %v2141
      %v2159 = vadd.f32 %v2124, %v2141
      %v2160 = vadd.f32 %v2125, %v2141
      %v2161 = vadd.f32 %v2126, %v2141
      %v2162 = vadd.f32 %v2127, %v2141
      %v2163 = vadd.f32 %v2128, %v2141
      %v2164 = vadd.f32 %v2129, %v2141
      %v2165 = vadd.f32 %v2130, %v2141
      %v2166 = vadd.f32 %v2131, %v2141
      %v2167 = vadd.f32 %v2132, %v2141
      %v2168 = vadd.f32 %v2133, %v2141
      %v2169 = vadd.f32 %v2134, %v2141
      %v2170 = vadd.f32 %v2135, %v2141
      %v2171 = vadd.f32 %v2136, %v2141
      %v2172 = vadd.f32 %v2137, %v2141
      %v2173 = vadd.f32 %v2138, %v2141
      %v2174 = vadd.f32 %v2139, %v2141
      %v2175 = vsel %vm576, %v2143, 0.0
      %v2176 = vsel %vm576, %v2144, 0.0
      %v2177 = vadd.f32 %v2175, %v2176
      %v2178 = vsel %vm576, %v2145, 0.0
      %v2179 = vadd.f32 %v2177, %v2178
      %v2180 = vsel %vm576, %v2146, 0.0
      %v2181 = vadd.f32 %v2179, %v2180
      %v2182 = vsel %vm576, %v2147, 0.0
      %v2183 = vadd.f32 %v2181, %v2182
      %v2184 = vsel %vm576, %v2148, 0.0
      %v2185 = vadd.f32 %v2183, %v2184
      %v2186 = vsel %vm576, %v2149, 0.0
      %v2187 = vadd.f32 %v2185, %v2186
      %v2188 = vsel %vm576, %v2150, 0.0
      %v2189 = vadd.f32 %v2187, %v2188
      %v2190 = vsel %vm576, %v2151, 0.0
      %v2191 = vadd.f32 %v2189, %v2190
      %v2192 = vsel %vm576, %v2152, 0.0
      %v2193 = vadd.f32 %v2191, %v2192
      %v2194 = vsel %vm576, %v2153, 0.0
      %v2195 = vadd.f32 %v2193, %v2194
      %v2196 = vsel %vm576, %v2154, 0.0
      %v2197 = vadd.f32 %v2195, %v2196
      %v2198 = vsel %vm576, %v2155, 0.0
      %v2199 = vadd.f32 %v2197, %v2198
      %v2200 = vsel %vm576, %v2156, 0.0
      %v2201 = vadd.f32 %v2199, %v2200
      %v2202 = vsel %vm576, %v2157, 0.0
      %v2203 = vadd.f32 %v2201, %v2202
      %v2204 = vsel %vm576, %v2158, 0.0
      %v2205 = vadd.f32 %v2203, %v2204
      %v2206 = vsel %vm576, %v2159, 0.0
      %v2207 = vadd.f32 %v2205, %v2206
      %v2208 = vsel %vm576, %v2160, 0.0
      %v2209 = vadd.f32 %v2207, %v2208
      %v2210 = vsel %vm576, %v2161, 0.0
      %v2211 = vadd.f32 %v2209, %v2210
      %v2212 = vsel %vm576, %v2162, 0.0
      %v2213 = vadd.f32 %v2211, %v2212
      %v2214 = vsel %vm576, %v2163, 0.0
      %v2215 = vadd.f32 %v2213, %v2214
      %v2216 = vsel %vm576, %v2164, 0.0
      %v2217 = vadd.f32 %v2215, %v2216
      %v2218 = vsel %vm576, %v2165, 0.0
      %v2219 = vadd.f32 %v2217, %v2218
      %v2220 = vsel %vm576, %v2166, 0.0
      %v2221 = vadd.f32 %v2219, %v2220
      %v2222 = vsel %vm576, %v2167, 0.0
      %v2223 = vadd.f32 %v2221, %v2222
      %v2224 = vsel %vm576, %v2168, 0.0
      %v2225 = vadd.f32 %v2223, %v2224
      %v2226 = vsel %vm576, %v2169, 0.0
      %v2227 = vadd.f32 %v2225, %v2226
      %v2228 = vsel %vm576, %v2170, 0.0
      %v2229 = vadd.f32 %v2227, %v2228
      %v2230 = vsel %vm576, %v2171, 0.0
      %v2231 = vadd.f32 %v2229, %v2230
      %v2232 = vsel %vm576, %v2172, 0.0
      %v2233 = vadd.f32 %v2231, %v2232
      %v2234 = vsel %vm576, %v2173, 0.0
      %v2235 = vadd.f32 %v2233, %v2234
      %v2236 = vsel %vm576, %v2174, 0.0
      %v2237 = vadd.f32 %v2235, %v2236
      %v2238 = vrot.slane %v2237, 4
      %v2239 = vadd.f32 %v2237, %v2238
      %v2240 = vrot.slane %v2239, 2
      %v2241 = vadd.f32 %v2239, %v2240
      %v2242 = vrot.slane %v2241, 1
      %v2243 = vadd.f32 %v2241, %v2242
      %v2244 = vmul.f32 %v2243, 0.00390625
      %v2245 = vmul.f32 %v2143, %v2143
      %v2246 = vmul.f32 %v2144, %v2144
      %v2247 = vmul.f32 %v2145, %v2145
      %v2248 = vmul.f32 %v2146, %v2146
      %v2249 = vmul.f32 %v2147, %v2147
      %v2250 = vmul.f32 %v2148, %v2148
      %v2251 = vmul.f32 %v2149, %v2149
      %v2252 = vmul.f32 %v2150, %v2150
      %v2253 = vmul.f32 %v2151, %v2151
      %v2254 = vmul.f32 %v2152, %v2152
      %v2255 = vmul.f32 %v2153, %v2153
      %v2256 = vmul.f32 %v2154, %v2154
      %v2257 = vmul.f32 %v2155, %v2155
      %v2258 = vmul.f32 %v2156, %v2156
      %v2259 = vmul.f32 %v2157, %v2157
      %v2260 = vmul.f32 %v2158, %v2158
      %v2261 = vmul.f32 %v2159, %v2159
      %v2262 = vmul.f32 %v2160, %v2160
      %v2263 = vmul.f32 %v2161, %v2161
      %v2264 = vmul.f32 %v2162, %v2162
      %v2265 = vmul.f32 %v2163, %v2163
      %v2266 = vmul.f32 %v2164, %v2164
      %v2267 = vmul.f32 %v2165, %v2165
      %v2268 = vmul.f32 %v2166, %v2166
      %v2269 = vmul.f32 %v2167, %v2167
      %v2270 = vmul.f32 %v2168, %v2168
      %v2271 = vmul.f32 %v2169, %v2169
      %v2272 = vmul.f32 %v2170, %v2170
      %v2273 = vmul.f32 %v2171, %v2171
      %v2274 = vmul.f32 %v2172, %v2172
      %v2275 = vmul.f32 %v2173, %v2173
      %v2276 = vmul.f32 %v2174, %v2174
      %v2277 = vsel %vm576, %v2245, 0.0
      %v2278 = vsel %vm576, %v2246, 0.0
      %v2279 = vadd.f32 %v2277, %v2278
      %v2280 = vsel %vm576, %v2247, 0.0
      %v2281 = vadd.f32 %v2279, %v2280
      %v2282 = vsel %vm576, %v2248, 0.0
      %v2283 = vadd.f32 %v2281, %v2282
      %v2284 = vsel %vm576, %v2249, 0.0
      %v2285 = vadd.f32 %v2283, %v2284
      %v2286 = vsel %vm576, %v2250, 0.0
      %v2287 = vadd.f32 %v2285, %v2286
      %v2288 = vsel %vm576, %v2251, 0.0
      %v2289 = vadd.f32 %v2287, %v2288
      %v2290 = vsel %vm576, %v2252, 0.0
      %v2291 = vadd.f32 %v2289, %v2290
      %v2292 = vsel %vm576, %v2253, 0.0
      %v2293 = vadd.f32 %v2291, %v2292
      %v2294 = vsel %vm576, %v2254, 0.0
      %v2295 = vadd.f32 %v2293, %v2294
      %v2296 = vsel %vm576, %v2255, 0.0
      %v2297 = vadd.f32 %v2295, %v2296
      %v2298 = vsel %vm576, %v2256, 0.0
      %v2299 = vadd.f32 %v2297, %v2298
      %v2300 = vsel %vm576, %v2257, 0.0
      %v2301 = vadd.f32 %v2299, %v2300
      %v2302 = vsel %vm576, %v2258, 0.0
      %v2303 = vadd.f32 %v2301, %v2302
      %v2304 = vsel %vm576, %v2259, 0.0
      %v2305 = vadd.f32 %v2303, %v2304
      %v2306 = vsel %vm576, %v2260, 0.0
      %v2307 = vadd.f32 %v2305, %v2306
      %v2308 = vsel %vm576, %v2261, 0.0
      %v2309 = vadd.f32 %v2307, %v2308
      %v2310 = vsel %vm576, %v2262, 0.0
      %v2311 = vadd.f32 %v2309, %v2310
      %v2312 = vsel %vm576, %v2263, 0.0
      %v2313 = vadd.f32 %v2311, %v2312
      %v2314 = vsel %vm576, %v2264, 0.0
      %v2315 = vadd.f32 %v2313, %v2314
      %v2316 = vsel %vm576, %v2265, 0.0
      %v2317 = vadd.f32 %v2315, %v2316
      %v2318 = vsel %vm576, %v2266, 0.0
      %v2319 = vadd.f32 %v2317, %v2318
      %v2320 = vsel %vm576, %v2267, 0.0
      %v2321 = vadd.f32 %v2319, %v2320
      %v2322 = vsel %vm576, %v2268, 0.0
      %v2323 = vadd.f32 %v2321, %v2322
      %v2324 = vsel %vm576, %v2269, 0.0
      %v2325 = vadd.f32 %v2323, %v2324
      %v2326 = vsel %vm576, %v2270, 0.0
      %v2327 = vadd.f32 %v2325, %v2326
      %v2328 = vsel %vm576, %v2271, 0.0
      %v2329 = vadd.f32 %v2327, %v2328
      %v2330 = vsel %vm576, %v2272, 0.0
      %v2331 = vadd.f32 %v2329, %v2330
      %v2332 = vsel %vm576, %v2273, 0.0
      %v2333 = vadd.f32 %v2331, %v2332
      %v2334 = vsel %vm576, %v2274, 0.0
      %v2335 = vadd.f32 %v2333, %v2334
      %v2336 = vsel %vm576, %v2275, 0.0
      %v2337 = vadd.f32 %v2335, %v2336
      %v2338 = vsel %vm576, %v2276, 0.0
      %v2339 = vadd.f32 %v2337, %v2338
      %v2340 = vrot.slane %v2339, 4
      %v2341 = vadd.f32 %v2339, %v2340
      %v2342 = vrot.slane %v2341, 2
      %v2343 = vadd.f32 %v2341, %v2342
      %v2344 = vrot.slane %v2343, 1
      %v2345 = vadd.f32 %v2343, %v2344
      %v2346 = vmul.f32 %v2345, 0.00390625
      %v2347 = vmul.f32 %v2244, %v2244
      %v2348 = vsub.f32 %v2346, %v2347
      %v2349 = vsub.f32 %v2143, %v2244
      %v2350 = vsub.f32 %v2144, %v2244
      %v2351 = vsub.f32 %v2145, %v2244
      %v2352 = vsub.f32 %v2146, %v2244
      %v2353 = vsub.f32 %v2147, %v2244
      %v2354 = vsub.f32 %v2148, %v2244
      %v2355 = vsub.f32 %v2149, %v2244
      %v2356 = vsub.f32 %v2150, %v2244
      %v2357 = vsub.f32 %v2151, %v2244
      %v2358 = vsub.f32 %v2152, %v2244
      %v2359 = vsub.f32 %v2153, %v2244
      %v2360 = vsub.f32 %v2154, %v2244
      %v2361 = vsub.f32 %v2155, %v2244
      %v2362 = vsub.f32 %v2156, %v2244
      %v2363 = vsub.f32 %v2157, %v2244
      %v2364 = vsub.f32 %v2158, %v2244
      %v2365 = vsub.f32 %v2159, %v2244
      %v2366 = vsub.f32 %v2160, %v2244
      %v2367 = vsub.f32 %v2161, %v2244
      %v2368 = vsub.f32 %v2162, %v2244
      %v2369 = vsub.f32 %v2163, %v2244
      %v2370 = vsub.f32 %v2164, %v2244
      %v2371 = vsub.f32 %v2165, %v2244
      %v2372 = vsub.f32 %v2166, %v2244
      %v2373 = vsub.f32 %v2167, %v2244
      %v2374 = vsub.f32 %v2168, %v2244
      %v2375 = vsub.f32 %v2169, %v2244
      %v2376 = vsub.f32 %v2170, %v2244
      %v2377 = vsub.f32 %v2171, %v2244
      %v2378 = vsub.f32 %v2172, %v2244
      %v2379 = vsub.f32 %v2173, %v2244
      %v2380 = vsub.f32 %v2174, %v2244
      %v2381 = vadd.f32 %v2348, 1e-05
      %v2382 = vrsqrt.pop %v2381
      %v2383 = vmul.f32 %v2382, %v2381
      %v2384 = vmul.f32 %v2383, %v2382
      %v2385 = vmul.f32 0.5, %v2384
      %v2386 = vsub.f32 1.5, %v2385
      %v2387 = vmul.f32 %v2382, %v2386
      %vm2388 = vweird.f32 %v2381
      %vm2389 = vweird.f32 %v2382
      %vm2390 = vmor %vm2388, %vm2389
      %v2391 = vsel %vm2390, %v2382, %v2387
      %v2392 = vmul.f32 %v2349, %v2391
      %v2393 = vmul.f32 %v2350, %v2391
      %v2394 = vmul.f32 %v2351, %v2391
      %v2395 = vmul.f32 %v2352, %v2391
      %v2396 = vmul.f32 %v2353, %v2391
      %v2397 = vmul.f32 %v2354, %v2391
      %v2398 = vmul.f32 %v2355, %v2391
      %v2399 = vmul.f32 %v2356, %v2391
      %v2400 = vmul.f32 %v2357, %v2391
      %v2401 = vmul.f32 %v2358, %v2391
      %v2402 = vmul.f32 %v2359, %v2391
      %v2403 = vmul.f32 %v2360, %v2391
      %v2404 = vmul.f32 %v2361, %v2391
      %v2405 = vmul.f32 %v2362, %v2391
      %v2406 = vmul.f32 %v2363, %v2391
      %v2407 = vmul.f32 %v2364, %v2391
      %v2408 = vmul.f32 %v2365, %v2391
      %v2409 = vmul.f32 %v2366, %v2391
      %v2410 = vmul.f32 %v2367, %v2391
      %v2411 = vmul.f32 %v2368, %v2391
      %v2412 = vmul.f32 %v2369, %v2391
      %v2413 = vmul.f32 %v2370, %v2391
      %v2414 = vmul.f32 %v2371, %v2391
      %v2415 = vmul.f32 %v2372, %v2391
      %v2416 = vmul.f32 %v2373, %v2391
      %v2417 = vmul.f32 %v2374, %v2391
      %v2418 = vmul.f32 %v2375, %v2391
      %v2419 = vmul.f32 %v2376, %v2391
      %v2420 = vmul.f32 %v2377, %v2391
      %v2421 = vmul.f32 %v2378, %v2391
      %v2422 = vmul.f32 %v2379, %v2391
      %v2423 = vmul.f32 %v2380, %v2391
      %v2424 = vmax.f32 %v2392, 0.0
      %v2425 = vmax.f32 %v2393, 0.0
      %v2426 = vmax.f32 %v2394, 0.0
      %v2427 = vmax.f32 %v2395, 0.0
      %v2428 = vmax.f32 %v2396, 0.0
      %v2429 = vmax.f32 %v2397, 0.0
      %v2430 = vmax.f32 %v2398, 0.0
      %v2431 = vmax.f32 %v2399, 0.0
      %v2432 = vmax.f32 %v2400, 0.0
      %v2433 = vmax.f32 %v2401, 0.0
      %v2434 = vmax.f32 %v2402, 0.0
      %v2435 = vmax.f32 %v2403, 0.0
      %v2436 = vmax.f32 %v2404, 0.0
      %v2437 = vmax.f32 %v2405, 0.0
      %v2438 = vmax.f32 %v2406, 0.0
      %v2439 = vmax.f32 %v2407, 0.0
      %v2440 = vmax.f32 %v2408, 0.0
      %v2441 = vmax.f32 %v2409, 0.0
      %v2442 = vmax.f32 %v2410, 0.0
      %v2443 = vmax.f32 %v2411, 0.0
      %v2444 = vmax.f32 %v2412, 0.0
      %v2445 = vmax.f32 %v2413, 0.0
      %v2446 = vmax.f32 %v2414, 0.0
      %v2447 = vmax.f32 %v2415, 0.0
      %v2448 = vmax.f32 %v2416, 0.0
      %v2449 = vmax.f32 %v2417, 0.0
      %v2450 = vmax.f32 %v2418, 0.0
      %v2451 = vmax.f32 %v2419, 0.0
      %v2452 = vmax.f32 %v2420, 0.0
      %v2453 = vmax.f32 %v2421, 0.0
      %v2454 = vmax.f32 %v2422, 0.0
      %v2455 = vmax.f32 %v2423, 0.0
      %v2472 = vrot.slane %v2426, 1
      %v2473 = vrot.slane %v2424, 1
      %v2474 = vrot.slane %v2428, 1
      %v2475 = vrot.slane %v2430, 1
      %v2476 = vrot.slane %v2432, 1
      %v2477 = vrot.slane %v2434, 1
      %v2478 = vrot.slane %v2436, 1
      %v2479 = vrot.slane %v2438, 1
      %v2480 = vrot.slane %v2440, 1
      %v2481 = vrot.slane %v2442, 1
      %v2482 = vrot.slane %v2444, 1
      %v2483 = vrot.slane %v2446, 1
      %v2484 = vrot.slane %v2448, 1
      %v2485 = vrot.slane %v2450, 1
      %v2486 = vrot.slane %v2452, 1
      %v2487 = vrot.slane %v2454, 1
      %v2520 = vrot.slane %v2426, 7
      %v2521 = vrot.slane %v2427, 7
      %v2522 = vsel %vm321, %v2520, %v2521
      %v2523 = vrot.slane %v2424, 7
      %v2524 = vrot.slane %v2425, 7
      %v2525 = vsel %vm321, %v2523, %v2524
      %v2526 = vrot.slane %v2428, 7
      %v2527 = vrot.slane %v2429, 7
      %v2528 = vsel %vm321, %v2526, %v2527
      %v2529 = vrot.slane %v2430, 7
      %v2530 = vrot.slane %v2431, 7
      %v2531 = vsel %vm321, %v2529, %v2530
      %v2532 = vrot.slane %v2432, 7
      %v2533 = vrot.slane %v2433, 7
      %v2534 = vsel %vm321, %v2532, %v2533
      %v2535 = vrot.slane %v2434, 7
      %v2536 = vrot.slane %v2435, 7
      %v2537 = vsel %vm321, %v2535, %v2536
      %v2538 = vrot.slane %v2436, 7
      %v2539 = vrot.slane %v2437, 7
      %v2540 = vsel %vm321, %v2538, %v2539
      %v2541 = vrot.slane %v2438, 7
      %v2542 = vrot.slane %v2439, 7
      %v2543 = vsel %vm321, %v2541, %v2542
      %v2544 = vrot.slane %v2440, 7
      %v2545 = vrot.slane %v2441, 7
      %v2546 = vsel %vm321, %v2544, %v2545
      %v2547 = vrot.slane %v2442, 7
      %v2548 = vrot.slane %v2443, 7
      %v2549 = vsel %vm321, %v2547, %v2548
      %v2550 = vrot.slane %v2444, 7
      %v2551 = vrot.slane %v2445, 7
      %v2552 = vsel %vm321, %v2550, %v2551
      %v2553 = vrot.slane %v2446, 7
      %v2554 = vrot.slane %v2447, 7
      %v2555 = vsel %vm321, %v2553, %v2554
      %v2556 = vrot.slane %v2448, 7
      %v2557 = vrot.slane %v2449, 7
      %v2558 = vsel %vm321, %v2556, %v2557
      %v2559 = vrot.slane %v2450, 7
      %v2560 = vrot.slane %v2451, 7
      %v2561 = vsel %vm321, %v2559, %v2560
      %v2562 = vrot.slane %v2452, 7
      %v2563 = vrot.slane %v2453, 7
      %v2564 = vsel %vm321, %v2562, %v2563
      %v2565 = vrot.slane %v2454, 7
      %v2566 = vrot.slane %v2455, 7
      %v2567 = vsel %vm321, %v2565, %v2566
      %v2600 = vrot.slane %v2427, 5
      %v2601 = vrot.slane %v2425, 5
      %v2602 = vrot.slane %v2429, 5
      %v2603 = vrot.slane %v2431, 5
      %v2604 = vrot.slane %v2433, 5
      %v2605 = vrot.slane %v2435, 5
      %v2606 = vrot.slane %v2437, 5
      %v2607 = vrot.slane %v2439, 5
      %v2608 = vrot.slane %v2441, 5
      %v2609 = vrot.slane %v2443, 5
      %v2610 = vrot.slane %v2445, 5
      %v2611 = vrot.slane %v2447, 5
      %v2612 = vrot.slane %v2449, 5
      %v2613 = vrot.slane %v2451, 5
      %v2614 = vrot.slane %v2453, 5
      %v2615 = vrot.slane %v2455, 5
      %v2632 = vsel %vm321, %v2472, %v2520
      %v2633 = vsel %vm321, %v2473, %v2523
      %v2634 = vsel %vm321, %v2474, %v2526
      %v2635 = vsel %vm321, %v2475, %v2529
      %v2636 = vsel %vm321, %v2476, %v2532
      %v2637 = vsel %vm321, %v2477, %v2535
      %v2638 = vsel %vm321, %v2478, %v2538
      %v2639 = vsel %vm321, %v2479, %v2541
      %v2640 = vsel %vm321, %v2480, %v2544
      %v2641 = vsel %vm321, %v2481, %v2547
      %v2642 = vsel %vm321, %v2482, %v2550
      %v2643 = vsel %vm321, %v2483, %v2553
      %v2644 = vsel %vm321, %v2484, %v2556
      %v2645 = vsel %vm321, %v2485, %v2559
      %v2646 = vsel %vm321, %v2486, %v2562
      %v2647 = vsel %vm321, %v2487, %v2565
      %v2648 = vsel %vm321, %v2521, %v2600
      %v2649 = vsel %vm321, %v2524, %v2601
      %v2650 = vsel %vm321, %v2527, %v2602
      %v2651 = vsel %vm321, %v2530, %v2603
      %v2652 = vsel %vm321, %v2533, %v2604
      %v2653 = vsel %vm321, %v2536, %v2605
      %v2654 = vsel %vm321, %v2539, %v2606
      %v2655 = vsel %vm321, %v2542, %v2607
      %v2656 = vsel %vm321, %v2545, %v2608
      %v2657 = vsel %vm321, %v2548, %v2609
      %v2658 = vsel %vm321, %v2551, %v2610
      %v2659 = vsel %vm321, %v2554, %v2611
      %v2660 = vsel %vm321, %v2557, %v2612
      %v2661 = vsel %vm321, %v2560, %v2613
      %v2662 = vsel %vm321, %v2563, %v2614
      %v2663 = vsel %vm321, %v2566, %v2615
      %v2664 = vld [vmem:[%s4] sm:$0x1]
      %v2665 = vld [vmem:[%s3] sm:$0xf]
      %s2666 = scalar_lea.vmem %s3, 4
      %v2667 = vld [vmem:[%s2666] sm:$0xf]
      %v2698 = vrot.slane %v2632, 1
      %v2699 = vrot.slane %v2522, 1
      %v2700 = vsel %vm500, %v2698, %v2699
      %v2701 = vrot.slane %v2648, 1
      %v2702 = vsel %vm500, %v2699, %v2701
      %v2703 = vrot.slane %v2633, 1
      %v2704 = vrot.slane %v2525, 1
      %v2705 = vsel %vm500, %v2703, %v2704
      %v2706 = vrot.slane %v2649, 1
      %v2707 = vsel %vm500, %v2704, %v2706
      %v2708 = vrot.slane %v2634, 1
      %v2709 = vrot.slane %v2528, 1
      %v2710 = vsel %vm500, %v2708, %v2709
      %v2711 = vrot.slane %v2650, 1
      %v2712 = vsel %vm500, %v2709, %v2711
      %v2713 = vrot.slane %v2635, 1
      %v2714 = vrot.slane %v2531, 1
      %v2715 = vsel %vm500, %v2713, %v2714
      %v2716 = vrot.slane %v2651, 1
      %v2717 = vsel %vm500, %v2714, %v2716
      %v2718 = vrot.slane %v2636, 1
      %v2719 = vrot.slane %v2534, 1
      %v2720 = vsel %vm500, %v2718, %v2719
      %v2721 = vrot.slane %v2652, 1
      %v2722 = vsel %vm500, %v2719, %v2721
      %v2723 = vrot.slane %v2637, 1
      %v2724 = vrot.slane %v2537, 1
      %v2725 = vsel %vm500, %v2723, %v2724
      %v2726 = vrot.slane %v2653, 1
      %v2727 = vsel %vm500, %v2724, %v2726
      %v2728 = vrot.slane %v2638, 1
      %v2729 = vrot.slane %v2540, 1
      %v2730 = vsel %vm500, %v2728, %v2729
      %v2731 = vrot.slane %v2654, 1
      %v2732 = vsel %vm500, %v2729, %v2731
      %v2733 = vrot.slane %v2639, 1
      %v2734 = vrot.slane %v2543, 1
      %v2735 = vsel %vm500, %v2733, %v2734
      %v2736 = vrot.slane %v2655, 1
      %v2737 = vsel %vm500, %v2734, %v2736
      %v2738 = vrot.slane %v2640, 1
      %v2739 = vrot.slane %v2546, 1
      %v2740 = vsel %vm500, %v2738, %v2739
      %v2741 = vrot.slane %v2656, 1
      %v2742 = vsel %vm500, %v2739, %v2741
      %v2743 = vrot.slane %v2641, 1
      %v2744 = vrot.slane %v2549, 1
      %v2745 = vsel %vm500, %v2743, %v2744
      %v2746 = vrot.slane %v2657, 1
      %v2747 = vsel %vm500, %v2744, %v2746
      %v2748 = vrot.slane %v2642, 1
      %v2749 = vrot.slane %v2552, 1
      %v2750 = vsel %vm500, %v2748, %v2749
      %v2751 = vrot.slane %v2658, 1
      %v2752 = vsel %vm500, %v2749, %v2751
      %v2753 = vrot.slane %v2643, 1
      %v2754 = vrot.slane %v2555, 1
      %v2755 = vsel %vm500, %v2753, %v2754
      %v2756 = vrot.slane %v2659, 1
      %v2757 = vsel %vm500, %v2754, %v2756
      %v2758 = vrot.slane %v2644, 1
      %v2759 = vrot.slane %v2558, 1
      %v2760 = vsel %vm500, %v2758, %v2759
      %v2761 = vrot.slane %v2660, 1
      %v2762 = vsel %vm500, %v2759, %v2761
      %v2763 = vrot.slane %v2645, 1
      %v2764 = vrot.slane %v2561, 1
      %v2765 = vsel %vm500, %v2763, %v2764
      %v2766 = vrot.slane %v2661, 1
      %v2767 = vsel %vm500, %v2764, %v2766
      %v2768 = vrot.slane %v2646, 1
      %v2769 = vrot.slane %v2564, 1
      %v2770 = vsel %vm500, %v2768, %v2769
      %v2771 = vrot.slane %v2662, 1
      %v2772 = vsel %vm500, %v2769, %v2771
      %v2773 = vsel %vm576, %v2700, 0
      %v2775 = vsel %vm576, %v2702, 0
      %v2777 = vsel %vm576, %v2705, 0
      %v2779 = vsel %vm576, %v2707, 0
      %v2781 = vsel %vm576, %v2710, 0
      %v2783 = vsel %vm576, %v2712, 0
      %v2785 = vsel %vm576, %v2715, 0
      %v2787 = vsel %vm576, %v2717, 0
      %v2789 = vsel %vm576, %v2720, 0
      %v2791 = vsel %vm576, %v2722, 0
      %v2793 = vsel %vm576, %v2725, 0
      %v2795 = vsel %vm576, %v2727, 0
      %v2797 = vsel %vm576, %v2730, 0
      %v2799 = vsel %vm576, %v2732, 0
      %v2801 = vsel %vm576, %v2735, 0
      %v2803 = vsel %vm576, %v2737, 0
      %v2805 = vsel %vm576, %v2740, 0
      %v2807 = vsel %vm576, %v2742, 0
      %v2809 = vsel %vm576, %v2745, 0
      %v2811 = vsel %vm576, %v2747, 0
      %v2813 = vsel %vm576, %v2750, 0
      %v2815 = vsel %vm576, %v2752, 0
      %v2817 = vsel %vm576, %v2755, 0
      %v2819 = vsel %vm576, %v2757, 0
      %v2821 = vsel %vm576, %v2760, 0
      %v2823 = vsel %vm576, %v2762, 0
      %v2825 = vsel %vm576, %v2765, 0
      %v2827 = vsel %vm576, %v2767, 0
      %v2829 = vsel %vm576, %v2770, 0
      %v2831 = vsel %vm576, %v2772, 0
      %v2834 = vsel %vm637, %v2667, 0
      %2836 = vmatpush.msra.mxu0 0.0
      %2837 = vmatpush.msra.mxu0 0.0
      %2838 = vmatpush.msra.mxu0 0.0
      %2839 = vmatpush.msra.mxu0 0.0
      %2840 = vmatpush.msra.mxu0 0.0
      %2841 = vmatpush.msra.mxu0 0.0
      %2842 = vmatpush.msra.mxu0 0.0
      %2843 = vmatpush.msra.mxu0 0.0
      %2844 = vmatpush.msra.mxu0 0.0
      %2845 = vmatpush.msra.mxu0 0.0
      %2846 = vmatpush.msra.mxu0 0.0
      %2847 = vmatpush.msra.mxu0 0.0
      %2848 = vmatpush.msra.mxu0 0.0
      %2849 = vmatpush.msra.mxu0 0.0
      %2850 = vmatpush.msra.mxu0 0.0
      %2851 = vmatpush.msra.mxu0 %v2834
      %2852 = vmatmul.f32.gmra.mxu0 %v2773
      %v2853 = vpop.f32.mrf.mxu0
      %v2854 = vadd.f32 0.0, %v2853
      %2855 = vmatmul.f32.gmra.mxu0 %v2775
      %v2856 = vpop.f32.mrf.mxu0
      %v2857 = vadd.f32 0.0, %v2856
      %2858 = vmatmul.f32.gmra.mxu0 %v2777
      %v2859 = vpop.f32.mrf.mxu0
      %v2860 = vadd.f32 0.0, %v2859
      %2861 = vmatmul.f32.gmra.mxu0 %v2779
      %v2862 = vpop.f32.mrf.mxu0
      %v2863 = vadd.f32 0.0, %v2862
      %2864 = vmatmul.f32.gmra.mxu0 %v2773
      %v2865 = vpop.f32.mrf.mxu0
      %v2866 = vadd.f32 0.0, %v2865
      %2867 = vmatmul.f32.gmra.mxu0 %v2775
      %v2868 = vpop.f32.mrf.mxu0
      %v2869 = vadd.f32 0.0, %v2868
      %2870 = vmatmul.f32.gmra.mxu0 %v2781
      %v2871 = vpop.f32.mrf.mxu0
      %v2872 = vadd.f32 0.0, %v2871
      %2873 = vmatmul.f32.gmra.mxu0 %v2783
      %v2874 = vpop.f32.mrf.mxu0
      %v2875 = vadd.f32 0.0, %v2874
      %2876 = vmatmul.f32.gmra.mxu0 %v2785
      %v2877 = vpop.f32.mrf.mxu0
      %v2878 = vadd.f32 0.0, %v2877
      %2879 = vmatmul.f32.gmra.mxu0 %v2787
      %v2880 = vpop.f32.mrf.mxu0
      %v2881 = vadd.f32 0.0, %v2880
      %2882 = vmatmul.f32.gmra.mxu0 %v2789
      %v2883 = vpop.f32.mrf.mxu0
      %v2884 = vadd.f32 0.0, %v2883
      %2885 = vmatmul.f32.gmra.mxu0 %v2791
      %v2886 = vpop.f32.mrf.mxu0
      %v2887 = vadd.f32 0.0, %v2886
      %2888 = vmatmul.f32.gmra.mxu0 %v2793
      %v2889 = vpop.f32.mrf.mxu0
      %v2890 = vadd.f32 0.0, %v2889
      %2891 = vmatmul.f32.gmra.mxu0 %v2795
      %v2892 = vpop.f32.mrf.mxu0
      %v2893 = vadd.f32 0.0, %v2892
      %2894 = vmatmul.f32.gmra.mxu0 %v2797
      %v2895 = vpop.f32.mrf.mxu0
      %v2896 = vadd.f32 0.0, %v2895
      %2897 = vmatmul.f32.gmra.mxu0 %v2799
      %v2898 = vpop.f32.mrf.mxu0
      %v2899 = vadd.f32 0.0, %v2898
      %2900 = vmatmul.f32.gmra.mxu0 %v2801
      %v2901 = vpop.f32.mrf.mxu0
      %v2902 = vadd.f32 0.0, %v2901
      %2903 = vmatmul.f32.gmra.mxu0 %v2803
      %v2904 = vpop.f32.mrf.mxu0
      %v2905 = vadd.f32 0.0, %v2904
      %2906 = vmatmul.f32.gmra.mxu0 %v2805
      %v2907 = vpop.f32.mrf.mxu0
      %v2908 = vadd.f32 0.0, %v2907
      %2909 = vmatmul.f32.gmra.mxu0 %v2807
      %v2910 = vpop.f32.mrf.mxu0
      %v2911 = vadd.f32 0.0, %v2910
      %2912 = vmatmul.f32.gmra.mxu0 %v2809
      %v2913 = vpop.f32.mrf.mxu0
      %v2914 = vadd.f32 0.0, %v2913
      %2915 = vmatmul.f32.gmra.mxu0 %v2811
      %v2916 = vpop.f32.mrf.mxu0
      %v2917 = vadd.f32 0.0, %v2916
      %2918 = vmatmul.f32.gmra.mxu0 %v2813
      %v2919 = vpop.f32.mrf.mxu0
      %v2920 = vadd.f32 0.0, %v2919
      %2921 = vmatmul.f32.gmra.mxu0 %v2815
      %v2922 = vpop.f32.mrf.mxu0
      %v2923 = vadd.f32 0.0, %v2922
      %2924 = vmatmul.f32.gmra.mxu0 %v2817
      %v2925 = vpop.f32.mrf.mxu0
      %v2926 = vadd.f32 0.0, %v2925
      %2927 = vmatmul.f32.gmra.mxu0 %v2819
      %v2928 = vpop.f32.mrf.mxu0
      %v2929 = vadd.f32 0.0, %v2928
      %2930 = vmatmul.f32.gmra.mxu0 %v2821
      %v2931 = vpop.f32.mrf.mxu0
      %v2932 = vadd.f32 0.0, %v2931
      %2933 = vmatmul.f32.gmra.mxu0 %v2823
      %v2934 = vpop.f32.mrf.mxu0
      %v2935 = vadd.f32 0.0, %v2934
      %2936 = vmatmul.f32.gmra.mxu0 %v2825
      %v2937 = vpop.f32.mrf.mxu0
      %v2938 = vadd.f32 0.0, %v2937
      %2939 = vmatmul.f32.gmra.mxu0 %v2827
      %v2940 = vpop.f32.mrf.mxu0
      %v2941 = vadd.f32 0.0, %v2940
      %2942 = vmatmul.f32.gmra.mxu0 %v2829
      %v2943 = vpop.f32.mrf.mxu0
      %v2944 = vadd.f32 0.0, %v2943
      %2945 = vmatmul.f32.gmra.mxu0 %v2831
      %v2946 = vpop.f32.mrf.mxu0
      %v2947 = vadd.f32 0.0, %v2946
      %2948 = vdwg.mxu0
      %v2949 = vsel %vm576, %v2632, 0
      %v2951 = vsel %vm576, %v2522, 0
      %v2953 = vsel %vm576, %v2633, 0
      %v2955 = vsel %vm576, %v2525, 0
      %v2957 = vsel %vm576, %v2634, 0
      %v2959 = vsel %vm576, %v2528, 0
      %v2961 = vsel %vm576, %v2635, 0
      %v2963 = vsel %vm576, %v2531, 0
      %v2965 = vsel %vm576, %v2636, 0
      %v2967 = vsel %vm576, %v2534, 0
      %v2969 = vsel %vm576, %v2637, 0
      %v2971 = vsel %vm576, %v2537, 0
      %v2973 = vsel %vm576, %v2638, 0
      %v2975 = vsel %vm576, %v2540, 0
      %v2977 = vsel %vm576, %v2639, 0
      %v2979 = vsel %vm576, %v2543, 0
      %v2981 = vsel %vm576, %v2640, 0
      %v2983 = vsel %vm576, %v2546, 0
      %v2985 = vsel %vm576, %v2641, 0
      %v2987 = vsel %vm576, %v2549, 0
      %v2989 = vsel %vm576, %v2642, 0
      %v2991 = vsel %vm576, %v2552, 0
      %v2993 = vsel %vm576, %v2643, 0
      %v2995 = vsel %vm576, %v2555, 0
      %v2997 = vsel %vm576, %v2644, 0
      %v2999 = vsel %vm576, %v2558, 0
      %v3001 = vsel %vm576, %v2645, 0
      %v3003 = vsel %vm576, %v2561, 0
      %v3005 = vsel %vm576, %v2646, 0
      %v3007 = vsel %vm576, %v2564, 0
      %v3010 = vsel %vm637, %v2665, 0
      %3012 = vmatpush.msra.mxu0 0.0
      %3013 = vmatpush.msra.mxu0 0.0
      %3014 = vmatpush.msra.mxu0 0.0
      %3015 = vmatpush.msra.mxu0 0.0
      %3016 = vmatpush.msra.mxu0 0.0
      %3017 = vmatpush.msra.mxu0 0.0
      %3018 = vmatpush.msra.mxu0 0.0
      %3019 = vmatpush.msra.mxu0 0.0
      %3020 = vmatpush.msra.mxu0 0.0
      %3021 = vmatpush.msra.mxu0 0.0
      %3022 = vmatpush.msra.mxu0 0.0
      %3023 = vmatpush.msra.mxu0 0.0
      %3024 = vmatpush.msra.mxu0 0.0
      %3025 = vmatpush.msra.mxu0 0.0
      %3026 = vmatpush.msra.mxu0 0.0
      %3027 = vmatpush.msra.mxu0 %v3010
      %3028 = vmatmul.f32.gmra.mxu0 %v2949
      %v3029 = vpop.f32.mrf.mxu0
      %v3030 = vadd.f32 %v2854, %v3029
      %3031 = vmatmul.f32.gmra.mxu0 %v2951
      %v3032 = vpop.f32.mrf.mxu0
      %v3033 = vadd.f32 %v2857, %v3032
      %3034 = vmatmul.f32.gmra.mxu0 %v2953
      %v3035 = vpop.f32.mrf.mxu0
      %v3036 = vadd.f32 %v2860, %v3035
      %3037 = vmatmul.f32.gmra.mxu0 %v2955
      %v3038 = vpop.f32.mrf.mxu0
      %v3039 = vadd.f32 %v2863, %v3038
      %3040 = vmatmul.f32.gmra.mxu0 %v2949
      %v3041 = vpop.f32.mrf.mxu0
      %v3042 = vadd.f32 %v2866, %v3041
      %3043 = vmatmul.f32.gmra.mxu0 %v2951
      %v3044 = vpop.f32.mrf.mxu0
      %v3045 = vadd.f32 %v2869, %v3044
      %3046 = vmatmul.f32.gmra.mxu0 %v2957
      %v3047 = vpop.f32.mrf.mxu0
      %v3048 = vadd.f32 %v2872, %v3047
      %3049 = vmatmul.f32.gmra.mxu0 %v2959
      %v3050 = vpop.f32.mrf.mxu0
      %v3051 = vadd.f32 %v2875, %v3050
      %3052 = vmatmul.f32.gmra.mxu0 %v2961
      %v3053 = vpop.f32.mrf.mxu0
      %v3054 = vadd.f32 %v2878, %v3053
      %3055 = vmatmul.f32.gmra.mxu0 %v2963
      %v3056 = vpop.f32.mrf.mxu0
      %v3057 = vadd.f32 %v2881, %v3056
      %3058 = vmatmul.f32.gmra.mxu0 %v2965
      %v3059 = vpop.f32.mrf.mxu0
      %v3060 = vadd.f32 %v2884, %v3059
      %3061 = vmatmul.f32.gmra.mxu0 %v2967
      %v3062 = vpop.f32.mrf.mxu0
      %v3063 = vadd.f32 %v2887, %v3062
      %3064 = vmatmul.f32.gmra.mxu0 %v2969
      %v3065 = vpop.f32.mrf.mxu0
      %v3066 = vadd.f32 %v2890, %v3065
      %3067 = vmatmul.f32.gmra.mxu0 %v2971
      %v3068 = vpop.f32.mrf.mxu0
      %v3069 = vadd.f32 %v2893, %v3068
      %3070 = vmatmul.f32.gmra.mxu0 %v2973
      %v3071 = vpop.f32.mrf.mxu0
      %v3072 = vadd.f32 %v2896, %v3071
      %3073 = vmatmul.f32.gmra.mxu0 %v2975
      %v3074 = vpop.f32.mrf.mxu0
      %v3075 = vadd.f32 %v2899, %v3074
      %3076 = vmatmul.f32.gmra.mxu0 %v2977
      %v3077 = vpop.f32.mrf.mxu0
      %v3078 = vadd.f32 %v2902, %v3077
      %3079 = vmatmul.f32.gmra.mxu0 %v2979
      %v3080 = vpop.f32.mrf.mxu0
      %v3081 = vadd.f32 %v2905, %v3080
      %3082 = vmatmul.f32.gmra.mxu0 %v2981
      %v3083 = vpop.f32.mrf.mxu0
      %v3084 = vadd.f32 %v2908, %v3083
      %3085 = vmatmul.f32.gmra.mxu0 %v2983
      %v3086 = vpop.f32.mrf.mxu0
      %v3087 = vadd.f32 %v2911, %v3086
      %3088 = vmatmul.f32.gmra.mxu0 %v2985
      %v3089 = vpop.f32.mrf.mxu0
      %v3090 = vadd.f32 %v2914, %v3089
      %3091 = vmatmul.f32.gmra.mxu0 %v2987
      %v3092 = vpop.f32.mrf.mxu0
      %v3093 = vadd.f32 %v2917, %v3092
      %3094 = vmatmul.f32.gmra.mxu0 %v2989
      %v3095 = vpop.f32.mrf.mxu0
      %v3096 = vadd.f32 %v2920, %v3095
      %3097 = vmatmul.f32.gmra.mxu0 %v2991
      %v3098 = vpop.f32.mrf.mxu0
      %v3099 = vadd.f32 %v2923, %v3098
      %3100 = vmatmul.f32.gmra.mxu0 %v2993
      %v3101 = vpop.f32.mrf.mxu0
      %v3102 = vadd.f32 %v2926, %v3101
      %3103 = vmatmul.f32.gmra.mxu0 %v2995
      %v3104 = vpop.f32.mrf.mxu0
      %v3105 = vadd.f32 %v2929, %v3104
      %3106 = vmatmul.f32.gmra.mxu0 %v2997
      %v3107 = vpop.f32.mrf.mxu0
      %v3108 = vadd.f32 %v2932, %v3107
      %3109 = vmatmul.f32.gmra.mxu0 %v2999
      %v3110 = vpop.f32.mrf.mxu0
      %v3111 = vadd.f32 %v2935, %v3110
      %3112 = vmatmul.f32.gmra.mxu0 %v3001
      %v3113 = vpop.f32.mrf.mxu0
      %v3114 = vadd.f32 %v2938, %v3113
      %3115 = vmatmul.f32.gmra.mxu0 %v3003
      %v3116 = vpop.f32.mrf.mxu0
      %v3117 = vadd.f32 %v2941, %v3116
      %3118 = vmatmul.f32.gmra.mxu0 %v3005
      %v3119 = vpop.f32.mrf.mxu0
      %v3120 = vadd.f32 %v2944, %v3119
      %3121 = vmatmul.f32.gmra.mxu0 %v3007
      %v3122 = vpop.f32.mrf.mxu0
      %v3123 = vadd.f32 %v2947, %v3122
      %3124 = vdwg.mxu0
      %s3125 = scalar_lea.vmem %s3, 8
      %v3126 = vld [vmem:[%s3125] sm:$0xf]
      %v3127 = vrot.slane %v2632, 2
      %v3128 = vrot.slane %v2522, 2
      %v3129 = vsel %vm932, %v3127, %v3128
      %v3130 = vrot.slane %v2648, 2
      %v3131 = vsel %vm932, %v3128, %v3130
      %v3132 = vrot.slane %v2633, 2
      %v3133 = vrot.slane %v2525, 2
      %v3134 = vsel %vm932, %v3132, %v3133
      %v3135 = vrot.slane %v2649, 2
      %v3136 = vsel %vm932, %v3133, %v3135
      %v3137 = vrot.slane %v2634, 2
      %v3138 = vrot.slane %v2528, 2
      %v3139 = vsel %vm932, %v3137, %v3138
      %v3140 = vrot.slane %v2650, 2
      %v3141 = vsel %vm932, %v3138, %v3140
      %v3142 = vrot.slane %v2635, 2
      %v3143 = vrot.slane %v2531, 2
      %v3144 = vsel %vm932, %v3142, %v3143
      %v3145 = vrot.slane %v2651, 2
      %v3146 = vsel %vm932, %v3143, %v3145
      %v3147 = vrot.slane %v2636, 2
      %v3148 = vrot.slane %v2534, 2
      %v3149 = vsel %vm932, %v3147, %v3148
      %v3150 = vrot.slane %v2652, 2
      %v3151 = vsel %vm932, %v3148, %v3150
      %v3152 = vrot.slane %v2637, 2
      %v3153 = vrot.slane %v2537, 2
      %v3154 = vsel %vm932, %v3152, %v3153
      %v3155 = vrot.slane %v2653, 2
      %v3156 = vsel %vm932, %v3153, %v3155
      %v3157 = vrot.slane %v2638, 2
      %v3158 = vrot.slane %v2540, 2
      %v3159 = vsel %vm932, %v3157, %v3158
      %v3160 = vrot.slane %v2654, 2
      %v3161 = vsel %vm932, %v3158, %v3160
      %v3162 = vrot.slane %v2639, 2
      %v3163 = vrot.slane %v2543, 2
      %v3164 = vsel %vm932, %v3162, %v3163
      %v3165 = vrot.slane %v2655, 2
      %v3166 = vsel %vm932, %v3163, %v3165
      %v3167 = vrot.slane %v2640, 2
      %v3168 = vrot.slane %v2546, 2
      %v3169 = vsel %vm932, %v3167, %v3168
      %v3170 = vrot.slane %v2656, 2
      %v3171 = vsel %vm932, %v3168, %v3170
      %v3172 = vrot.slane %v2641, 2
      %v3173 = vrot.slane %v2549, 2
      %v3174 = vsel %vm932, %v3172, %v3173
      %v3175 = vrot.slane %v2657, 2
      %v3176 = vsel %vm932, %v3173, %v3175
      %v3177 = vrot.slane %v2642, 2
      %v3178 = vrot.slane %v2552, 2
      %v3179 = vsel %vm932, %v3177, %v3178
      %v3180 = vrot.slane %v2658, 2
      %v3181 = vsel %vm932, %v3178, %v3180
      %v3182 = vrot.slane %v2643, 2
      %v3183 = vrot.slane %v2555, 2
      %v3184 = vsel %vm932, %v3182, %v3183
      %v3185 = vrot.slane %v2659, 2
      %v3186 = vsel %vm932, %v3183, %v3185
      %v3187 = vrot.slane %v2644, 2
      %v3188 = vrot.slane %v2558, 2
      %v3189 = vsel %vm932, %v3187, %v3188
      %v3190 = vrot.slane %v2660, 2
      %v3191 = vsel %vm932, %v3188, %v3190
      %v3192 = vrot.slane %v2645, 2
      %v3193 = vrot.slane %v2561, 2
      %v3194 = vsel %vm932, %v3192, %v3193
      %v3195 = vrot.slane %v2661, 2
      %v3196 = vsel %vm932, %v3193, %v3195
      %v3197 = vrot.slane %v2646, 2
      %v3198 = vrot.slane %v2564, 2
      %v3199 = vsel %vm932, %v3197, %v3198
      %v3200 = vrot.slane %v2662, 2
      %v3201 = vsel %vm932, %v3198, %v3200
      %v3202 = vsel %vm576, %v3129, 0
      %v3204 = vsel %vm576, %v3131, 0
      %v3206 = vsel %vm576, %v3134, 0
      %v3208 = vsel %vm576, %v3136, 0
      %v3210 = vsel %vm576, %v3139, 0
      %v3212 = vsel %vm576, %v3141, 0
      %v3214 = vsel %vm576, %v3144, 0
      %v3216 = vsel %vm576, %v3146, 0
      %v3218 = vsel %vm576, %v3149, 0
      %v3220 = vsel %vm576, %v3151, 0
      %v3222 = vsel %vm576, %v3154, 0
      %v3224 = vsel %vm576, %v3156, 0
      %v3226 = vsel %vm576, %v3159, 0
      %v3228 = vsel %vm576, %v3161, 0
      %v3230 = vsel %vm576, %v3164, 0
      %v3232 = vsel %vm576, %v3166, 0
      %v3234 = vsel %vm576, %v3169, 0
      %v3236 = vsel %vm576, %v3171, 0
      %v3238 = vsel %vm576, %v3174, 0
      %v3240 = vsel %vm576, %v3176, 0
      %v3242 = vsel %vm576, %v3179, 0
      %v3244 = vsel %vm576, %v3181, 0
      %v3246 = vsel %vm576, %v3184, 0
      %v3248 = vsel %vm576, %v3186, 0
      %v3250 = vsel %vm576, %v3189, 0
      %v3252 = vsel %vm576, %v3191, 0
      %v3254 = vsel %vm576, %v3194, 0
      %v3256 = vsel %vm576, %v3196, 0
      %v3258 = vsel %vm576, %v3199, 0
      %v3260 = vsel %vm576, %v3201, 0
      %v3263 = vsel %vm637, %v3126, 0
      %3265 = vmatpush.msra.mxu0 0.0
      %3266 = vmatpush.msra.mxu0 0.0
      %3267 = vmatpush.msra.mxu0 0.0
      %3268 = vmatpush.msra.mxu0 0.0
      %3269 = vmatpush.msra.mxu0 0.0
      %3270 = vmatpush.msra.mxu0 0.0
      %3271 = vmatpush.msra.mxu0 0.0
      %3272 = vmatpush.msra.mxu0 0.0
      %3273 = vmatpush.msra.mxu0 0.0
      %3274 = vmatpush.msra.mxu0 0.0
      %3275 = vmatpush.msra.mxu0 0.0
      %3276 = vmatpush.msra.mxu0 0.0
      %3277 = vmatpush.msra.mxu0 0.0
      %3278 = vmatpush.msra.mxu0 0.0
      %3279 = vmatpush.msra.mxu0 0.0
      %3280 = vmatpush.msra.mxu0 %v3263
      %3281 = vmatmul.f32.gmra.mxu0 %v3202
      %v3282 = vpop.f32.mrf.mxu0
      %v3283 = vadd.f32 0.0, %v3282
      %3284 = vmatmul.f32.gmra.mxu0 %v3204
      %v3285 = vpop.f32.mrf.mxu0
      %v3286 = vadd.f32 0.0, %v3285
      %3287 = vmatmul.f32.gmra.mxu0 %v3206
      %v3288 = vpop.f32.mrf.mxu0
      %v3289 = vadd.f32 0.0, %v3288
      %3290 = vmatmul.f32.gmra.mxu0 %v3208
      %v3291 = vpop.f32.mrf.mxu0
      %v3292 = vadd.f32 0.0, %v3291
      %3293 = vmatmul.f32.gmra.mxu0 %v3202
      %v3294 = vpop.f32.mrf.mxu0
      %v3295 = vadd.f32 0.0, %v3294
      %3296 = vmatmul.f32.gmra.mxu0 %v3204
      %v3297 = vpop.f32.mrf.mxu0
      %v3298 = vadd.f32 0.0, %v3297
      %3299 = vmatmul.f32.gmra.mxu0 %v3210
      %v3300 = vpop.f32.mrf.mxu0
      %v3301 = vadd.f32 0.0, %v3300
      %3302 = vmatmul.f32.gmra.mxu0 %v3212
      %v3303 = vpop.f32.mrf.mxu0
      %v3304 = vadd.f32 0.0, %v3303
      %3305 = vmatmul.f32.gmra.mxu0 %v3214
      %v3306 = vpop.f32.mrf.mxu0
      %v3307 = vadd.f32 0.0, %v3306
      %3308 = vmatmul.f32.gmra.mxu0 %v3216
      %v3309 = vpop.f32.mrf.mxu0
      %v3310 = vadd.f32 0.0, %v3309
      %3311 = vmatmul.f32.gmra.mxu0 %v3218
      %v3312 = vpop.f32.mrf.mxu0
      %v3313 = vadd.f32 0.0, %v3312
      %3314 = vmatmul.f32.gmra.mxu0 %v3220
      %v3315 = vpop.f32.mrf.mxu0
      %v3316 = vadd.f32 0.0, %v3315
      %3317 = vmatmul.f32.gmra.mxu0 %v3222
      %v3318 = vpop.f32.mrf.mxu0
      %v3319 = vadd.f32 0.0, %v3318
      %3320 = vmatmul.f32.gmra.mxu0 %v3224
      %v3321 = vpop.f32.mrf.mxu0
      %v3322 = vadd.f32 0.0, %v3321
      %3323 = vmatmul.f32.gmra.mxu0 %v3226
      %v3324 = vpop.f32.mrf.mxu0
      %v3325 = vadd.f32 0.0, %v3324
      %3326 = vmatmul.f32.gmra.mxu0 %v3228
      %v3327 = vpop.f32.mrf.mxu0
      %v3328 = vadd.f32 0.0, %v3327
      %3329 = vmatmul.f32.gmra.mxu0 %v3230
      %v3330 = vpop.f32.mrf.mxu0
      %v3331 = vadd.f32 0.0, %v3330
      %3332 = vmatmul.f32.gmra.mxu0 %v3232
      %v3333 = vpop.f32.mrf.mxu0
      %v3334 = vadd.f32 0.0, %v3333
      %3335 = vmatmul.f32.gmra.mxu0 %v3234
      %v3336 = vpop.f32.mrf.mxu0
      %v3337 = vadd.f32 0.0, %v3336
      %3338 = vmatmul.f32.gmra.mxu0 %v3236
      %v3339 = vpop.f32.mrf.mxu0
      %v3340 = vadd.f32 0.0, %v3339
      %3341 = vmatmul.f32.gmra.mxu0 %v3238
      %v3342 = vpop.f32.mrf.mxu0
      %v3343 = vadd.f32 0.0, %v3342
      %3344 = vmatmul.f32.gmra.mxu0 %v3240
      %v3345 = vpop.f32.mrf.mxu0
      %v3346 = vadd.f32 0.0, %v3345
      %3347 = vmatmul.f32.gmra.mxu0 %v3242
      %v3348 = vpop.f32.mrf.mxu0
      %v3349 = vadd.f32 0.0, %v3348
      %3350 = vmatmul.f32.gmra.mxu0 %v3244
      %v3351 = vpop.f32.mrf.mxu0
      %v3352 = vadd.f32 0.0, %v3351
      %3353 = vmatmul.f32.gmra.mxu0 %v3246
      %v3354 = vpop.f32.mrf.mxu0
      %v3355 = vadd.f32 0.0, %v3354
      %3356 = vmatmul.f32.gmra.mxu0 %v3248
      %v3357 = vpop.f32.mrf.mxu0
      %v3358 = vadd.f32 0.0, %v3357
      %3359 = vmatmul.f32.gmra.mxu0 %v3250
      %v3360 = vpop.f32.mrf.mxu0
      %v3361 = vadd.f32 0.0, %v3360
      %3362 = vmatmul.f32.gmra.mxu0 %v3252
      %v3363 = vpop.f32.mrf.mxu0
      %v3364 = vadd.f32 0.0, %v3363
      %3365 = vmatmul.f32.gmra.mxu0 %v3254
      %v3366 = vpop.f32.mrf.mxu0
      %v3367 = vadd.f32 0.0, %v3366
      %3368 = vmatmul.f32.gmra.mxu0 %v3256
      %v3369 = vpop.f32.mrf.mxu0
      %v3370 = vadd.f32 0.0, %v3369
      %3371 = vmatmul.f32.gmra.mxu0 %v3258
      %v3372 = vpop.f32.mrf.mxu0
      %v3373 = vadd.f32 0.0, %v3372
      %3374 = vmatmul.f32.gmra.mxu0 %v3260
      %v3375 = vpop.f32.mrf.mxu0
      %v3376 = vadd.f32 0.0, %v3375
      %3377 = vdwg.mxu0
      %v3378 = vadd.f32 %v3030, %v3283
      %v3379 = vadd.f32 %v3033, %v3286
      %v3380 = vadd.f32 %v3036, %v3289
      %v3381 = vadd.f32 %v3039, %v3292
      %v3382 = vadd.f32 %v3042, %v3295
      %v3383 = vadd.f32 %v3045, %v3298
      %v3384 = vadd.f32 %v3048, %v3301
      %v3385 = vadd.f32 %v3051, %v3304
      %v3386 = vadd.f32 %v3054, %v3307
      %v3387 = vadd.f32 %v3057, %v3310
      %v3388 = vadd.f32 %v3060, %v3313
      %v3389 = vadd.f32 %v3063, %v3316
      %v3390 = vadd.f32 %v3066, %v3319
      %v3391 = vadd.f32 %v3069, %v3322
      %v3392 = vadd.f32 %v3072, %v3325
      %v3393 = vadd.f32 %v3075, %v3328
      %v3394 = vadd.f32 %v3078, %v3331
      %v3395 = vadd.f32 %v3081, %v3334
      %v3396 = vadd.f32 %v3084, %v3337
      %v3397 = vadd.f32 %v3087, %v3340
      %v3398 = vadd.f32 %v3090, %v3343
      %v3399 = vadd.f32 %v3093, %v3346
      %v3400 = vadd.f32 %v3096, %v3349
      %v3401 = vadd.f32 %v3099, %v3352
      %v3402 = vadd.f32 %v3102, %v3355
      %v3403 = vadd.f32 %v3105, %v3358
      %v3404 = vadd.f32 %v3108, %v3361
      %v3405 = vadd.f32 %v3111, %v3364
      %v3406 = vadd.f32 %v3114, %v3367
      %v3407 = vadd.f32 %v3117, %v3370
      %v3408 = vadd.f32 %v3120, %v3373
      %v3409 = vadd.f32 %v3123, %v3376
      %s3410 = scalar_lea.vmem %s3, 12
      %v3411 = vld [vmem:[%s3410] sm:$0xf]
      %v3413 = vsel %vm576, %v2647, 0
      %v3415 = vsel %vm576, %v2567, 0
      %v3418 = vsel %vm637, %v3411, 0
      %3420 = vmatpush.msra.mxu0 0.0
      %3421 = vmatpush.msra.mxu0 0.0
      %3422 = vmatpush.msra.mxu0 0.0
      %3423 = vmatpush.msra.mxu0 0.0
      %3424 = vmatpush.msra.mxu0 0.0
      %3425 = vmatpush.msra.mxu0 0.0
      %3426 = vmatpush.msra.mxu0 0.0
      %3427 = vmatpush.msra.mxu0 0.0
      %3428 = vmatpush.msra.mxu0 0.0
      %3429 = vmatpush.msra.mxu0 0.0
      %3430 = vmatpush.msra.mxu0 0.0
      %3431 = vmatpush.msra.mxu0 0.0
      %3432 = vmatpush.msra.mxu0 0.0
      %3433 = vmatpush.msra.mxu0 0.0
      %3434 = vmatpush.msra.mxu0 0.0
      %3435 = vmatpush.msra.mxu0 %v3418
      %3436 = vmatmul.f32.gmra.mxu0 %v2953
      %v3437 = vpop.f32.mrf.mxu0
      %v3438 = vadd.f32 0.0, %v3437
      %3439 = vmatmul.f32.gmra.mxu0 %v2955
      %v3440 = vpop.f32.mrf.mxu0
      %v3441 = vadd.f32 0.0, %v3440
      %3442 = vmatmul.f32.gmra.mxu0 %v2949
      %v3443 = vpop.f32.mrf.mxu0
      %v3444 = vadd.f32 0.0, %v3443
      %3445 = vmatmul.f32.gmra.mxu0 %v2951
      %v3446 = vpop.f32.mrf.mxu0
      %v3447 = vadd.f32 0.0, %v3446
      %3448 = vmatmul.f32.gmra.mxu0 %v2957
      %v3449 = vpop.f32.mrf.mxu0
      %v3450 = vadd.f32 0.0, %v3449
      %3451 = vmatmul.f32.gmra.mxu0 %v2959
      %v3452 = vpop.f32.mrf.mxu0
      %v3453 = vadd.f32 0.0, %v3452
      %3454 = vmatmul.f32.gmra.mxu0 %v2961
      %v3455 = vpop.f32.mrf.mxu0
      %v3456 = vadd.f32 0.0, %v3455
      %3457 = vmatmul.f32.gmra.mxu0 %v2963
      %v3458 = vpop.f32.mrf.mxu0
      %v3459 = vadd.f32 0.0, %v3458
      %3460 = vmatmul.f32.gmra.mxu0 %v2965
      %v3461 = vpop.f32.mrf.mxu0
      %v3462 = vadd.f32 0.0, %v3461
      %3463 = vmatmul.f32.gmra.mxu0 %v2967
      %v3464 = vpop.f32.mrf.mxu0
      %v3465 = vadd.f32 0.0, %v3464
      %3466 = vmatmul.f32.gmra.mxu0 %v2969
      %v3467 = vpop.f32.mrf.mxu0
      %v3468 = vadd.f32 0.0, %v3467
      %3469 = vmatmul.f32.gmra.mxu0 %v2971
      %v3470 = vpop.f32.mrf.mxu0
      %v3471 = vadd.f32 0.0, %v3470
      %3472 = vmatmul.f32.gmra.mxu0 %v2973
      %v3473 = vpop.f32.mrf.mxu0
      %v3474 = vadd.f32 0.0, %v3473
      %3475 = vmatmul.f32.gmra.mxu0 %v2975
      %v3476 = vpop.f32.mrf.mxu0
      %v3477 = vadd.f32 0.0, %v3476
      %3478 = vmatmul.f32.gmra.mxu0 %v2977
      %v3479 = vpop.f32.mrf.mxu0
      %v3480 = vadd.f32 0.0, %v3479
      %3481 = vmatmul.f32.gmra.mxu0 %v2979
      %v3482 = vpop.f32.mrf.mxu0
      %v3483 = vadd.f32 0.0, %v3482
      %3484 = vmatmul.f32.gmra.mxu0 %v2981
      %v3485 = vpop.f32.mrf.mxu0
      %v3486 = vadd.f32 0.0, %v3485
      %3487 = vmatmul.f32.gmra.mxu0 %v2983
      %v3488 = vpop.f32.mrf.mxu0
      %v3489 = vadd.f32 0.0, %v3488
      %3490 = vmatmul.f32.gmra.mxu0 %v2985
      %v3491 = vpop.f32.mrf.mxu0
      %v3492 = vadd.f32 0.0, %v3491
      %3493 = vmatmul.f32.gmra.mxu0 %v2987
      %v3494 = vpop.f32.mrf.mxu0
      %v3495 = vadd.f32 0.0, %v3494
      %3496 = vmatmul.f32.gmra.mxu0 %v2989
      %v3497 = vpop.f32.mrf.mxu0
      %v3498 = vadd.f32 0.0, %v3497
      %3499 = vmatmul.f32.gmra.mxu0 %v2991
      %v3500 = vpop.f32.mrf.mxu0
      %v3501 = vadd.f32 0.0, %v3500
      %3502 = vmatmul.f32.gmra.mxu0 %v2993
      %v3503 = vpop.f32.mrf.mxu0
      %v3504 = vadd.f32 0.0, %v3503
      %3505 = vmatmul.f32.gmra.mxu0 %v2995
      %v3506 = vpop.f32.mrf.mxu0
      %v3507 = vadd.f32 0.0, %v3506
      %3508 = vmatmul.f32.gmra.mxu0 %v2997
      %v3509 = vpop.f32.mrf.mxu0
      %v3510 = vadd.f32 0.0, %v3509
      %3511 = vmatmul.f32.gmra.mxu0 %v2999
      %v3512 = vpop.f32.mrf.mxu0
      %v3513 = vadd.f32 0.0, %v3512
      %3514 = vmatmul.f32.gmra.mxu0 %v3001
      %v3515 = vpop.f32.mrf.mxu0
      %v3516 = vadd.f32 0.0, %v3515
      %3517 = vmatmul.f32.gmra.mxu0 %v3003
      %v3518 = vpop.f32.mrf.mxu0
      %v3519 = vadd.f32 0.0, %v3518
      %3520 = vmatmul.f32.gmra.mxu0 %v3005
      %v3521 = vpop.f32.mrf.mxu0
      %v3522 = vadd.f32 0.0, %v3521
      %3523 = vmatmul.f32.gmra.mxu0 %v3007
      %v3524 = vpop.f32.mrf.mxu0
      %v3525 = vadd.f32 0.0, %v3524
      %3526 = vmatmul.f32.gmra.mxu0 %v3413
      %v3527 = vpop.f32.mrf.mxu0
      %v3528 = vadd.f32 0.0, %v3527
      %3529 = vmatmul.f32.gmra.mxu0 %v3415
      %v3530 = vpop.f32.mrf.mxu0
      %v3531 = vadd.f32 0.0, %v3530
      %3532 = vdwg.mxu0
      %v3533 = vadd.f32 %v3378, %v3438
      %v3534 = vadd.f32 %v3379, %v3441
      %v3535 = vadd.f32 %v3380, %v3444
      %v3536 = vadd.f32 %v3381, %v3447
      %v3537 = vadd.f32 %v3382, %v3450
      %v3538 = vadd.f32 %v3383, %v3453
      %v3539 = vadd.f32 %v3384, %v3456
      %v3540 = vadd.f32 %v3385, %v3459
      %v3541 = vadd.f32 %v3386, %v3462
      %v3542 = vadd.f32 %v3387, %v3465
      %v3543 = vadd.f32 %v3388, %v3468
      %v3544 = vadd.f32 %v3389, %v3471
      %v3545 = vadd.f32 %v3390, %v3474
      %v3546 = vadd.f32 %v3391, %v3477
      %v3547 = vadd.f32 %v3392, %v3480
      %v3548 = vadd.f32 %v3393, %v3483
      %v3549 = vadd.f32 %v3394, %v3486
      %v3550 = vadd.f32 %v3395, %v3489
      %v3551 = vadd.f32 %v3396, %v3492
      %v3552 = vadd.f32 %v3397, %v3495
      %v3553 = vadd.f32 %v3398, %v3498
      %v3554 = vadd.f32 %v3399, %v3501
      %v3555 = vadd.f32 %v3400, %v3504
      %v3556 = vadd.f32 %v3401, %v3507
      %v3557 = vadd.f32 %v3402, %v3510
      %v3558 = vadd.f32 %v3403, %v3513
      %v3559 = vadd.f32 %v3404, %v3516
      %v3560 = vadd.f32 %v3405, %v3519
      %v3561 = vadd.f32 %v3406, %v3522
      %v3562 = vadd.f32 %v3407, %v3525
      %v3563 = vadd.f32 %v3408, %v3528
      %v3564 = vadd.f32 %v3409, %v3531
      %s3565 = scalar_lea.vmem %s3, 16
      %v3566 = vld [vmem:[%s3565] sm:$0xf]
      %v3568 = vrot.slane %v2647, 1
      %v3569 = vrot.slane %v2567, 1
      %v3570 = vsel %vm500, %v3568, %v3569
      %v3571 = vrot.slane %v2663, 1
      %v3572 = vsel %vm500, %v3569, %v3571
      %v3573 = vsel %vm576, %v3570, 0
      %v3575 = vsel %vm576, %v3572, 0
      %v3578 = vsel %vm637, %v3566, 0
      %3580 = vmatpush.msra.mxu0 0.0
      %3581 = vmatpush.msra.mxu0 0.0
      %3582 = vmatpush.msra.mxu0 0.0
      %3583 = vmatpush.msra.mxu0 0.0
      %3584 = vmatpush.msra.mxu0 0.0
      %3585 = vmatpush.msra.mxu0 0.0
      %3586 = vmatpush.msra.mxu0 0.0
      %3587 = vmatpush.msra.mxu0 0.0
      %3588 = vmatpush.msra.mxu0 0.0
      %3589 = vmatpush.msra.mxu0 0.0
      %3590 = vmatpush.msra.mxu0 0.0
      %3591 = vmatpush.msra.mxu0 0.0
      %3592 = vmatpush.msra.mxu0 0.0
      %3593 = vmatpush.msra.mxu0 0.0
      %3594 = vmatpush.msra.mxu0 0.0
      %3595 = vmatpush.msra.mxu0 %v3578
      %3596 = vmatmul.f32.gmra.mxu0 %v2777
      %v3597 = vpop.f32.mrf.mxu0
      %v3598 = vadd.f32 0.0, %v3597
      %3599 = vmatmul.f32.gmra.mxu0 %v2779
      %v3600 = vpop.f32.mrf.mxu0
      %v3601 = vadd.f32 0.0, %v3600
      %3602 = vmatmul.f32.gmra.mxu0 %v2773
      %v3603 = vpop.f32.mrf.mxu0
      %v3604 = vadd.f32 0.0, %v3603
      %3605 = vmatmul.f32.gmra.mxu0 %v2775
      %v3606 = vpop.f32.mrf.mxu0
      %v3607 = vadd.f32 0.0, %v3606
      %3608 = vmatmul.f32.gmra.mxu0 %v2781
      %v3609 = vpop.f32.mrf.mxu0
      %v3610 = vadd.f32 0.0, %v3609
      %3611 = vmatmul.f32.gmra.mxu0 %v2783
      %v3612 = vpop.f32.mrf.mxu0
      %v3613 = vadd.f32 0.0, %v3612
      %3614 = vmatmul.f32.gmra.mxu0 %v2785
      %v3615 = vpop.f32.mrf.mxu0
      %v3616 = vadd.f32 0.0, %v3615
      %3617 = vmatmul.f32.gmra.mxu0 %v2787
      %v3618 = vpop.f32.mrf.mxu0
      %v3619 = vadd.f32 0.0, %v3618
      %3620 = vmatmul.f32.gmra.mxu0 %v2789
      %v3621 = vpop.f32.mrf.mxu0
      %v3622 = vadd.f32 0.0, %v3621
      %3623 = vmatmul.f32.gmra.mxu0 %v2791
      %v3624 = vpop.f32.mrf.mxu0
      %v3625 = vadd.f32 0.0, %v3624
      %3626 = vmatmul.f32.gmra.mxu0 %v2793
      %v3627 = vpop.f32.mrf.mxu0
      %v3628 = vadd.f32 0.0, %v3627
      %3629 = vmatmul.f32.gmra.mxu0 %v2795
      %v3630 = vpop.f32.mrf.mxu0
      %v3631 = vadd.f32 0.0, %v3630
      %3632 = vmatmul.f32.gmra.mxu0 %v2797
      %v3633 = vpop.f32.mrf.mxu0
      %v3634 = vadd.f32 0.0, %v3633
      %3635 = vmatmul.f32.gmra.mxu0 %v2799
      %v3636 = vpop.f32.mrf.mxu0
      %v3637 = vadd.f32 0.0, %v3636
      %3638 = vmatmul.f32.gmra.mxu0 %v2801
      %v3639 = vpop.f32.mrf.mxu0
      %v3640 = vadd.f32 0.0, %v3639
      %3641 = vmatmul.f32.gmra.mxu0 %v2803
      %v3642 = vpop.f32.mrf.mxu0
      %v3643 = vadd.f32 0.0, %v3642
      %3644 = vmatmul.f32.gmra.mxu0 %v2805
      %v3645 = vpop.f32.mrf.mxu0
      %v3646 = vadd.f32 0.0, %v3645
      %3647 = vmatmul.f32.gmra.mxu0 %v2807
      %v3648 = vpop.f32.mrf.mxu0
      %v3649 = vadd.f32 0.0, %v3648
      %3650 = vmatmul.f32.gmra.mxu0 %v2809
      %v3651 = vpop.f32.mrf.mxu0
      %v3652 = vadd.f32 0.0, %v3651
      %3653 = vmatmul.f32.gmra.mxu0 %v2811
      %v3654 = vpop.f32.mrf.mxu0
      %v3655 = vadd.f32 0.0, %v3654
      %3656 = vmatmul.f32.gmra.mxu0 %v2813
      %v3657 = vpop.f32.mrf.mxu0
      %v3658 = vadd.f32 0.0, %v3657
      %3659 = vmatmul.f32.gmra.mxu0 %v2815
      %v3660 = vpop.f32.mrf.mxu0
      %v3661 = vadd.f32 0.0, %v3660
      %3662 = vmatmul.f32.gmra.mxu0 %v2817
      %v3663 = vpop.f32.mrf.mxu0
      %v3664 = vadd.f32 0.0, %v3663
      %3665 = vmatmul.f32.gmra.mxu0 %v2819
      %v3666 = vpop.f32.mrf.mxu0
      %v3667 = vadd.f32 0.0, %v3666
      %3668 = vmatmul.f32.gmra.mxu0 %v2821
      %v3669 = vpop.f32.mrf.mxu0
      %v3670 = vadd.f32 0.0, %v3669
      %3671 = vmatmul.f32.gmra.mxu0 %v2823
      %v3672 = vpop.f32.mrf.mxu0
      %v3673 = vadd.f32 0.0, %v3672
      %3674 = vmatmul.f32.gmra.mxu0 %v2825
      %v3675 = vpop.f32.mrf.mxu0
      %v3676 = vadd.f32 0.0, %v3675
      %3677 = vmatmul.f32.gmra.mxu0 %v2827
      %v3678 = vpop.f32.mrf.mxu0
      %v3679 = vadd.f32 0.0, %v3678
      %3680 = vmatmul.f32.gmra.mxu0 %v2829
      %v3681 = vpop.f32.mrf.mxu0
      %v3682 = vadd.f32 0.0, %v3681
      %3683 = vmatmul.f32.gmra.mxu0 %v2831
      %v3684 = vpop.f32.mrf.mxu0
      %v3685 = vadd.f32 0.0, %v3684
      %3686 = vmatmul.f32.gmra.mxu0 %v3573
      %v3687 = vpop.f32.mrf.mxu0
      %v3688 = vadd.f32 0.0, %v3687
      %3689 = vmatmul.f32.gmra.mxu0 %v3575
      %v3690 = vpop.f32.mrf.mxu0
      %v3691 = vadd.f32 0.0, %v3690
      %3692 = vdwg.mxu0
      %v3693 = vadd.f32 %v3533, %v3598
      %v3694 = vadd.f32 %v3534, %v3601
      %v3695 = vadd.f32 %v3535, %v3604
      %v3696 = vadd.f32 %v3536, %v3607
      %v3697 = vadd.f32 %v3537, %v3610
      %v3698 = vadd.f32 %v3538, %v3613
      %v3699 = vadd.f32 %v3539, %v3616
      %v3700 = vadd.f32 %v3540, %v3619
      %v3701 = vadd.f32 %v3541, %v3622
      %v3702 = vadd.f32 %v3542, %v3625
      %v3703 = vadd.f32 %v3543, %v3628
      %v3704 = vadd.f32 %v3544, %v3631
      %v3705 = vadd.f32 %v3545, %v3634
      %v3706 = vadd.f32 %v3546, %v3637
      %v3707 = vadd.f32 %v3547, %v3640
      %v3708 = vadd.f32 %v3548, %v3643
      %v3709 = vadd.f32 %v3549, %v3646
      %v3710 = vadd.f32 %v3550, %v3649
      %v3711 = vadd.f32 %v3551, %v3652
      %v3712 = vadd.f32 %v3552, %v3655
      %v3713 = vadd.f32 %v3553, %v3658
      %v3714 = vadd.f32 %v3554, %v3661
      %v3715 = vadd.f32 %v3555, %v3664
      %v3716 = vadd.f32 %v3556, %v3667
      %v3717 = vadd.f32 %v3557, %v3670
      %v3718 = vadd.f32 %v3558, %v3673
      %v3719 = vadd.f32 %v3559, %v3676
      %v3720 = vadd.f32 %v3560, %v3679
      %v3721 = vadd.f32 %v3561, %v3682
      %v3722 = vadd.f32 %v3562, %v3685
      %v3723 = vadd.f32 %v3563, %v3688
      %v3724 = vadd.f32 %v3564, %v3691
      %s3725 = scalar_lea.vmem %s3, 20
      %v3726 = vld [vmem:[%s3725] sm:$0xf]
      %v3727 = vrot.slane %v2647, 2
      %v3728 = vrot.slane %v2567, 2
      %v3729 = vsel %vm932, %v3727, %v3728
      %v3730 = vrot.slane %v2663, 2
      %v3731 = vsel %vm932, %v3728, %v3730
      %v3732 = vsel %vm576, %v3729, 0
      %v3734 = vsel %vm576, %v3731, 0
      %v3737 = vsel %vm637, %v3726, 0
      %3739 = vmatpush.msra.mxu0 0.0
      %3740 = vmatpush.msra.mxu0 0.0
      %3741 = vmatpush.msra.mxu0 0.0
      %3742 = vmatpush.msra.mxu0 0.0
      %3743 = vmatpush.msra.mxu0 0.0
      %3744 = vmatpush.msra.mxu0 0.0
      %3745 = vmatpush.msra.mxu0 0.0
      %3746 = vmatpush.msra.mxu0 0.0
      %3747 = vmatpush.msra.mxu0 0.0
      %3748 = vmatpush.msra.mxu0 0.0
      %3749 = vmatpush.msra.mxu0 0.0
      %3750 = vmatpush.msra.mxu0 0.0
      %3751 = vmatpush.msra.mxu0 0.0
      %3752 = vmatpush.msra.mxu0 0.0
      %3753 = vmatpush.msra.mxu0 0.0
      %3754 = vmatpush.msra.mxu0 %v3737
      %3755 = vmatmul.f32.gmra.mxu0 %v3206
      %v3756 = vpop.f32.mrf.mxu0
      %v3757 = vadd.f32 0.0, %v3756
      %3758 = vmatmul.f32.gmra.mxu0 %v3208
      %v3759 = vpop.f32.mrf.mxu0
      %v3760 = vadd.f32 0.0, %v3759
      %3761 = vmatmul.f32.gmra.mxu0 %v3202
      %v3762 = vpop.f32.mrf.mxu0
      %v3763 = vadd.f32 0.0, %v3762
      %3764 = vmatmul.f32.gmra.mxu0 %v3204
      %v3765 = vpop.f32.mrf.mxu0
      %v3766 = vadd.f32 0.0, %v3765
      %3767 = vmatmul.f32.gmra.mxu0 %v3210
      %v3768 = vpop.f32.mrf.mxu0
      %v3769 = vadd.f32 0.0, %v3768
      %3770 = vmatmul.f32.gmra.mxu0 %v3212
      %v3771 = vpop.f32.mrf.mxu0
      %v3772 = vadd.f32 0.0, %v3771
      %3773 = vmatmul.f32.gmra.mxu0 %v3214
      %v3774 = vpop.f32.mrf.mxu0
      %v3775 = vadd.f32 0.0, %v3774
      %3776 = vmatmul.f32.gmra.mxu0 %v3216
      %v3777 = vpop.f32.mrf.mxu0
      %v3778 = vadd.f32 0.0, %v3777
      %3779 = vmatmul.f32.gmra.mxu0 %v3218
      %v3780 = vpop.f32.mrf.mxu0
      %v3781 = vadd.f32 0.0, %v3780
      %3782 = vmatmul.f32.gmra.mxu0 %v3220
      %v3783 = vpop.f32.mrf.mxu0
      %v3784 = vadd.f32 0.0, %v3783
      %3785 = vmatmul.f32.gmra.mxu0 %v3222
      %v3786 = vpop.f32.mrf.mxu0
      %v3787 = vadd.f32 0.0, %v3786
      %3788 = vmatmul.f32.gmra.mxu0 %v3224
      %v3789 = vpop.f32.mrf.mxu0
      %v3790 = vadd.f32 0.0, %v3789
      %3791 = vmatmul.f32.gmra.mxu0 %v3226
      %v3792 = vpop.f32.mrf.mxu0
      %v3793 = vadd.f32 0.0, %v3792
      %3794 = vmatmul.f32.gmra.mxu0 %v3228
      %v3795 = vpop.f32.mrf.mxu0
      %v3796 = vadd.f32 0.0, %v3795
      %3797 = vmatmul.f32.gmra.mxu0 %v3230
      %v3798 = vpop.f32.mrf.mxu0
      %v3799 = vadd.f32 0.0, %v3798
      %3800 = vmatmul.f32.gmra.mxu0 %v3232
      %v3801 = vpop.f32.mrf.mxu0
      %v3802 = vadd.f32 0.0, %v3801
      %3803 = vmatmul.f32.gmra.mxu0 %v3234
      %v3804 = vpop.f32.mrf.mxu0
      %v3805 = vadd.f32 0.0, %v3804
      %3806 = vmatmul.f32.gmra.mxu0 %v3236
      %v3807 = vpop.f32.mrf.mxu0
      %v3808 = vadd.f32 0.0, %v3807
      %3809 = vmatmul.f32.gmra.mxu0 %v3238
      %v3810 = vpop.f32.mrf.mxu0
      %v3811 = vadd.f32 0.0, %v3810
      %3812 = vmatmul.f32.gmra.mxu0 %v3240
      %v3813 = vpop.f32.mrf.mxu0
      %v3814 = vadd.f32 0.0, %v3813
      %3815 = vmatmul.f32.gmra.mxu0 %v3242
      %v3816 = vpop.f32.mrf.mxu0
      %v3817 = vadd.f32 0.0, %v3816
      %3818 = vmatmul.f32.gmra.mxu0 %v3244
      %v3819 = vpop.f32.mrf.mxu0
      %v3820 = vadd.f32 0.0, %v3819
      %3821 = vmatmul.f32.gmra.mxu0 %v3246
      %v3822 = vpop.f32.mrf.mxu0
      %v3823 = vadd.f32 0.0, %v3822
      %3824 = vmatmul.f32.gmra.mxu0 %v3248
      %v3825 = vpop.f32.mrf.mxu0
      %v3826 = vadd.f32 0.0, %v3825
      %3827 = vmatmul.f32.gmra.mxu0 %v3250
      %v3828 = vpop.f32.mrf.mxu0
      %v3829 = vadd.f32 0.0, %v3828
      %3830 = vmatmul.f32.gmra.mxu0 %v3252
      %v3831 = vpop.f32.mrf.mxu0
      %v3832 = vadd.f32 0.0, %v3831
      %3833 = vmatmul.f32.gmra.mxu0 %v3254
      %v3834 = vpop.f32.mrf.mxu0
      %v3835 = vadd.f32 0.0, %v3834
      %3836 = vmatmul.f32.gmra.mxu0 %v3256
      %v3837 = vpop.f32.mrf.mxu0
      %v3838 = vadd.f32 0.0, %v3837
      %3839 = vmatmul.f32.gmra.mxu0 %v3258
      %v3840 = vpop.f32.mrf.mxu0
      %v3841 = vadd.f32 0.0, %v3840
      %3842 = vmatmul.f32.gmra.mxu0 %v3260
      %v3843 = vpop.f32.mrf.mxu0
      %v3844 = vadd.f32 0.0, %v3843
      %3845 = vmatmul.f32.gmra.mxu0 %v3732
      %v3846 = vpop.f32.mrf.mxu0
      %v3847 = vadd.f32 0.0, %v3846
      %3848 = vmatmul.f32.gmra.mxu0 %v3734
      %v3849 = vpop.f32.mrf.mxu0
      %v3850 = vadd.f32 0.0, %v3849
      %3851 = vdwg.mxu0
      %v3852 = vadd.f32 %v3693, %v3757
      %v3853 = vadd.f32 %v3694, %v3760
      %v3854 = vadd.f32 %v3695, %v3763
      %v3855 = vadd.f32 %v3696, %v3766
      %v3856 = vadd.f32 %v3697, %v3769
      %v3857 = vadd.f32 %v3698, %v3772
      %v3858 = vadd.f32 %v3699, %v3775
      %v3859 = vadd.f32 %v3700, %v3778
      %v3860 = vadd.f32 %v3701, %v3781
      %v3861 = vadd.f32 %v3702, %v3784
      %v3862 = vadd.f32 %v3703, %v3787
      %v3863 = vadd.f32 %v3704, %v3790
      %v3864 = vadd.f32 %v3705, %v3793
      %v3865 = vadd.f32 %v3706, %v3796
      %v3866 = vadd.f32 %v3707, %v3799
      %v3867 = vadd.f32 %v3708, %v3802
      %v3868 = vadd.f32 %v3709, %v3805
      %v3869 = vadd.f32 %v3710, %v3808
      %v3870 = vadd.f32 %v3711, %v3811
      %v3871 = vadd.f32 %v3712, %v3814
      %v3872 = vadd.f32 %v3713, %v3817
      %v3873 = vadd.f32 %v3714, %v3820
      %v3874 = vadd.f32 %v3715, %v3823
      %v3875 = vadd.f32 %v3716, %v3826
      %v3876 = vadd.f32 %v3717, %v3829
      %v3877 = vadd.f32 %v3718, %v3832
      %v3878 = vadd.f32 %v3719, %v3835
      %v3879 = vadd.f32 %v3720, %v3838
      %v3880 = vadd.f32 %v3721, %v3841
      %v3881 = vadd.f32 %v3722, %v3844
      %v3882 = vadd.f32 %v3723, %v3847
      %v3883 = vadd.f32 %v3724, %v3850
      %s3884 = scalar_lea.vmem %s3, 24
      %v3885 = vld [vmem:[%s3884] sm:$0xf]
      %v3887 = vsel %vm637, %v3885, 0
      %3889 = vmatpush.msra.mxu0 0.0
      %3890 = vmatpush.msra.mxu0 0.0
      %3891 = vmatpush.msra.mxu0 0.0
      %3892 = vmatpush.msra.mxu0 0.0
      %3893 = vmatpush.msra.mxu0 0.0
      %3894 = vmatpush.msra.mxu0 0.0
      %3895 = vmatpush.msra.mxu0 0.0
      %3896 = vmatpush.msra.mxu0 0.0
      %3897 = vmatpush.msra.mxu0 0.0
      %3898 = vmatpush.msra.mxu0 0.0
      %3899 = vmatpush.msra.mxu0 0.0
      %3900 = vmatpush.msra.mxu0 0.0
      %3901 = vmatpush.msra.mxu0 0.0
      %3902 = vmatpush.msra.mxu0 0.0
      %3903 = vmatpush.msra.mxu0 0.0
      %3904 = vmatpush.msra.mxu0 %v3887
      %3905 = vmatmul.f32.gmra.mxu0 %v2949
      %v3906 = vpop.f32.mrf.mxu0
      %v3907 = vadd.f32 0.0, %v3906
      %3908 = vmatmul.f32.gmra.mxu0 %v2951
      %v3909 = vpop.f32.mrf.mxu0
      %v3910 = vadd.f32 0.0, %v3909
      %3911 = vmatmul.f32.gmra.mxu0 %v2957
      %v3912 = vpop.f32.mrf.mxu0
      %v3913 = vadd.f32 0.0, %v3912
      %3914 = vmatmul.f32.gmra.mxu0 %v2959
      %v3915 = vpop.f32.mrf.mxu0
      %v3916 = vadd.f32 0.0, %v3915
      %3917 = vmatmul.f32.gmra.mxu0 %v2961
      %v3918 = vpop.f32.mrf.mxu0
      %v3919 = vadd.f32 0.0, %v3918
      %3920 = vmatmul.f32.gmra.mxu0 %v2963
      %v3921 = vpop.f32.mrf.mxu0
      %v3922 = vadd.f32 0.0, %v3921
      %3923 = vmatmul.f32.gmra.mxu0 %v2965
      %v3924 = vpop.f32.mrf.mxu0
      %v3925 = vadd.f32 0.0, %v3924
      %3926 = vmatmul.f32.gmra.mxu0 %v2967
      %v3927 = vpop.f32.mrf.mxu0
      %v3928 = vadd.f32 0.0, %v3927
      %3929 = vmatmul.f32.gmra.mxu0 %v2969
      %v3930 = vpop.f32.mrf.mxu0
      %v3931 = vadd.f32 0.0, %v3930
      %3932 = vmatmul.f32.gmra.mxu0 %v2971
      %v3933 = vpop.f32.mrf.mxu0
      %v3934 = vadd.f32 0.0, %v3933
      %3935 = vmatmul.f32.gmra.mxu0 %v2973
      %v3936 = vpop.f32.mrf.mxu0
      %v3937 = vadd.f32 0.0, %v3936
      %3938 = vmatmul.f32.gmra.mxu0 %v2975
      %v3939 = vpop.f32.mrf.mxu0
      %v3940 = vadd.f32 0.0, %v3939
      %3941 = vmatmul.f32.gmra.mxu0 %v2977
      %v3942 = vpop.f32.mrf.mxu0
      %v3943 = vadd.f32 0.0, %v3942
      %3944 = vmatmul.f32.gmra.mxu0 %v2979
      %v3945 = vpop.f32.mrf.mxu0
      %v3946 = vadd.f32 0.0, %v3945
      %3947 = vmatmul.f32.gmra.mxu0 %v2981
      %v3948 = vpop.f32.mrf.mxu0
      %v3949 = vadd.f32 0.0, %v3948
      %3950 = vmatmul.f32.gmra.mxu0 %v2983
      %v3951 = vpop.f32.mrf.mxu0
      %v3952 = vadd.f32 0.0, %v3951
      %3953 = vmatmul.f32.gmra.mxu0 %v2985
      %v3954 = vpop.f32.mrf.mxu0
      %v3955 = vadd.f32 0.0, %v3954
      %3956 = vmatmul.f32.gmra.mxu0 %v2987
      %v3957 = vpop.f32.mrf.mxu0
      %v3958 = vadd.f32 0.0, %v3957
      %3959 = vmatmul.f32.gmra.mxu0 %v2989
      %v3960 = vpop.f32.mrf.mxu0
      %v3961 = vadd.f32 0.0, %v3960
      %3962 = vmatmul.f32.gmra.mxu0 %v2991
      %v3963 = vpop.f32.mrf.mxu0
      %v3964 = vadd.f32 0.0, %v3963
      %3965 = vmatmul.f32.gmra.mxu0 %v2993
      %v3966 = vpop.f32.mrf.mxu0
      %v3967 = vadd.f32 0.0, %v3966
      %3968 = vmatmul.f32.gmra.mxu0 %v2995
      %v3969 = vpop.f32.mrf.mxu0
      %v3970 = vadd.f32 0.0, %v3969
      %3971 = vmatmul.f32.gmra.mxu0 %v2997
      %v3972 = vpop.f32.mrf.mxu0
      %v3973 = vadd.f32 0.0, %v3972
      %3974 = vmatmul.f32.gmra.mxu0 %v2999
      %v3975 = vpop.f32.mrf.mxu0
      %v3976 = vadd.f32 0.0, %v3975
      %3977 = vmatmul.f32.gmra.mxu0 %v3001
      %v3978 = vpop.f32.mrf.mxu0
      %v3979 = vadd.f32 0.0, %v3978
      %3980 = vmatmul.f32.gmra.mxu0 %v3003
      %v3981 = vpop.f32.mrf.mxu0
      %v3982 = vadd.f32 0.0, %v3981
      %3983 = vmatmul.f32.gmra.mxu0 %v3005
      %v3984 = vpop.f32.mrf.mxu0
      %v3985 = vadd.f32 0.0, %v3984
      %3986 = vmatmul.f32.gmra.mxu0 %v3007
      %v3987 = vpop.f32.mrf.mxu0
      %v3988 = vadd.f32 0.0, %v3987
      %3989 = vmatmul.f32.gmra.mxu0 %v3413
      %v3990 = vpop.f32.mrf.mxu0
      %v3991 = vadd.f32 0.0, %v3990
      %3992 = vmatmul.f32.gmra.mxu0 %v3415
      %v3993 = vpop.f32.mrf.mxu0
      %v3994 = vadd.f32 0.0, %v3993
      %3995 = vmatmul.f32.gmra.mxu0 %v3005
      %v3996 = vpop.f32.mrf.mxu0
      %v3997 = vadd.f32 0.0, %v3996
      %3998 = vmatmul.f32.gmra.mxu0 %v3007
      %v3999 = vpop.f32.mrf.mxu0
      %v4000 = vadd.f32 0.0, %v3999
      %4001 = vdwg.mxu0
      %v4002 = vadd.f32 %v3852, %v3907
      %v4003 = vadd.f32 %v3853, %v3910
      %v4004 = vadd.f32 %v3854, %v3913
      %v4005 = vadd.f32 %v3855, %v3916
      %v4006 = vadd.f32 %v3856, %v3919
      %v4007 = vadd.f32 %v3857, %v3922
      %v4008 = vadd.f32 %v3858, %v3925
      %v4009 = vadd.f32 %v3859, %v3928
      %v4010 = vadd.f32 %v3860, %v3931
      %v4011 = vadd.f32 %v3861, %v3934
      %v4012 = vadd.f32 %v3862, %v3937
      %v4013 = vadd.f32 %v3863, %v3940
      %v4014 = vadd.f32 %v3864, %v3943
      %v4015 = vadd.f32 %v3865, %v3946
      %v4016 = vadd.f32 %v3866, %v3949
      %v4017 = vadd.f32 %v3867, %v3952
      %v4018 = vadd.f32 %v3868, %v3955
      %v4019 = vadd.f32 %v3869, %v3958
      %v4020 = vadd.f32 %v3870, %v3961
      %v4021 = vadd.f32 %v3871, %v3964
      %v4022 = vadd.f32 %v3872, %v3967
      %v4023 = vadd.f32 %v3873, %v3970
      %v4024 = vadd.f32 %v3874, %v3973
      %v4025 = vadd.f32 %v3875, %v3976
      %v4026 = vadd.f32 %v3876, %v3979
      %v4027 = vadd.f32 %v3877, %v3982
      %v4028 = vadd.f32 %v3878, %v3985
      %v4029 = vadd.f32 %v3879, %v3988
      %v4030 = vadd.f32 %v3880, %v3991
      %v4031 = vadd.f32 %v3881, %v3994
      %v4032 = vadd.f32 %v3882, %v3997
      %v4033 = vadd.f32 %v3883, %v4000
      %s4034 = scalar_lea.vmem %s3, 28
      %v4035 = vld [vmem:[%s4034] sm:$0xf]
      %v4037 = vsel %vm637, %v4035, 0
      %4039 = vmatpush.msra.mxu0 0.0
      %4040 = vmatpush.msra.mxu0 0.0
      %4041 = vmatpush.msra.mxu0 0.0
      %4042 = vmatpush.msra.mxu0 0.0
      %4043 = vmatpush.msra.mxu0 0.0
      %4044 = vmatpush.msra.mxu0 0.0
      %4045 = vmatpush.msra.mxu0 0.0
      %4046 = vmatpush.msra.mxu0 0.0
      %4047 = vmatpush.msra.mxu0 0.0
      %4048 = vmatpush.msra.mxu0 0.0
      %4049 = vmatpush.msra.mxu0 0.0
      %4050 = vmatpush.msra.mxu0 0.0
      %4051 = vmatpush.msra.mxu0 0.0
      %4052 = vmatpush.msra.mxu0 0.0
      %4053 = vmatpush.msra.mxu0 0.0
      %4054 = vmatpush.msra.mxu0 %v4037
      %4055 = vmatmul.f32.gmra.mxu0 %v2773
      %v4056 = vpop.f32.mrf.mxu0
      %v4057 = vadd.f32 0.0, %v4056
      %4058 = vmatmul.f32.gmra.mxu0 %v2775
      %v4059 = vpop.f32.mrf.mxu0
      %v4060 = vadd.f32 0.0, %v4059
      %4061 = vmatmul.f32.gmra.mxu0 %v2781
      %v4062 = vpop.f32.mrf.mxu0
      %v4063 = vadd.f32 0.0, %v4062
      %4064 = vmatmul.f32.gmra.mxu0 %v2783
      %v4065 = vpop.f32.mrf.mxu0
      %v4066 = vadd.f32 0.0, %v4065
      %4067 = vmatmul.f32.gmra.mxu0 %v2785
      %v4068 = vpop.f32.mrf.mxu0
      %v4069 = vadd.f32 0.0, %v4068
      %4070 = vmatmul.f32.gmra.mxu0 %v2787
      %v4071 = vpop.f32.mrf.mxu0
      %v4072 = vadd.f32 0.0, %v4071
      %4073 = vmatmul.f32.gmra.mxu0 %v2789
      %v4074 = vpop.f32.mrf.mxu0
      %v4075 = vadd.f32 0.0, %v4074
      %4076 = vmatmul.f32.gmra.mxu0 %v2791
      %v4077 = vpop.f32.mrf.mxu0
      %v4078 = vadd.f32 0.0, %v4077
      %4079 = vmatmul.f32.gmra.mxu0 %v2793
      %v4080 = vpop.f32.mrf.mxu0
      %v4081 = vadd.f32 0.0, %v4080
      %4082 = vmatmul.f32.gmra.mxu0 %v2795
      %v4083 = vpop.f32.mrf.mxu0
      %v4084 = vadd.f32 0.0, %v4083
      %4085 = vmatmul.f32.gmra.mxu0 %v2797
      %v4086 = vpop.f32.mrf.mxu0
      %v4087 = vadd.f32 0.0, %v4086
      %4088 = vmatmul.f32.gmra.mxu0 %v2799
      %v4089 = vpop.f32.mrf.mxu0
      %v4090 = vadd.f32 0.0, %v4089
      %4091 = vmatmul.f32.gmra.mxu0 %v2801
      %v4092 = vpop.f32.mrf.mxu0
      %v4093 = vadd.f32 0.0, %v4092
      %4094 = vmatmul.f32.gmra.mxu0 %v2803
      %v4095 = vpop.f32.mrf.mxu0
      %v4096 = vadd.f32 0.0, %v4095
      %4097 = vmatmul.f32.gmra.mxu0 %v2805
      %v4098 = vpop.f32.mrf.mxu0
      %v4099 = vadd.f32 0.0, %v4098
      %4100 = vmatmul.f32.gmra.mxu0 %v2807
      %v4101 = vpop.f32.mrf.mxu0
      %v4102 = vadd.f32 0.0, %v4101
      %4103 = vmatmul.f32.gmra.mxu0 %v2809
      %v4104 = vpop.f32.mrf.mxu0
      %v4105 = vadd.f32 0.0, %v4104
      %4106 = vmatmul.f32.gmra.mxu0 %v2811
      %v4107 = vpop.f32.mrf.mxu0
      %v4108 = vadd.f32 0.0, %v4107
      %4109 = vmatmul.f32.gmra.mxu0 %v2813
      %v4110 = vpop.f32.mrf.mxu0
      %v4111 = vadd.f32 0.0, %v4110
      %4112 = vmatmul.f32.gmra.mxu0 %v2815
      %v4113 = vpop.f32.mrf.mxu0
      %v4114 = vadd.f32 0.0, %v4113
      %4115 = vmatmul.f32.gmra.mxu0 %v2817
      %v4116 = vpop.f32.mrf.mxu0
      %v4117 = vadd.f32 0.0, %v4116
      %4118 = vmatmul.f32.gmra.mxu0 %v2819
      %v4119 = vpop.f32.mrf.mxu0
      %v4120 = vadd.f32 0.0, %v4119
      %4121 = vmatmul.f32.gmra.mxu0 %v2821
      %v4122 = vpop.f32.mrf.mxu0
      %v4123 = vadd.f32 0.0, %v4122
      %4124 = vmatmul.f32.gmra.mxu0 %v2823
      %v4125 = vpop.f32.mrf.mxu0
      %v4126 = vadd.f32 0.0, %v4125
      %4127 = vmatmul.f32.gmra.mxu0 %v2825
      %v4128 = vpop.f32.mrf.mxu0
      %v4129 = vadd.f32 0.0, %v4128
      %4130 = vmatmul.f32.gmra.mxu0 %v2827
      %v4131 = vpop.f32.mrf.mxu0
      %v4132 = vadd.f32 0.0, %v4131
      %4133 = vmatmul.f32.gmra.mxu0 %v2829
      %v4134 = vpop.f32.mrf.mxu0
      %v4135 = vadd.f32 0.0, %v4134
      %4136 = vmatmul.f32.gmra.mxu0 %v2831
      %v4137 = vpop.f32.mrf.mxu0
      %v4138 = vadd.f32 0.0, %v4137
      %4139 = vmatmul.f32.gmra.mxu0 %v3573
      %v4140 = vpop.f32.mrf.mxu0
      %v4141 = vadd.f32 0.0, %v4140
      %4142 = vmatmul.f32.gmra.mxu0 %v3575
      %v4143 = vpop.f32.mrf.mxu0
      %v4144 = vadd.f32 0.0, %v4143
      %4145 = vmatmul.f32.gmra.mxu0 %v2829
      %v4146 = vpop.f32.mrf.mxu0
      %v4147 = vadd.f32 0.0, %v4146
      %4148 = vmatmul.f32.gmra.mxu0 %v2831
      %v4149 = vpop.f32.mrf.mxu0
      %v4150 = vadd.f32 0.0, %v4149
      %4151 = vdwg.mxu0
      %v4152 = vadd.f32 %v4002, %v4057
      %v4153 = vadd.f32 %v4003, %v4060
      %v4154 = vadd.f32 %v4004, %v4063
      %v4155 = vadd.f32 %v4005, %v4066
      %v4156 = vadd.f32 %v4006, %v4069
      %v4157 = vadd.f32 %v4007, %v4072
      %v4158 = vadd.f32 %v4008, %v4075
      %v4159 = vadd.f32 %v4009, %v4078
      %v4160 = vadd.f32 %v4010, %v4081
      %v4161 = vadd.f32 %v4011, %v4084
      %v4162 = vadd.f32 %v4012, %v4087
      %v4163 = vadd.f32 %v4013, %v4090
      %v4164 = vadd.f32 %v4014, %v4093
      %v4165 = vadd.f32 %v4015, %v4096
      %v4166 = vadd.f32 %v4016, %v4099
      %v4167 = vadd.f32 %v4017, %v4102
      %v4168 = vadd.f32 %v4018, %v4105
      %v4169 = vadd.f32 %v4019, %v4108
      %v4170 = vadd.f32 %v4020, %v4111
      %v4171 = vadd.f32 %v4021, %v4114
      %v4172 = vadd.f32 %v4022, %v4117
      %v4173 = vadd.f32 %v4023, %v4120
      %v4174 = vadd.f32 %v4024, %v4123
      %v4175 = vadd.f32 %v4025, %v4126
      %v4176 = vadd.f32 %v4026, %v4129
      %v4177 = vadd.f32 %v4027, %v4132
      %v4178 = vadd.f32 %v4028, %v4135
      %v4179 = vadd.f32 %v4029, %v4138
      %v4180 = vadd.f32 %v4030, %v4141
      %v4181 = vadd.f32 %v4031, %v4144
      %v4182 = vadd.f32 %v4032, %v4147
      %v4183 = vadd.f32 %v4033, %v4150
      %s4184 = scalar_lea.vmem %s3, 32
      %v4185 = vld [vmem:[%s4184] sm:$0xf]
      %v4187 = vsel %vm637, %v4185, 0
      %4189 = vmatpush.msra.mxu0 0.0
      %4190 = vmatpush.msra.mxu0 0.0
      %4191 = vmatpush.msra.mxu0 0.0
      %4192 = vmatpush.msra.mxu0 0.0
      %4193 = vmatpush.msra.mxu0 0.0
      %4194 = vmatpush.msra.mxu0 0.0
      %4195 = vmatpush.msra.mxu0 0.0
      %4196 = vmatpush.msra.mxu0 0.0
      %4197 = vmatpush.msra.mxu0 0.0
      %4198 = vmatpush.msra.mxu0 0.0
      %4199 = vmatpush.msra.mxu0 0.0
      %4200 = vmatpush.msra.mxu0 0.0
      %4201 = vmatpush.msra.mxu0 0.0
      %4202 = vmatpush.msra.mxu0 0.0
      %4203 = vmatpush.msra.mxu0 0.0
      %4204 = vmatpush.msra.mxu0 %v4187
      %4205 = vmatmul.f32.gmra.mxu0 %v3202
      %v4206 = vpop.f32.mrf.mxu0
      %v4207 = vadd.f32 0.0, %v4206
      %4208 = vmatmul.f32.gmra.mxu0 %v3204
      %v4209 = vpop.f32.mrf.mxu0
      %v4210 = vadd.f32 0.0, %v4209
      %4211 = vmatmul.f32.gmra.mxu0 %v3210
      %v4212 = vpop.f32.mrf.mxu0
      %v4213 = vadd.f32 0.0, %v4212
      %4214 = vmatmul.f32.gmra.mxu0 %v3212
      %v4215 = vpop.f32.mrf.mxu0
      %v4216 = vadd.f32 0.0, %v4215
      %4217 = vmatmul.f32.gmra.mxu0 %v3214
      %v4218 = vpop.f32.mrf.mxu0
      %v4219 = vadd.f32 0.0, %v4218
      %4220 = vmatmul.f32.gmra.mxu0 %v3216
      %v4221 = vpop.f32.mrf.mxu0
      %v4222 = vadd.f32 0.0, %v4221
      %4223 = vmatmul.f32.gmra.mxu0 %v3218
      %v4224 = vpop.f32.mrf.mxu0
      %v4225 = vadd.f32 0.0, %v4224
      %4226 = vmatmul.f32.gmra.mxu0 %v3220
      %v4227 = vpop.f32.mrf.mxu0
      %v4228 = vadd.f32 0.0, %v4227
      %4229 = vmatmul.f32.gmra.mxu0 %v3222
      %v4230 = vpop.f32.mrf.mxu0
      %v4231 = vadd.f32 0.0, %v4230
      %4232 = vmatmul.f32.gmra.mxu0 %v3224
      %v4233 = vpop.f32.mrf.mxu0
      %v4234 = vadd.f32 0.0, %v4233
      %4235 = vmatmul.f32.gmra.mxu0 %v3226
      %v4236 = vpop.f32.mrf.mxu0
      %v4237 = vadd.f32 0.0, %v4236
      %4238 = vmatmul.f32.gmra.mxu0 %v3228
      %v4239 = vpop.f32.mrf.mxu0
      %v4240 = vadd.f32 0.0, %v4239
      %4241 = vmatmul.f32.gmra.mxu0 %v3230
      %v4242 = vpop.f32.mrf.mxu0
      %v4243 = vadd.f32 0.0, %v4242
      %4244 = vmatmul.f32.gmra.mxu0 %v3232
      %v4245 = vpop.f32.mrf.mxu0
      %v4246 = vadd.f32 0.0, %v4245
      %4247 = vmatmul.f32.gmra.mxu0 %v3234
      %v4248 = vpop.f32.mrf.mxu0
      %v4249 = vadd.f32 0.0, %v4248
      %4250 = vmatmul.f32.gmra.mxu0 %v3236
      %v4251 = vpop.f32.mrf.mxu0
      %v4252 = vadd.f32 0.0, %v4251
      %4253 = vmatmul.f32.gmra.mxu0 %v3238
      %v4254 = vpop.f32.mrf.mxu0
      %v4255 = vadd.f32 0.0, %v4254
      %4256 = vmatmul.f32.gmra.mxu0 %v3240
      %v4257 = vpop.f32.mrf.mxu0
      %v4258 = vadd.f32 0.0, %v4257
      %4259 = vmatmul.f32.gmra.mxu0 %v3242
      %v4260 = vpop.f32.mrf.mxu0
      %v4261 = vadd.f32 0.0, %v4260
      %4262 = vmatmul.f32.gmra.mxu0 %v3244
      %v4263 = vpop.f32.mrf.mxu0
      %v4264 = vadd.f32 0.0, %v4263
      %4265 = vmatmul.f32.gmra.mxu0 %v3246
      %v4266 = vpop.f32.mrf.mxu0
      %v4267 = vadd.f32 0.0, %v4266
      %4268 = vmatmul.f32.gmra.mxu0 %v3248
      %v4269 = vpop.f32.mrf.mxu0
      %v4270 = vadd.f32 0.0, %v4269
      %4271 = vmatmul.f32.gmra.mxu0 %v3250
      %v4272 = vpop.f32.mrf.mxu0
      %v4273 = vadd.f32 0.0, %v4272
      %4274 = vmatmul.f32.gmra.mxu0 %v3252
      %v4275 = vpop.f32.mrf.mxu0
      %v4276 = vadd.f32 0.0, %v4275
      %4277 = vmatmul.f32.gmra.mxu0 %v3254
      %v4278 = vpop.f32.mrf.mxu0
      %v4279 = vadd.f32 0.0, %v4278
      %4280 = vmatmul.f32.gmra.mxu0 %v3256
      %v4281 = vpop.f32.mrf.mxu0
      %v4282 = vadd.f32 0.0, %v4281
      %4283 = vmatmul.f32.gmra.mxu0 %v3258
      %v4284 = vpop.f32.mrf.mxu0
      %v4285 = vadd.f32 0.0, %v4284
      %4286 = vmatmul.f32.gmra.mxu0 %v3260
      %v4287 = vpop.f32.mrf.mxu0
      %v4288 = vadd.f32 0.0, %v4287
      %4289 = vmatmul.f32.gmra.mxu0 %v3732
      %v4290 = vpop.f32.mrf.mxu0
      %v4291 = vadd.f32 0.0, %v4290
      %4292 = vmatmul.f32.gmra.mxu0 %v3734
      %v4293 = vpop.f32.mrf.mxu0
      %v4294 = vadd.f32 0.0, %v4293
      %4295 = vmatmul.f32.gmra.mxu0 %v3258
      %v4296 = vpop.f32.mrf.mxu0
      %v4297 = vadd.f32 0.0, %v4296
      %4298 = vmatmul.f32.gmra.mxu0 %v3260
      %v4299 = vpop.f32.mrf.mxu0
      %v4300 = vadd.f32 0.0, %v4299
      %4301 = vdwg.mxu0
      %v4302 = vadd.f32 %v4152, %v4207
      %v4303 = vadd.f32 %v4153, %v4210
      %v4304 = vadd.f32 %v4154, %v4213
      %v4305 = vadd.f32 %v4155, %v4216
      %v4306 = vadd.f32 %v4156, %v4219
      %v4307 = vadd.f32 %v4157, %v4222
      %v4308 = vadd.f32 %v4158, %v4225
      %v4309 = vadd.f32 %v4159, %v4228
      %v4310 = vadd.f32 %v4160, %v4231
      %v4311 = vadd.f32 %v4161, %v4234
      %v4312 = vadd.f32 %v4162, %v4237
      %v4313 = vadd.f32 %v4163, %v4240
      %v4314 = vadd.f32 %v4164, %v4243
      %v4315 = vadd.f32 %v4165, %v4246
      %v4316 = vadd.f32 %v4166, %v4249
      %v4317 = vadd.f32 %v4167, %v4252
      %v4318 = vadd.f32 %v4168, %v4255
      %v4319 = vadd.f32 %v4169, %v4258
      %v4320 = vadd.f32 %v4170, %v4261
      %v4321 = vadd.f32 %v4171, %v4264
      %v4322 = vadd.f32 %v4172, %v4267
      %v4323 = vadd.f32 %v4173, %v4270
      %v4324 = vadd.f32 %v4174, %v4273
      %v4325 = vadd.f32 %v4175, %v4276
      %v4326 = vadd.f32 %v4176, %v4279
      %v4327 = vadd.f32 %v4177, %v4282
      %v4328 = vadd.f32 %v4178, %v4285
      %v4329 = vadd.f32 %v4179, %v4288
      %v4330 = vadd.f32 %v4180, %v4291
      %v4331 = vadd.f32 %v4181, %v4294
      %v4332 = vadd.f32 %v4182, %v4297
      %v4333 = vadd.f32 %v4183, %v4300
      %v4335 = vperm.slane %v2664, 0
      %v4337 = vadd.f32 %v4302, %v4335
      %v4338 = vadd.f32 %v4303, %v4335
      %v4339 = vadd.f32 %v4304, %v4335
      %v4340 = vadd.f32 %v4305, %v4335
      %v4341 = vadd.f32 %v4306, %v4335
      %v4342 = vadd.f32 %v4307, %v4335
      %v4343 = vadd.f32 %v4308, %v4335
      %v4344 = vadd.f32 %v4309, %v4335
      %v4345 = vadd.f32 %v4310, %v4335
      %v4346 = vadd.f32 %v4311, %v4335
      %v4347 = vadd.f32 %v4312, %v4335
      %v4348 = vadd.f32 %v4313, %v4335
      %v4349 = vadd.f32 %v4314, %v4335
      %v4350 = vadd.f32 %v4315, %v4335
      %v4351 = vadd.f32 %v4316, %v4335
      %v4352 = vadd.f32 %v4317, %v4335
      %v4353 = vadd.f32 %v4318, %v4335
      %v4354 = vadd.f32 %v4319, %v4335
      %v4355 = vadd.f32 %v4320, %v4335
      %v4356 = vadd.f32 %v4321, %v4335
      %v4357 = vadd.f32 %v4322, %v4335
      %v4358 = vadd.f32 %v4323, %v4335
      %v4359 = vadd.f32 %v4324, %v4335
      %v4360 = vadd.f32 %v4325, %v4335
      %v4361 = vadd.f32 %v4326, %v4335
      %v4362 = vadd.f32 %v4327, %v4335
      %v4363 = vadd.f32 %v4328, %v4335
      %v4364 = vadd.f32 %v4329, %v4335
      %v4365 = vadd.f32 %v4330, %v4335
      %v4366 = vadd.f32 %v4331, %v4335
      %v4367 = vadd.f32 %v4332, %v4335
      %v4368 = vadd.f32 %v4333, %v4335
      %v4369 = vsel %vm576, %v4337, 0.0
      %v4370 = vsel %vm576, %v4338, 0.0
      %v4371 = vadd.f32 %v4369, %v4370
      %v4372 = vsel %vm576, %v4339, 0.0
      %v4373 = vadd.f32 %v4371, %v4372
      %v4374 = vsel %vm576, %v4340, 0.0
      %v4375 = vadd.f32 %v4373, %v4374
      %v4376 = vsel %vm576, %v4341, 0.0
      %v4377 = vadd.f32 %v4375, %v4376
      %v4378 = vsel %vm576, %v4342, 0.0
      %v4379 = vadd.f32 %v4377, %v4378
      %v4380 = vsel %vm576, %v4343, 0.0
      %v4381 = vadd.f32 %v4379, %v4380
      %v4382 = vsel %vm576, %v4344, 0.0
      %v4383 = vadd.f32 %v4381, %v4382
      %v4384 = vsel %vm576, %v4345, 0.0
      %v4385 = vadd.f32 %v4383, %v4384
      %v4386 = vsel %vm576, %v4346, 0.0
      %v4387 = vadd.f32 %v4385, %v4386
      %v4388 = vsel %vm576, %v4347, 0.0
      %v4389 = vadd.f32 %v4387, %v4388
      %v4390 = vsel %vm576, %v4348, 0.0
      %v4391 = vadd.f32 %v4389, %v4390
      %v4392 = vsel %vm576, %v4349, 0.0
      %v4393 = vadd.f32 %v4391, %v4392
      %v4394 = vsel %vm576, %v4350, 0.0
      %v4395 = vadd.f32 %v4393, %v4394
      %v4396 = vsel %vm576, %v4351, 0.0
      %v4397 = vadd.f32 %v4395, %v4396
      %v4398 = vsel %vm576, %v4352, 0.0
      %v4399 = vadd.f32 %v4397, %v4398
      %v4400 = vsel %vm576, %v4353, 0.0
      %v4401 = vadd.f32 %v4399, %v4400
      %v4402 = vsel %vm576, %v4354, 0.0
      %v4403 = vadd.f32 %v4401, %v4402
      %v4404 = vsel %vm576, %v4355, 0.0
      %v4405 = vadd.f32 %v4403, %v4404
      %v4406 = vsel %vm576, %v4356, 0.0
      %v4407 = vadd.f32 %v4405, %v4406
      %v4408 = vsel %vm576, %v4357, 0.0
      %v4409 = vadd.f32 %v4407, %v4408
      %v4410 = vsel %vm576, %v4358, 0.0
      %v4411 = vadd.f32 %v4409, %v4410
      %v4412 = vsel %vm576, %v4359, 0.0
      %v4413 = vadd.f32 %v4411, %v4412
      %v4414 = vsel %vm576, %v4360, 0.0
      %v4415 = vadd.f32 %v4413, %v4414
      %v4416 = vsel %vm576, %v4361, 0.0
      %v4417 = vadd.f32 %v4415, %v4416
      %v4418 = vsel %vm576, %v4362, 0.0
      %v4419 = vadd.f32 %v4417, %v4418
      %v4420 = vsel %vm576, %v4363, 0.0
      %v4421 = vadd.f32 %v4419, %v4420
      %v4422 = vsel %vm576, %v4364, 0.0
      %v4423 = vadd.f32 %v4421, %v4422
      %v4424 = vsel %vm576, %v4365, 0.0
      %v4425 = vadd.f32 %v4423, %v4424
      %v4426 = vsel %vm576, %v4366, 0.0
      %v4427 = vadd.f32 %v4425, %v4426
      %v4428 = vsel %vm576, %v4367, 0.0
      %v4429 = vadd.f32 %v4427, %v4428
      %v4430 = vsel %vm576, %v4368, 0.0
      %v4431 = vadd.f32 %v4429, %v4430
      %v4432 = vrot.slane %v4431, 4
      %v4433 = vadd.f32 %v4431, %v4432
      %v4434 = vrot.slane %v4433, 2
      %v4435 = vadd.f32 %v4433, %v4434
      %v4436 = vrot.slane %v4435, 1
      %v4437 = vadd.f32 %v4435, %v4436
      %v4438 = vmul.f32 %v4437, 0.00390625
      %v4439 = vmul.f32 %v4337, %v4337
      %v4440 = vmul.f32 %v4338, %v4338
      %v4441 = vmul.f32 %v4339, %v4339
      %v4442 = vmul.f32 %v4340, %v4340
      %v4443 = vmul.f32 %v4341, %v4341
      %v4444 = vmul.f32 %v4342, %v4342
      %v4445 = vmul.f32 %v4343, %v4343
      %v4446 = vmul.f32 %v4344, %v4344
      %v4447 = vmul.f32 %v4345, %v4345
      %v4448 = vmul.f32 %v4346, %v4346
      %v4449 = vmul.f32 %v4347, %v4347
      %v4450 = vmul.f32 %v4348, %v4348
      %v4451 = vmul.f32 %v4349, %v4349
      %v4452 = vmul.f32 %v4350, %v4350
      %v4453 = vmul.f32 %v4351, %v4351
      %v4454 = vmul.f32 %v4352, %v4352
      %v4455 = vmul.f32 %v4353, %v4353
      %v4456 = vmul.f32 %v4354, %v4354
      %v4457 = vmul.f32 %v4355, %v4355
      %v4458 = vmul.f32 %v4356, %v4356
      %v4459 = vmul.f32 %v4357, %v4357
      %v4460 = vmul.f32 %v4358, %v4358
      %v4461 = vmul.f32 %v4359, %v4359
      %v4462 = vmul.f32 %v4360, %v4360
      %v4463 = vmul.f32 %v4361, %v4361
      %v4464 = vmul.f32 %v4362, %v4362
      %v4465 = vmul.f32 %v4363, %v4363
      %v4466 = vmul.f32 %v4364, %v4364
      %v4467 = vmul.f32 %v4365, %v4365
      %v4468 = vmul.f32 %v4366, %v4366
      %v4469 = vmul.f32 %v4367, %v4367
      %v4470 = vmul.f32 %v4368, %v4368
      %v4471 = vsel %vm576, %v4439, 0.0
      %v4472 = vsel %vm576, %v4440, 0.0
      %v4473 = vadd.f32 %v4471, %v4472
      %v4474 = vsel %vm576, %v4441, 0.0
      %v4475 = vadd.f32 %v4473, %v4474
      %v4476 = vsel %vm576, %v4442, 0.0
      %v4477 = vadd.f32 %v4475, %v4476
      %v4478 = vsel %vm576, %v4443, 0.0
      %v4479 = vadd.f32 %v4477, %v4478
      %v4480 = vsel %vm576, %v4444, 0.0
      %v4481 = vadd.f32 %v4479, %v4480
      %v4482 = vsel %vm576, %v4445, 0.0
      %v4483 = vadd.f32 %v4481, %v4482
      %v4484 = vsel %vm576, %v4446, 0.0
      %v4485 = vadd.f32 %v4483, %v4484
      %v4486 = vsel %vm576, %v4447, 0.0
      %v4487 = vadd.f32 %v4485, %v4486
      %v4488 = vsel %vm576, %v4448, 0.0
      %v4489 = vadd.f32 %v4487, %v4488
      %v4490 = vsel %vm576, %v4449, 0.0
      %v4491 = vadd.f32 %v4489, %v4490
      %v4492 = vsel %vm576, %v4450, 0.0
      %v4493 = vadd.f32 %v4491, %v4492
      %v4494 = vsel %vm576, %v4451, 0.0
      %v4495 = vadd.f32 %v4493, %v4494
      %v4496 = vsel %vm576, %v4452, 0.0
      %v4497 = vadd.f32 %v4495, %v4496
      %v4498 = vsel %vm576, %v4453, 0.0
      %v4499 = vadd.f32 %v4497, %v4498
      %v4500 = vsel %vm576, %v4454, 0.0
      %v4501 = vadd.f32 %v4499, %v4500
      %v4502 = vsel %vm576, %v4455, 0.0
      %v4503 = vadd.f32 %v4501, %v4502
      %v4504 = vsel %vm576, %v4456, 0.0
      %v4505 = vadd.f32 %v4503, %v4504
      %v4506 = vsel %vm576, %v4457, 0.0
      %v4507 = vadd.f32 %v4505, %v4506
      %v4508 = vsel %vm576, %v4458, 0.0
      %v4509 = vadd.f32 %v4507, %v4508
      %v4510 = vsel %vm576, %v4459, 0.0
      %v4511 = vadd.f32 %v4509, %v4510
      %v4512 = vsel %vm576, %v4460, 0.0
      %v4513 = vadd.f32 %v4511, %v4512
      %v4514 = vsel %vm576, %v4461, 0.0
      %v4515 = vadd.f32 %v4513, %v4514
      %v4516 = vsel %vm576, %v4462, 0.0
      %v4517 = vadd.f32 %v4515, %v4516
      %v4518 = vsel %vm576, %v4463, 0.0
      %v4519 = vadd.f32 %v4517, %v4518
      %v4520 = vsel %vm576, %v4464, 0.0
      %v4521 = vadd.f32 %v4519, %v4520
      %v4522 = vsel %vm576, %v4465, 0.0
      %v4523 = vadd.f32 %v4521, %v4522
      %v4524 = vsel %vm576, %v4466, 0.0
      %v4525 = vadd.f32 %v4523, %v4524
      %v4526 = vsel %vm576, %v4467, 0.0
      %v4527 = vadd.f32 %v4525, %v4526
      %v4528 = vsel %vm576, %v4468, 0.0
      %v4529 = vadd.f32 %v4527, %v4528
      %v4530 = vsel %vm576, %v4469, 0.0
      %v4531 = vadd.f32 %v4529, %v4530
      %v4532 = vsel %vm576, %v4470, 0.0
      %v4533 = vadd.f32 %v4531, %v4532
      %v4534 = vrot.slane %v4533, 4
      %v4535 = vadd.f32 %v4533, %v4534
      %v4536 = vrot.slane %v4535, 2
      %v4537 = vadd.f32 %v4535, %v4536
      %v4538 = vrot.slane %v4537, 1
      %v4539 = vadd.f32 %v4537, %v4538
      %v4540 = vmul.f32 %v4539, 0.00390625
      %v4541 = vmul.f32 %v4438, %v4438
      %v4542 = vsub.f32 %v4540, %v4541
      %v4543 = vsub.f32 %v4337, %v4438
      %v4544 = vsub.f32 %v4338, %v4438
      %v4545 = vsub.f32 %v4339, %v4438
      %v4546 = vsub.f32 %v4340, %v4438
      %v4547 = vsub.f32 %v4341, %v4438
      %v4548 = vsub.f32 %v4342, %v4438
      %v4549 = vsub.f32 %v4343, %v4438
      %v4550 = vsub.f32 %v4344, %v4438
      %v4551 = vsub.f32 %v4345, %v4438
      %v4552 = vsub.f32 %v4346, %v4438
      %v4553 = vsub.f32 %v4347, %v4438
      %v4554 = vsub.f32 %v4348, %v4438
      %v4555 = vsub.f32 %v4349, %v4438
      %v4556 = vsub.f32 %v4350, %v4438
      %v4557 = vsub.f32 %v4351, %v4438
      %v4558 = vsub.f32 %v4352, %v4438
      %v4559 = vsub.f32 %v4353, %v4438
      %v4560 = vsub.f32 %v4354, %v4438
      %v4561 = vsub.f32 %v4355, %v4438
      %v4562 = vsub.f32 %v4356, %v4438
      %v4563 = vsub.f32 %v4357, %v4438
      %v4564 = vsub.f32 %v4358, %v4438
      %v4565 = vsub.f32 %v4359, %v4438
      %v4566 = vsub.f32 %v4360, %v4438
      %v4567 = vsub.f32 %v4361, %v4438
      %v4568 = vsub.f32 %v4362, %v4438
      %v4569 = vsub.f32 %v4363, %v4438
      %v4570 = vsub.f32 %v4364, %v4438
      %v4571 = vsub.f32 %v4365, %v4438
      %v4572 = vsub.f32 %v4366, %v4438
      %v4573 = vsub.f32 %v4367, %v4438
      %v4574 = vsub.f32 %v4368, %v4438
      %v4575 = vadd.f32 %v4542, 1e-05
      %v4576 = vrsqrt.pop %v4575
      %v4577 = vmul.f32 %v4576, %v4575
      %v4578 = vmul.f32 %v4577, %v4576
      %v4579 = vmul.f32 0.5, %v4578
      %v4580 = vsub.f32 1.5, %v4579
      %v4581 = vmul.f32 %v4576, %v4580
      %vm4582 = vweird.f32 %v4575
      %vm4583 = vweird.f32 %v4576
      %vm4584 = vmor %vm4582, %vm4583
      %v4585 = vsel %vm4584, %v4576, %v4581
      %v4586 = vmul.f32 %v4543, %v4585
      %v4587 = vmul.f32 %v4544, %v4585
      %v4588 = vmul.f32 %v4545, %v4585
      %v4589 = vmul.f32 %v4546, %v4585
      %v4590 = vmul.f32 %v4547, %v4585
      %v4591 = vmul.f32 %v4548, %v4585
      %v4592 = vmul.f32 %v4549, %v4585
      %v4593 = vmul.f32 %v4550, %v4585
      %v4594 = vmul.f32 %v4551, %v4585
      %v4595 = vmul.f32 %v4552, %v4585
      %v4596 = vmul.f32 %v4553, %v4585
      %v4597 = vmul.f32 %v4554, %v4585
      %v4598 = vmul.f32 %v4555, %v4585
      %v4599 = vmul.f32 %v4556, %v4585
      %v4600 = vmul.f32 %v4557, %v4585
      %v4601 = vmul.f32 %v4558, %v4585
      %v4602 = vmul.f32 %v4559, %v4585
      %v4603 = vmul.f32 %v4560, %v4585
      %v4604 = vmul.f32 %v4561, %v4585
      %v4605 = vmul.f32 %v4562, %v4585
      %v4606 = vmul.f32 %v4563, %v4585
      %v4607 = vmul.f32 %v4564, %v4585
      %v4608 = vmul.f32 %v4565, %v4585
      %v4609 = vmul.f32 %v4566, %v4585
      %v4610 = vmul.f32 %v4567, %v4585
      %v4611 = vmul.f32 %v4568, %v4585
      %v4612 = vmul.f32 %v4569, %v4585
      %v4613 = vmul.f32 %v4570, %v4585
      %v4614 = vmul.f32 %v4571, %v4585
      %v4615 = vmul.f32 %v4572, %v4585
      %v4616 = vmul.f32 %v4573, %v4585
      %v4617 = vmul.f32 %v4574, %v4585
      %v4618 = vadd.f32 %v225, %v4586
      %v4619 = vadd.f32 %v226, %v4587
      %v4620 = vadd.f32 %v227, %v4588
      %v4621 = vadd.f32 %v228, %v4589
      %v4622 = vadd.f32 %v229, %v4590
      %v4623 = vadd.f32 %v230, %v4591
      %v4624 = vadd.f32 %v231, %v4592
      %v4625 = vadd.f32 %v232, %v4593
      %v4626 = vadd.f32 %v233, %v4594
      %v4627 = vadd.f32 %v234, %v4595
      %v4628 = vadd.f32 %v235, %v4596
      %v4629 = vadd.f32 %v236, %v4597
      %v4630 = vadd.f32 %v237, %v4598
      %v4631 = vadd.f32 %v238, %v4599
      %v4632 = vadd.f32 %v239, %v4600
      %v4633 = vadd.f32 %v240, %v4601
      %v4634 = vadd.f32 %v241, %v4602
      %v4635 = vadd.f32 %v242, %v4603
      %v4636 = vadd.f32 %v243, %v4604
      %v4637 = vadd.f32 %v244, %v4605
      %v4638 = vadd.f32 %v245, %v4606
      %v4639 = vadd.f32 %v246, %v4607
      %v4640 = vadd.f32 %v247, %v4608
      %v4641 = vadd.f32 %v248, %v4609
      %v4642 = vadd.f32 %v249, %v4610
      %v4643 = vadd.f32 %v250, %v4611
      %v4644 = vadd.f32 %v251, %v4612
      %v4645 = vadd.f32 %v252, %v4613
      %v4646 = vadd.f32 %v253, %v4614
      %v4647 = vadd.f32 %v254, %v4615
      %v4648 = vadd.f32 %v255, %v4616
      %v4649 = vadd.f32 %v256, %v4617
      %4650 = vst.msk [vmem:[%s224] sm:$0xff] %vm576, %v4618
      %4651 = vst.msk [vmem:[%s224 + $0x8] sm:$0xff] %vm576, %v4619
      %4652 = vst.msk [vmem:[%s224 + $0x10] sm:$0xff] %vm576, %v4620
      %4653 = vst.msk [vmem:[%s224 + $0x18] sm:$0xff] %vm576, %v4621
      %4654 = vst.msk [vmem:[%s224 + $0x20] sm:$0xff] %vm576, %v4622
      %4655 = vst.msk [vmem:[%s224 + $0x28] sm:$0xff] %vm576, %v4623
      %4656 = vst.msk [vmem:[%s224 + $0x30] sm:$0xff] %vm576, %v4624
      %4657 = vst.msk [vmem:[%s224 + $0x38] sm:$0xff] %vm576, %v4625
      %4658 = vst.msk [vmem:[%s224 + $0x40] sm:$0xff] %vm576, %v4626
      %4659 = vst.msk [vmem:[%s224 + $0x48] sm:$0xff] %vm576, %v4627
      %4660 = vst.msk [vmem:[%s224 + $0x50] sm:$0xff] %vm576, %v4628
      %4661 = vst.msk [vmem:[%s224 + $0x58] sm:$0xff] %vm576, %v4629
      %4662 = vst.msk [vmem:[%s224 + $0x60] sm:$0xff] %vm576, %v4630
      %4663 = vst.msk [vmem:[%s224 + $0x68] sm:$0xff] %vm576, %v4631
      %4664 = vst.msk [vmem:[%s224 + $0x70] sm:$0xff] %vm576, %v4632
      %4665 = vst.msk [vmem:[%s224 + $0x78] sm:$0xff] %vm576, %v4633
      %4666 = vst.msk [vmem:[%s224 + $0x80] sm:$0xff] %vm576, %v4634
      %4667 = vst.msk [vmem:[%s224 + $0x88] sm:$0xff] %vm576, %v4635
      %4668 = vst.msk [vmem:[%s224 + $0x90] sm:$0xff] %vm576, %v4636
      %4669 = vst.msk [vmem:[%s224 + $0x98] sm:$0xff] %vm576, %v4637
      %4670 = vst.msk [vmem:[%s224 + $0xa0] sm:$0xff] %vm576, %v4638
      %4671 = vst.msk [vmem:[%s224 + $0xa8] sm:$0xff] %vm576, %v4639
      %4672 = vst.msk [vmem:[%s224 + $0xb0] sm:$0xff] %vm576, %v4640
      %4673 = vst.msk [vmem:[%s224 + $0xb8] sm:$0xff] %vm576, %v4641
      %4674 = vst.msk [vmem:[%s224 + $0xc0] sm:$0xff] %vm576, %v4642
      %4675 = vst.msk [vmem:[%s224 + $0xc8] sm:$0xff] %vm576, %v4643
      %4676 = vst.msk [vmem:[%s224 + $0xd0] sm:$0xff] %vm576, %v4644
      %4677 = vst.msk [vmem:[%s224 + $0xd8] sm:$0xff] %vm576, %v4645
      %4678 = vst.msk [vmem:[%s224 + $0xe0] sm:$0xff] %vm576, %v4646
      %4679 = vst.msk [vmem:[%s224 + $0xe8] sm:$0xff] %vm576, %v4647
      %4680 = vst.msk [vmem:[%s224 + $0xf0] sm:$0xff] %vm576, %v4648
      %4681 = vst.msk [vmem:[%s224 + $0xf8] sm:$0xff] %vm576, %v4649
      %p4682 = scmp.lt.s32.totalorder %s16, 1
      %s4683 = scalar_select %p4682, %s16, 1
      %s4684 = smul.addr %s4683, 32
      %s4685 = smul.addr %s4684, 8
      %s4686 = scalar_lea.vmem %s5, %s4685
      // Predicated region
      $region41: #{residual_block.1} parent=39 // pred_check
        %p4687 = pneg %p144
      $region42: #{residual_block.1} parent=39 // pred_check_branch
        %4689 = sbr.rel (%p4687) target = $region44
      $region43: #{residual_block.1} parent=39 // pred_region
        _
      $region44: #{residual_block.1} parent=39 // pred_fallthru
        _
    $region40: #{residual_block.1} parent=5 // pred_fallthru
      _
    %p4690 = scmp.le.s32.totalorder 2, %s11
    // Predicated region
    $region45: #{residual_block.1} parent=5 // pred_check
      %p4691 = pneg %p4690
    $region46: #{residual_block.1} parent=5 // pred_check_branch
      %4693 = sbr.rel (%p4691) target = $region48
    $region47: #{residual_block.1} parent=5 // pred_region
      %s4694 = ssub.s32 %s11, 2
      // Predicated region
      $region49: #{residual_block.1} parent=47 // pred_check
        %p4695 = pneg %p150
      $region50: #{residual_block.1} parent=47 // pred_check_branch
        %4697 = sbr.rel (%p4695) target = $region52
      $region51: #{residual_block.1} parent=47 // pred_region
        %p4698 = scmp.lt.s32.totalorder %s17, 1
        %s4699 = scalar_select %p4698, %s17, 1
        %s4700 = smul.addr %s4699, 32
        %s4701 = smul.addr %s4700, 8
        %s4702 = scalar_lea.vmem %s5, %s4701
      $region52: #{residual_block.1} parent=47 // pred_fallthru
        _
    $region48: #{residual_block.1} parent=5 // pred_fallthru
      _
  $region6: #{residual_block.1} parent=0 // loop_footer
    %s15 = sadd.s32 1, %s11
  $region7: #{residual_block.1} parent=0 // loop_footer_branch
    %10 = sbr.rel target = $region3
  $region8: #{residual_block.1} parent=0 // loop_exit
    _

</llo_original>
